<compile_context>
chip_gen: v6e
topology: v6e:2x2x1
jax: 0.10.0
libtpu: 0.0.40
codegen_flags: <defaults>
</compile_context>

<pallas_src>
import math

import jax
import jax.numpy as jnp
from jax.experimental import pallas as pl
from jax.experimental.pallas import tpu as pltpu

# ----- module-consistent hyperparameters (small shapes) -----
D_MODEL = 32          # d_model
L_MAX = 16            # l_max == sequence length used here
BATCH = 2
ORDER = 2             # HyenaOperator order (default 2)
FILTER_ORDER = 16     # width of the implicit-filter MLP (HyenaFilter "order")
EMB_DIM = 3           # positional embedding dim (HyenaFilter default, odd >= 3)
NUM_GROUPS = ORDER + 1
INNER_WIDTH = D_MODEL * NUM_GROUPS

# float32-exact matmuls keep the 1e-3 cross-check against the FFT reference tight.
# Production configs can drop this to Precision.DEFAULT (single-pass bf16 MXU,
# 3-6x less MXU work per dot) once a looser tolerance is acceptable.
MM_PRECISION = jax.lax.Precision.HIGHEST


def _dotf(a, b):
    return jnp.dot(a, b, precision=MM_PRECISION, preferred_element_type=jnp.float32)


# ---------------------------------------------------------------------------
# Fused kernel: filter generation + in_proj + short conv + long conv + out_proj,
# one batch element per grid step.
# ---------------------------------------------------------------------------
def _hyena_fused_kernel(u_ref,
                        z_ref, t_ref, fw1_ref, fb1_ref, freq_ref,
                        fw2_ref, fb2_ref, fw3_ref, fb3_ref, fw4_ref, dlt_ref,
                        win_ref, bin_ref, cw_ref, cb_ref, fbias_ref,
                        wout_ref, bout_ref,
                        y_ref):
    f32 = jnp.float32
    L = u_ref.shape[1]
    D = y_ref.shape[2]

    # --- HyenaFilter.filter: k = ExponentialModulation(t, MLP(pos_emb))  -> (L, D) ---
    freq = freq_ref[...]
    h = jnp.sin(freq * (_dotf(z_ref[...], fw1_ref[...]) + fb1_ref[...]))
    h = jnp.sin(freq * (_dotf(h, fw2_ref[...]) + fb2_ref[...]))
    h = jnp.sin(freq * (_dotf(h, fw3_ref[...]) + fb3_ref[...]))
    h = _dotf(h, fw4_ref[...])
    k = h * jnp.exp(-t_ref[...] * dlt_ref[...])                     # (L, D)

    # --- in_proj: all three groups in a single (L,D)x(D,3D) MXU matmul ---
    u = u_ref[0]                                                    # (L, D)
    up = _dotf(u, win_ref[...]) + bin_ref[...]                      # (L, 3D)

    # --- causal depthwise width-3 conv (Conv1d padding=2, sliced to [:L]):
    #     pure data movement (zero-pad + static sublane slices), no shift matmuls ---
    c3 = up.shape[1]
    up_pad = jnp.concatenate([jnp.zeros((8, c3), f32), up], axis=0)  # 8-row pad -> aligned concat
    cw = cw_ref[...]                                                 # (3, 3D) taps
    uc = (cw[2:3, :] * up
          + cw[1:2, :] * up_pad[7:7 + L, :]        # up[t-1] (0 if t < 1)
          + cw[0:1, :] * up_pad[6:6 + L, :]        # up[t-2] (0 if t < 2)
          + cb_ref[...])

    x0 = uc[:, 0:D]
    x1 = uc[:, D:2 * D]
    v = uc[:, 2 * D:3 * D] * x1                                      # v = v * x1

    # --- long implicit-filter causal conv via lag accumulation (no (L,L,D) Toeplitz):
    #     y[t,d] = sum_{tau<=t} k[tau,d] * v[t-tau,d] ---
    v_pad = jnp.concatenate([jnp.zeros((L, D), f32), v], axis=0)     # (2L, D), aligned
    acc = k[0:1, :] * v                                              # tau = 0
    for tau in range(1, L):                                          # unrolled; VPU FMAs only
        acc = acc + k[tau:tau + 1, :] * v_pad[L - tau:2 * L - tau, :]
    v = acc + v * fbias_ref[...]

    # --- gate with x0 and out_proj ---
    # NOTE: D_MODEL=32 < 128 lanes, so this store is a masked vst; real configs should
    # use a d_model that is a multiple of 128 (or flatten to a lane-dense (1, L*D) slab).
    y_ref[0] = _dotf(v * x0, wout_ref[...]) + bout_ref[...]


# ---------------------------------------------------------------------------
# Wrappers
# ---------------------------------------------------------------------------
def prepare_params(params):
    """One-time static reshapes of the PyTorch-layout parameters into kernel layouts
    (kept outside the per-forward path)."""
    return (
        params["pos_z"][0],                       # (L, E)
        params["pos_t"][0],                       # (L, 1)
        params["fw1"].T, params["fb1"][None, :], params["freq"],
        params["fw2"].T, params["fb2"][None, :],
        params["fw3"].T, params["fb3"][None, :],
        params["fw4"].T, jnp.abs(params["deltas"]),
        params["w_in"].T,                         # (D, 3D): merged projection matrix
        params["b_in"][None, :],                  # (1, 3D)
        params["conv_w"][:, 0, :].T,              # (3, 3D): depthwise taps, tap-major
        params["conv_b"][None, :],                # (1, 3D)
        params["f_bias"][None, :],                # (1, D)
        params["w_out"].T,                        # (D, D)
        params["b_out"][None, :],                 # (1, D)
    )


@jax.jit
def hyena_forward(u, prep):
    B, L, D = u.shape
    in_specs = [pl.BlockSpec((1, L, D), lambda b: (b, 0, 0))]
    # Weight/filter operands: full-array blocks with constant index maps. They total a
    # few KB now that the L^2*D Toeplitz is gone, so per-step re-fetch under grid=(B,)
    # is negligible.
    in_specs += [pl.BlockSpec(p.shape, lambda b: (0, 0)) for p in prep]
    return pl.pallas_call(
        _hyena_fused_kernel,
        out_shape=jax.ShapeDtypeStruct((B, L, D), jnp.float32),
        grid=(B,),
        in_specs=in_specs,
        out_specs=pl.BlockSpec((1, L, D), lambda b: (b, 0, 0)),
        # "parallel" batch axis: the two batch elements split across v7x's two
        # TensorCores; on single-TC v5e/v6e the extra grid step is ~0.35 us.
        compiler_params=pltpu.CompilerParams(dimension_semantics=("parallel",)),
    )(u, *prep)


# ---------------------------------------------------------------------------
# Deterministic parameter init (shapes from HyenaOperator/HyenaFilter __init__)
# ---------------------------------------------------------------------------
def init_params(key):
    D, FO, E, L = D_MODEL, FILTER_ORDER, EMB_DIM, L_MAX
    ks = jax.random.split(key, 16)
    n = jax.random.normal
    p = {
        # HyenaOperator
        "w_in": 0.2 * n(ks[0], (INNER_WIDTH, D), jnp.float32),
        "b_in": 0.1 * n(ks[1], (INNER_WIDTH,), jnp.float32),
        "w_out": 0.2 * n(ks[2], (D, D), jnp.float32),
        "b_out": 0.1 * n(ks[3], (D,), jnp.float32),
        "conv_w": 0.3 * n(ks[4], (INNER_WIDTH, 1, 3), jnp.float32),   # depthwise Conv1d weight
        "conv_b": 0.1 * n(ks[5], (INNER_WIDTH,), jnp.float32),
        # HyenaFilter (d_model*(order-1) = D channels)
        "f_bias": 0.1 * n(ks[6], (D,), jnp.float32),
        "fw1": 0.5 * n(ks[7], (FO, E), jnp.float32),
        "fb1": 0.1 * n(ks[8], (FO,), jnp.float32),
        "fw2": 0.3 * n(ks[9], (FO, FO), jnp.float32),
        "fb2": 0.1 * n(ks[10], (FO,), jnp.float32),
        "fw3": 0.3 * n(ks[11], (FO, FO), jnp.float32),
        "fb3": 0.1 * n(ks[12], (FO,), jnp.float32),
        "fw4": 0.3 * n(ks[13], (D, FO), jnp.float32),
        "freq": jnp.ones((1, FO), jnp.float32),                       # Sin(dim=FO, w=1)
    }
    # PositionalEmbedding (formulaic, seq_len = l_max = L)
    t = jnp.linspace(0.0, 1.0, L)[None, :, None]
    bands = (E - 1) // 2
    t_resc = jnp.linspace(0.0, L - 1, L)[None, :, None]
    w = 2 * math.pi * t_resc / L
    f = jnp.linspace(1e-4, bands - 1, bands)[None, None]
    zc = jnp.exp(-1j * f * w)
    p["pos_z"] = jnp.concatenate([t, zc.real, zc.imag], axis=-1).astype(jnp.float32)  # (1,L,E)
    p["pos_t"] = t.astype(jnp.float32)                                                # (1,L,1)
    # ExponentialModulation deltas
    max_decay = math.log(0.01) / 0.3
    min_decay = math.log(0.01) / 1.5
    p["deltas"] = jnp.linspace(min_decay, max_decay, D)[None, :].astype(jnp.float32)  # (1,D)
    return p


# ---------------------------------------------------------------------------
# Plain-JAX reference (mirrors the PyTorch forward, including the FFT conv)
# ---------------------------------------------------------------------------
def reference_filter(p, L):
    z = p["pos_z"][0, :L]
    t = p["pos_t"][0, :L]
    h = jnp.sin(p["freq"] * (_dotf(z, p["fw1"].T) + p["fb1"]))
    h = jnp.sin(p["freq"] * (_dotf(h, p["fw2"].T) + p["fb2"]))
    h = jnp.sin(p["freq"] * (_dotf(h, p["fw3"].T) + p["fb3"]))
    h = _dotf(h, p["fw4"].T)
    decay = jnp.exp(-t * jnp.abs(p["deltas"]))
    return h * decay                                          # (L, D)


def reference_forward(u, p):
    B, L, D = u.shape
    up = _dotf(u, p["w_in"].T) + p["b_in"]                    # (B, L, 3D)
    up = jnp.transpose(up, (0, 2, 1))                         # (B, 3D, L)
    w = p["conv_w"][:, 0, :]                                  # (3D, 3)
    pad = jnp.pad(up, ((0, 0), (0, 0), (2, 0)))
    uc = (w[None, :, 0:1] * pad[..., 0:L]
          + w[None, :, 1:2] * pad[..., 1:L + 1]
          + w[None, :, 2:3] * pad[..., 2:L + 2]) + p["conv_b"][None, :, None]
    x0, x1, v = uc[:, :D], uc[:, D:2 * D], uc[:, 2 * D:]
    k = reference_filter(p, L).T                              # (D, L)
    v = v * x1
    fft_size = 2 * L
    k_f = jnp.fft.rfft(k, n=fft_size) / fft_size
    u_f = jnp.fft.rfft(v, n=fft_size)
    y = jnp.fft.irfft(u_f * k_f[None], n=fft_size, norm="forward")[..., :L]
    v = y + v * p["f_bias"][None, :, None]
    y = jnp.transpose(v * x0, (0, 2, 1))
    return _dotf(y, p["w_out"].T) + p["b_out"]


if __name__ == "__main__":
    key = jax.random.PRNGKey(0)
    pkey, ukey = jax.random.split(key)
    params = init_params(pkey)
    prep = prepare_params(params)                 # static parameter reshapes, once
    u = jax.random.normal(ukey, (BATCH, L_MAX, D_MODEL), jnp.float32)

    out = hyena_forward(u, prep)
    out = jax.block_until_ready(out)

    ref = reference_forward(u, params)
    err = float(jnp.max(jnp.abs(out - ref)))
    assert err < 1e-3, f"mismatch vs reference: {err}"
    print("KERNEL_OK")
</pallas_src>

<mosaic_0001>
module attributes {stable_mosaic.version = 11 : i64} {
  func.func @_hyena_fused_kernel(%arg0: i32, %arg1: memref<1x16x32xf32, #tpu.memory_space<vmem>>, %arg2: memref<16x3xf32, #tpu.memory_space<vmem>>, %arg3: memref<16x1xf32, #tpu.memory_space<vmem>>, %arg4: memref<3x16xf32, #tpu.memory_space<vmem>>, %arg5: memref<1x16xf32, #tpu.memory_space<vmem>>, %arg6: memref<1x16xf32, #tpu.memory_space<vmem>>, %arg7: memref<16x16xf32, #tpu.memory_space<vmem>>, %arg8: memref<1x16xf32, #tpu.memory_space<vmem>>, %arg9: memref<16x16xf32, #tpu.memory_space<vmem>>, %arg10: memref<1x16xf32, #tpu.memory_space<vmem>>, %arg11: memref<16x32xf32, #tpu.memory_space<vmem>>, %arg12: memref<1x32xf32, #tpu.memory_space<vmem>>, %arg13: memref<32x96xf32, #tpu.memory_space<vmem>>, %arg14: memref<1x96xf32, #tpu.memory_space<vmem>>, %arg15: memref<3x96xf32, #tpu.memory_space<vmem>>, %arg16: memref<1x96xf32, #tpu.memory_space<vmem>>, %arg17: memref<1x32xf32, #tpu.memory_space<vmem>>, %arg18: memref<32x32xf32, #tpu.memory_space<vmem>>, %arg19: memref<1x32xf32, #tpu.memory_space<vmem>>, %arg20: memref<1x16x32xf32, #tpu.memory_space<vmem>>) attributes {dimension_semantics = [#tpu.dimension_semantics<parallel>], iteration_bounds = array<i64: 2>, scalar_prefetch = 0 : i64, scratch_operands = 0 : i64, tpu.core_type = #tpu.core_type<tc>, window_params = [{transform_indices = @transform_0, window_bounds = array<i64: 1, 16, 32>}, {pipeline_mode = #tpu.pipeline_mode<synchronous>, transform_indices = @transform_1, window_bounds = array<i64: 16, 3>}, {pipeline_mode = #tpu.pipeline_mode<synchronous>, transform_indices = @transform_2, window_bounds = array<i64: 16, 1>}, {pipeline_mode = #tpu.pipeline_mode<synchronous>, transform_indices = @transform_3, window_bounds = array<i64: 3, 16>}, {pipeline_mode = #tpu.pipeline_mode<synchronous>, transform_indices = @transform_4, window_bounds = array<i64: 1, 16>}, {pipeline_mode = #tpu.pipeline_mode<synchronous>, transform_indices = @transform_5, window_bounds = array<i64: 1, 16>}, {pipeline_mode = #tpu.pipeline_mode<synchronous>, transform_indices = @transform_6, window_bounds = array<i64: 16, 16>}, {pipeline_mode = #tpu.pipeline_mode<synchronous>, transform_indices = @transform_7, window_bounds = array<i64: 1, 16>}, {pipeline_mode = #tpu.pipeline_mode<synchronous>, transform_indices = @transform_8, window_bounds = array<i64: 16, 16>}, {pipeline_mode = #tpu.pipeline_mode<synchronous>, transform_indices = @transform_9, window_bounds = array<i64: 1, 16>}, {pipeline_mode = #tpu.pipeline_mode<synchronous>, transform_indices = @transform_10, window_bounds = array<i64: 16, 32>}, {pipeline_mode = #tpu.pipeline_mode<synchronous>, transform_indices = @transform_11, window_bounds = array<i64: 1, 32>}, {pipeline_mode = #tpu.pipeline_mode<synchronous>, transform_indices = @transform_12, window_bounds = array<i64: 32, 96>}, {pipeline_mode = #tpu.pipeline_mode<synchronous>, transform_indices = @transform_13, window_bounds = array<i64: 1, 96>}, {pipeline_mode = #tpu.pipeline_mode<synchronous>, transform_indices = @transform_14, window_bounds = array<i64: 3, 96>}, {pipeline_mode = #tpu.pipeline_mode<synchronous>, transform_indices = @transform_15, window_bounds = array<i64: 1, 96>}, {pipeline_mode = #tpu.pipeline_mode<synchronous>, transform_indices = @transform_16, window_bounds = array<i64: 1, 32>}, {pipeline_mode = #tpu.pipeline_mode<synchronous>, transform_indices = @transform_17, window_bounds = array<i64: 32, 32>}, {pipeline_mode = #tpu.pipeline_mode<synchronous>, transform_indices = @transform_18, window_bounds = array<i64: 1, 32>}, {transform_indices = @transform_19, window_bounds = array<i64: 1, 16, 32>}]} {
    %c0 = arith.constant 0 : index
    %c0_0 = arith.constant 0 : index
    %0 = vector.load %arg6[%c0, %c0_0] : memref<1x16xf32, #tpu.memory_space<vmem>>, vector<1x16xf32>
    %c0_1 = arith.constant 0 : index
    %c0_2 = arith.constant 0 : index
    %1 = vector.load %arg2[%c0_1, %c0_2] : memref<16x3xf32, #tpu.memory_space<vmem>>, vector<16x3xf32>
    %c0_3 = arith.constant 0 : index
    %c0_4 = arith.constant 0 : index
    %2 = vector.load %arg4[%c0_3, %c0_4] : memref<3x16xf32, #tpu.memory_space<vmem>>, vector<3x16xf32>
    %cst = arith.constant dense<0.000000e+00> : vector<16x16xf32>
    %3 = tpu.matmul %1, %2, %cst {dimension_numbers = #tpu.dot_dimension_numbers<[1], [0], [0], [1], [0, 0, 1, 1], [], []>, precision = #tpu.contract_precision<fp32>} : vector<16x3xf32>, vector<3x16xf32>, vector<16x16xf32> -> vector<16x16xf32>
    %c0_5 = arith.constant 0 : index
    %c0_6 = arith.constant 0 : index
    %4 = vector.load %arg5[%c0_5, %c0_6] : memref<1x16xf32, #tpu.memory_space<vmem>>, vector<1x16xf32>
    %5 = vector.broadcast %4 : vector<1x16xf32> to vector<16x16xf32>
    %6 = arith.addf %3, %5 : vector<16x16xf32>
    %7 = vector.broadcast %0 : vector<1x16xf32> to vector<16x16xf32>
    %8 = arith.mulf %7, %6 : vector<16x16xf32>
    %9 = math.sin %8 : vector<16x16xf32>
    %c0_7 = arith.constant 0 : index
    %c0_8 = arith.constant 0 : index
    %10 = vector.load %arg7[%c0_7, %c0_8] : memref<16x16xf32, #tpu.memory_space<vmem>>, vector<16x16xf32>
    %cst_9 = arith.constant dense<0.000000e+00> : vector<16x16xf32>
    %11 = tpu.matmul %9, %10, %cst_9 {dimension_numbers = #tpu.dot_dimension_numbers<[1], [0], [0], [1], [0, 0, 1, 1], [], []>, precision = #tpu.contract_precision<fp32>} : vector<16x16xf32>, vector<16x16xf32>, vector<16x16xf32> -> vector<16x16xf32>
    %c0_10 = arith.constant 0 : index
    %c0_11 = arith.constant 0 : index
    %12 = vector.load %arg8[%c0_10, %c0_11] : memref<1x16xf32, #tpu.memory_space<vmem>>, vector<1x16xf32>
    %13 = vector.broadcast %12 : vector<1x16xf32> to vector<16x16xf32>
    %14 = arith.addf %11, %13 : vector<16x16xf32>
    %15 = vector.broadcast %0 : vector<1x16xf32> to vector<16x16xf32>
    %16 = arith.mulf %15, %14 : vector<16x16xf32>
    %17 = math.sin %16 : vector<16x16xf32>
    %c0_12 = arith.constant 0 : index
    %c0_13 = arith.constant 0 : index
    %18 = vector.load %arg9[%c0_12, %c0_13] : memref<16x16xf32, #tpu.memory_space<vmem>>, vector<16x16xf32>
    %cst_14 = arith.constant dense<0.000000e+00> : vector<16x16xf32>
    %19 = tpu.matmul %17, %18, %cst_14 {dimension_numbers = #tpu.dot_dimension_numbers<[1], [0], [0], [1], [0, 0, 1, 1], [], []>, precision = #tpu.contract_precision<fp32>} : vector<16x16xf32>, vector<16x16xf32>, vector<16x16xf32> -> vector<16x16xf32>
    %c0_15 = arith.constant 0 : index
    %c0_16 = arith.constant 0 : index
    %20 = vector.load %arg10[%c0_15, %c0_16] : memref<1x16xf32, #tpu.memory_space<vmem>>, vector<1x16xf32>
    %21 = vector.broadcast %20 : vector<1x16xf32> to vector<16x16xf32>
    %22 = arith.addf %19, %21 : vector<16x16xf32>
    %23 = vector.broadcast %0 : vector<1x16xf32> to vector<16x16xf32>
    %24 = arith.mulf %23, %22 : vector<16x16xf32>
    %25 = math.sin %24 : vector<16x16xf32>
    %c0_17 = arith.constant 0 : index
    %c0_18 = arith.constant 0 : index
    %26 = vector.load %arg11[%c0_17, %c0_18] : memref<16x32xf32, #tpu.memory_space<vmem>>, vector<16x32xf32>
    %cst_19 = arith.constant dense<0.000000e+00> : vector<16x32xf32>
    %27 = tpu.matmul %25, %26, %cst_19 {dimension_numbers = #tpu.dot_dimension_numbers<[1], [0], [0], [1], [0, 0, 1, 1], [], []>, precision = #tpu.contract_precision<fp32>} : vector<16x16xf32>, vector<16x32xf32>, vector<16x32xf32> -> vector<16x32xf32>
    %c0_20 = arith.constant 0 : index
    %c0_21 = arith.constant 0 : index
    %28 = vector.load %arg3[%c0_20, %c0_21] : memref<16x1xf32, #tpu.memory_space<vmem>>, vector<16x1xf32>
    %cst_22 = arith.constant 0.000000e+00 : f32
    %29 = vector.broadcast %cst_22 : f32 to vector<16x1xf32>
    %30 = arith.subf %29, %28 : vector<16x1xf32>
    %c0_23 = arith.constant 0 : index
    %c0_24 = arith.constant 0 : index
    %31 = vector.load %arg12[%c0_23, %c0_24] : memref<1x32xf32, #tpu.memory_space<vmem>>, vector<1x32xf32>
    %32 = vector.broadcast %30 : vector<16x1xf32> to vector<16x32xf32>
    %33 = vector.broadcast %31 : vector<1x32xf32> to vector<16x32xf32>
    %34 = arith.mulf %32, %33 : vector<16x32xf32>
    %35 = math.exp %34 : vector<16x32xf32>
    %36 = arith.mulf %27, %35 : vector<16x32xf32>
    %c0_25 = arith.constant 0 : index
    %c0_26 = arith.constant 0 : index
    %c0_27 = arith.constant 0 : index
    %37 = vector.load %arg1[%c0_25, %c0_26, %c0_27] : memref<1x16x32xf32, #tpu.memory_space<vmem>>, vector<1x16x32xf32>
    %38 = vector.shape_cast %37 : vector<1x16x32xf32> to vector<16x32xf32>
    %c0_28 = arith.constant 0 : index
    %c0_29 = arith.constant 0 : index
    %39 = vector.load %arg13[%c0_28, %c0_29] : memref<32x96xf32, #tpu.memory_space<vmem>>, vector<32x96xf32>
    %cst_30 = arith.constant dense<0.000000e+00> : vector<16x96xf32>
    %40 = tpu.matmul %38, %39, %cst_30 {dimension_numbers = #tpu.dot_dimension_numbers<[1], [0], [0], [1], [0, 0, 1, 1], [], []>, precision = #tpu.contract_precision<fp32>} : vector<16x32xf32>, vector<32x96xf32>, vector<16x96xf32> -> vector<16x96xf32>
    %c0_31 = arith.constant 0 : index
    %c0_32 = arith.constant 0 : index
    %41 = vector.load %arg14[%c0_31, %c0_32] : memref<1x96xf32, #tpu.memory_space<vmem>>, vector<1x96xf32>
    %42 = vector.broadcast %41 : vector<1x96xf32> to vector<16x96xf32>
    %43 = arith.addf %40, %42 : vector<16x96xf32>
    %cst_33 = arith.constant 0.000000e+00 : f32
    %44 = vector.broadcast %cst_33 : f32 to vector<8x96xf32>
    %45 = tpu.concatenate %44, %43 in 0 : vector<8x96xf32>, vector<16x96xf32> -> vector<24x96xf32>
    %c0_34 = arith.constant 0 : index
    %c0_35 = arith.constant 0 : index
    %46 = vector.load %arg15[%c0_34, %c0_35] : memref<3x96xf32, #tpu.memory_space<vmem>>, vector<3x96xf32>
    %47 = vector.extract_strided_slice %46 {offsets = [2, 0], sizes = [1, 96], strides = [1, 1]} : vector<3x96xf32> to vector<1x96xf32>
    %48 = vector.broadcast %47 : vector<1x96xf32> to vector<16x96xf32>
    %49 = arith.mulf %48, %43 : vector<16x96xf32>
    %50 = vector.extract_strided_slice %46 {offsets = [1, 0], sizes = [1, 96], strides = [1, 1]} : vector<3x96xf32> to vector<1x96xf32>
    %51 = vector.extract_strided_slice %45 {offsets = [7, 0], sizes = [16, 96], strides = [1, 1]} : vector<24x96xf32> to vector<16x96xf32>
    %52 = vector.broadcast %50 : vector<1x96xf32> to vector<16x96xf32>
    %53 = arith.mulf %52, %51 : vector<16x96xf32>
    %54 = arith.addf %49, %53 : vector<16x96xf32>
    %55 = vector.extract_strided_slice %46 {offsets = [0, 0], sizes = [1, 96], strides = [1, 1]} : vector<3x96xf32> to vector<1x96xf32>
    %56 = vector.extract_strided_slice %45 {offsets = [6, 0], sizes = [16, 96], strides = [1, 1]} : vector<24x96xf32> to vector<16x96xf32>
    %57 = vector.broadcast %55 : vector<1x96xf32> to vector<16x96xf32>
    %58 = arith.mulf %57, %56 : vector<16x96xf32>
    %59 = arith.addf %54, %58 : vector<16x96xf32>
    %c0_36 = arith.constant 0 : index
    %c0_37 = arith.constant 0 : index
    %60 = vector.load %arg16[%c0_36, %c0_37] : memref<1x96xf32, #tpu.memory_space<vmem>>, vector<1x96xf32>
    %61 = vector.broadcast %60 : vector<1x96xf32> to vector<16x96xf32>
    %62 = arith.addf %59, %61 : vector<16x96xf32>
    %63 = vector.extract_strided_slice %62 {offsets = [0, 0], sizes = [16, 32], strides = [1, 1]} : vector<16x96xf32> to vector<16x32xf32>
    %64 = vector.extract_strided_slice %62 {offsets = [0, 32], sizes = [16, 32], strides = [1, 1]} : vector<16x96xf32> to vector<16x32xf32>
    %65 = vector.extract_strided_slice %62 {offsets = [0, 64], sizes = [16, 32], strides = [1, 1]} : vector<16x96xf32> to vector<16x32xf32>
    %66 = arith.mulf %65, %64 : vector<16x32xf32>
    %cst_38 = arith.constant 0.000000e+00 : f32
    %67 = vector.broadcast %cst_38 : f32 to vector<16x32xf32>
    %68 = tpu.concatenate %67, %66 in 0 : vector<16x32xf32>, vector<16x32xf32> -> vector<32x32xf32>
    %69 = vector.extract_strided_slice %36 {offsets = [0, 0], sizes = [1, 32], strides = [1, 1]} : vector<16x32xf32> to vector<1x32xf32>
    %70 = vector.broadcast %69 : vector<1x32xf32> to vector<16x32xf32>
    %71 = arith.mulf %70, %66 : vector<16x32xf32>
    %72 = vector.extract_strided_slice %36 {offsets = [1, 0], sizes = [1, 32], strides = [1, 1]} : vector<16x32xf32> to vector<1x32xf32>
    %73 = vector.extract_strided_slice %68 {offsets = [15, 0], sizes = [16, 32], strides = [1, 1]} : vector<32x32xf32> to vector<16x32xf32>
    %74 = vector.broadcast %72 : vector<1x32xf32> to vector<16x32xf32>
    %75 = arith.mulf %74, %73 : vector<16x32xf32>
    %76 = arith.addf %71, %75 : vector<16x32xf32>
    %77 = vector.extract_strided_slice %36 {offsets = [2, 0], sizes = [1, 32], strides = [1, 1]} : vector<16x32xf32> to vector<1x32xf32>
    %78 = vector.extract_strided_slice %68 {offsets = [14, 0], sizes = [16, 32], strides = [1, 1]} : vector<32x32xf32> to vector<16x32xf32>
    %79 = vector.broadcast %77 : vector<1x32xf32> to vector<16x32xf32>
    %80 = arith.mulf %79, %78 : vector<16x32xf32>
    %81 = arith.addf %76, %80 : vector<16x32xf32>
    %82 = vector.extract_strided_slice %36 {offsets = [3, 0], sizes = [1, 32], strides = [1, 1]} : vector<16x32xf32> to vector<1x32xf32>
    %83 = vector.extract_strided_slice %68 {offsets = [13, 0], sizes = [16, 32], strides = [1, 1]} : vector<32x32xf32> to vector<16x32xf32>
    %84 = vector.broadcast %82 : vector<1x32xf32> to vector<16x32xf32>
    %85 = arith.mulf %84, %83 : vector<16x32xf32>
    %86 = arith.addf %81, %85 : vector<16x32xf32>
    %87 = vector.extract_strided_slice %36 {offsets = [4, 0], sizes = [1, 32], strides = [1, 1]} : vector<16x32xf32> to vector<1x32xf32>
    %88 = vector.extract_strided_slice %68 {offsets = [12, 0], sizes = [16, 32], strides = [1, 1]} : vector<32x32xf32> to vector<16x32xf32>
    %89 = vector.broadcast %87 : vector<1x32xf32> to vector<16x32xf32>
    %90 = arith.mulf %89, %88 : vector<16x32xf32>
    %91 = arith.addf %86, %90 : vector<16x32xf32>
    %92 = vector.extract_strided_slice %36 {offsets = [5, 0], sizes = [1, 32], strides = [1, 1]} : vector<16x32xf32> to vector<1x32xf32>
    %93 = vector.extract_strided_slice %68 {offsets = [11, 0], sizes = [16, 32], strides = [1, 1]} : vector<32x32xf32> to vector<16x32xf32>
    %94 = vector.broadcast %92 : vector<1x32xf32> to vector<16x32xf32>
    %95 = arith.mulf %94, %93 : vector<16x32xf32>
    %96 = arith.addf %91, %95 : vector<16x32xf32>
    %97 = vector.extract_strided_slice %36 {offsets = [6, 0], sizes = [1, 32], strides = [1, 1]} : vector<16x32xf32> to vector<1x32xf32>
    %98 = vector.extract_strided_slice %68 {offsets = [10, 0], sizes = [16, 32], strides = [1, 1]} : vector<32x32xf32> to vector<16x32xf32>
    %99 = vector.broadcast %97 : vector<1x32xf32> to vector<16x32xf32>
    %100 = arith.mulf %99, %98 : vector<16x32xf32>
    %101 = arith.addf %96, %100 : vector<16x32xf32>
    %102 = vector.extract_strided_slice %36 {offsets = [7, 0], sizes = [1, 32], strides = [1, 1]} : vector<16x32xf32> to vector<1x32xf32>
    %103 = vector.extract_strided_slice %68 {offsets = [9, 0], sizes = [16, 32], strides = [1, 1]} : vector<32x32xf32> to vector<16x32xf32>
    %104 = vector.broadcast %102 : vector<1x32xf32> to vector<16x32xf32>
    %105 = arith.mulf %104, %103 : vector<16x32xf32>
    %106 = arith.addf %101, %105 : vector<16x32xf32>
    %107 = vector.extract_strided_slice %36 {offsets = [8, 0], sizes = [1, 32], strides = [1, 1]} : vector<16x32xf32> to vector<1x32xf32>
    %108 = vector.extract_strided_slice %68 {offsets = [8, 0], sizes = [16, 32], strides = [1, 1]} : vector<32x32xf32> to vector<16x32xf32>
    %109 = vector.broadcast %107 : vector<1x32xf32> to vector<16x32xf32>
    %110 = arith.mulf %109, %108 : vector<16x32xf32>
    %111 = arith.addf %106, %110 : vector<16x32xf32>
    %112 = vector.extract_strided_slice %36 {offsets = [9, 0], sizes = [1, 32], strides = [1, 1]} : vector<16x32xf32> to vector<1x32xf32>
    %113 = vector.extract_strided_slice %68 {offsets = [7, 0], sizes = [16, 32], strides = [1, 1]} : vector<32x32xf32> to vector<16x32xf32>
    %114 = vector.broadcast %112 : vector<1x32xf32> to vector<16x32xf32>
    %115 = arith.mulf %114, %113 : vector<16x32xf32>
    %116 = arith.addf %111, %115 : vector<16x32xf32>
    %117 = vector.extract_strided_slice %36 {offsets = [10, 0], sizes = [1, 32], strides = [1, 1]} : vector<16x32xf32> to vector<1x32xf32>
    %118 = vector.extract_strided_slice %68 {offsets = [6, 0], sizes = [16, 32], strides = [1, 1]} : vector<32x32xf32> to vector<16x32xf32>
    %119 = vector.broadcast %117 : vector<1x32xf32> to vector<16x32xf32>
    %120 = arith.mulf %119, %118 : vector<16x32xf32>
    %121 = arith.addf %116, %120 : vector<16x32xf32>
    %122 = vector.extract_strided_slice %36 {offsets = [11, 0], sizes = [1, 32], strides = [1, 1]} : vector<16x32xf32> to vector<1x32xf32>
    %123 = vector.extract_strided_slice %68 {offsets = [5, 0], sizes = [16, 32], strides = [1, 1]} : vector<32x32xf32> to vector<16x32xf32>
    %124 = vector.broadcast %122 : vector<1x32xf32> to vector<16x32xf32>
    %125 = arith.mulf %124, %123 : vector<16x32xf32>
    %126 = arith.addf %121, %125 : vector<16x32xf32>
    %127 = vector.extract_strided_slice %36 {offsets = [12, 0], sizes = [1, 32], strides = [1, 1]} : vector<16x32xf32> to vector<1x32xf32>
    %128 = vector.extract_strided_slice %68 {offsets = [4, 0], sizes = [16, 32], strides = [1, 1]} : vector<32x32xf32> to vector<16x32xf32>
    %129 = vector.broadcast %127 : vector<1x32xf32> to vector<16x32xf32>
    %130 = arith.mulf %129, %128 : vector<16x32xf32>
    %131 = arith.addf %126, %130 : vector<16x32xf32>
    %132 = vector.extract_strided_slice %36 {offsets = [13, 0], sizes = [1, 32], strides = [1, 1]} : vector<16x32xf32> to vector<1x32xf32>
    %133 = vector.extract_strided_slice %68 {offsets = [3, 0], sizes = [16, 32], strides = [1, 1]} : vector<32x32xf32> to vector<16x32xf32>
    %134 = vector.broadcast %132 : vector<1x32xf32> to vector<16x32xf32>
    %135 = arith.mulf %134, %133 : vector<16x32xf32>
    %136 = arith.addf %131, %135 : vector<16x32xf32>
    %137 = vector.extract_strided_slice %36 {offsets = [14, 0], sizes = [1, 32], strides = [1, 1]} : vector<16x32xf32> to vector<1x32xf32>
    %138 = vector.extract_strided_slice %68 {offsets = [2, 0], sizes = [16, 32], strides = [1, 1]} : vector<32x32xf32> to vector<16x32xf32>
    %139 = vector.broadcast %137 : vector<1x32xf32> to vector<16x32xf32>
    %140 = arith.mulf %139, %138 : vector<16x32xf32>
    %141 = arith.addf %136, %140 : vector<16x32xf32>
    %142 = vector.extract_strided_slice %36 {offsets = [15, 0], sizes = [1, 32], strides = [1, 1]} : vector<16x32xf32> to vector<1x32xf32>
    %143 = vector.extract_strided_slice %68 {offsets = [1, 0], sizes = [16, 32], strides = [1, 1]} : vector<32x32xf32> to vector<16x32xf32>
    %144 = vector.broadcast %142 : vector<1x32xf32> to vector<16x32xf32>
    %145 = arith.mulf %144, %143 : vector<16x32xf32>
    %146 = arith.addf %141, %145 : vector<16x32xf32>
    %c0_39 = arith.constant 0 : index
    %c0_40 = arith.constant 0 : index
    %147 = vector.load %arg17[%c0_39, %c0_40] : memref<1x32xf32, #tpu.memory_space<vmem>>, vector<1x32xf32>
    %148 = vector.broadcast %147 : vector<1x32xf32> to vector<16x32xf32>
    %149 = arith.mulf %66, %148 : vector<16x32xf32>
    %150 = arith.addf %146, %149 : vector<16x32xf32>
    %151 = arith.mulf %150, %63 : vector<16x32xf32>
    %c0_41 = arith.constant 0 : index
    %c0_42 = arith.constant 0 : index
    %152 = vector.load %arg18[%c0_41, %c0_42] : memref<32x32xf32, #tpu.memory_space<vmem>>, vector<32x32xf32>
    %cst_43 = arith.constant dense<0.000000e+00> : vector<16x32xf32>
    %153 = tpu.matmul %151, %152, %cst_43 {dimension_numbers = #tpu.dot_dimension_numbers<[1], [0], [0], [1], [0, 0, 1, 1], [], []>, precision = #tpu.contract_precision<fp32>} : vector<16x32xf32>, vector<32x32xf32>, vector<16x32xf32> -> vector<16x32xf32>
    %c0_44 = arith.constant 0 : index
    %c0_45 = arith.constant 0 : index
    %154 = vector.load %arg19[%c0_44, %c0_45] : memref<1x32xf32, #tpu.memory_space<vmem>>, vector<1x32xf32>
    %155 = vector.broadcast %154 : vector<1x32xf32> to vector<16x32xf32>
    %156 = arith.addf %153, %155 : vector<16x32xf32>
    %c0_46 = arith.constant 0 : index
    %c0_47 = arith.constant 0 : index
    %c0_48 = arith.constant 0 : index
    %157 = vector.load %arg20[%c0_46, %c0_47, %c0_48] : memref<1x16x32xf32, #tpu.memory_space<vmem>>, vector<1x16x32xf32>
    %158 = vector.shape_cast %157 : vector<1x16x32xf32> to vector<16x32xf32>
    %159 = vector.shape_cast %156 : vector<16x32xf32> to vector<1x16x32xf32>
    tpu.vector_store %arg20[%c0_46, %c0_47, %c0_48], %159 {strides = array<i32>} : memref<1x16x32xf32, #tpu.memory_space<vmem>>, vector<1x16x32xf32>,
    return
  }
  func.func @transform_0(%arg0: i32) -> (i32, i32, i32) {
    %c0_i32 = arith.constant 0 : i32
    %c0_i32_0 = arith.constant 0 : i32
    %c0_i32_1 = arith.constant 0 : i32
    return %arg0, %c0_i32, %c0_i32_0 : i32, i32, i32
  }
  func.func @transform_1(%arg0: i32) -> (i32, i32) {
    %c0_i32 = arith.constant 0 : i32
    %c0_i32_0 = arith.constant 0 : i32
    %c0_i32_1 = arith.constant 0 : i32
    return %c0_i32, %c0_i32_0 : i32, i32
  }
  func.func @transform_2(%arg0: i32) -> (i32, i32) {
    %c0_i32 = arith.constant 0 : i32
    %c0_i32_0 = arith.constant 0 : i32
    %c0_i32_1 = arith.constant 0 : i32
    return %c0_i32, %c0_i32_0 : i32, i32
  }
  func.func @transform_3(%arg0: i32) -> (i32, i32) {
    %c0_i32 = arith.constant 0 : i32
    %c0_i32_0 = arith.constant 0 : i32
    %c0_i32_1 = arith.constant 0 : i32
    return %c0_i32, %c0_i32_0 : i32, i32
  }
  func.func @transform_4(%arg0: i32) -> (i32, i32) {
    %c0_i32 = arith.constant 0 : i32
    %c0_i32_0 = arith.constant 0 : i32
    %c0_i32_1 = arith.constant 0 : i32
    return %c0_i32, %c0_i32_0 : i32, i32
  }
  func.func @transform_5(%arg0: i32) -> (i32, i32) {
    %c0_i32 = arith.constant 0 : i32
    %c0_i32_0 = arith.constant 0 : i32
    %c0_i32_1 = arith.constant 0 : i32
    return %c0_i32, %c0_i32_0 : i32, i32
  }
  func.func @transform_6(%arg0: i32) -> (i32, i32) {
    %c0_i32 = arith.constant 0 : i32
    %c0_i32_0 = arith.constant 0 : i32
    %c0_i32_1 = arith.constant 0 : i32
    return %c0_i32, %c0_i32_0 : i32, i32
  }
  func.func @transform_7(%arg0: i32) -> (i32, i32) {
    %c0_i32 = arith.constant 0 : i32
    %c0_i32_0 = arith.constant 0 : i32
    %c0_i32_1 = arith.constant 0 : i32
    return %c0_i32, %c0_i32_0 : i32, i32
  }
  func.func @transform_8(%arg0: i32) -> (i32, i32) {
    %c0_i32 = arith.constant 0 : i32
    %c0_i32_0 = arith.constant 0 : i32
    %c0_i32_1 = arith.constant 0 : i32
    return %c0_i32, %c0_i32_0 : i32, i32
  }
  func.func @transform_9(%arg0: i32) -> (i32, i32) {
    %c0_i32 = arith.constant 0 : i32
    %c0_i32_0 = arith.constant 0 : i32
    %c0_i32_1 = arith.constant 0 : i32
    return %c0_i32, %c0_i32_0 : i32, i32
  }
  func.func @transform_10(%arg0: i32) -> (i32, i32) {
    %c0_i32 = arith.constant 0 : i32
    %c0_i32_0 = arith.constant 0 : i32
    %c0_i32_1 = arith.constant 0 : i32
    return %c0_i32, %c0_i32_0 : i32, i32
  }
  func.func @transform_11(%arg0: i32) -> (i32, i32) {
    %c0_i32 = arith.constant 0 : i32
    %c0_i32_0 = arith.constant 0 : i32
    %c0_i32_1 = arith.constant 0 : i32
    return %c0_i32, %c0_i32_0 : i32, i32
  }
  func.func @transform_12(%arg0: i32) -> (i32, i32) {
    %c0_i32 = arith.constant 0 : i32
    %c0_i32_0 = arith.constant 0 : i32
    %c0_i32_1 = arith.constant 0 : i32
    return %c0_i32, %c0_i32_0 : i32, i32
  }
  func.func @transform_13(%arg0: i32) -> (i32, i32) {
    %c0_i32 = arith.constant 0 : i32
    %c0_i32_0 = arith.constant 0 : i32
    %c0_i32_1 = arith.constant 0 : i32
    return %c0_i32, %c0_i32_0 : i32, i32
  }
  func.func @transform_14(%arg0: i32) -> (i32, i32) {
    %c0_i32 = arith.constant 0 : i32
    %c0_i32_0 = arith.constant 0 : i32
    %c0_i32_1 = arith.constant 0 : i32
    return %c0_i32, %c0_i32_0 : i32, i32
  }
  func.func @transform_15(%arg0: i32) -> (i32, i32) {
    %c0_i32 = arith.constant 0 : i32
    %c0_i32_0 = arith.constant 0 : i32
    %c0_i32_1 = arith.constant 0 : i32
    return %c0_i32, %c0_i32_0 : i32, i32
  }
  func.func @transform_16(%arg0: i32) -> (i32, i32) {
    %c0_i32 = arith.constant 0 : i32
    %c0_i32_0 = arith.constant 0 : i32
    %c0_i32_1 = arith.constant 0 : i32
    return %c0_i32, %c0_i32_0 : i32, i32
  }
  func.func @transform_17(%arg0: i32) -> (i32, i32) {
    %c0_i32 = arith.constant 0 : i32
    %c0_i32_0 = arith.constant 0 : i32
    %c0_i32_1 = arith.constant 0 : i32
    return %c0_i32, %c0_i32_0 : i32, i32
  }
  func.func @transform_18(%arg0: i32) -> (i32, i32) {
    %c0_i32 = arith.constant 0 : i32
    %c0_i32_0 = arith.constant 0 : i32
    %c0_i32_1 = arith.constant 0 : i32
    return %c0_i32, %c0_i32_0 : i32, i32
  }
  func.func @transform_19(%arg0: i32) -> (i32, i32, i32) {
    %c0_i32 = arith.constant 0 : i32
    %c0_i32_0 = arith.constant 0 : i32
    %c0_i32_1 = arith.constant 0 : i32
    return %arg0, %c0_i32, %c0_i32_0 : i32, i32, i32
  }
}

</mosaic_0001>

<llo_original>
// kernel: hyena_forward.1
$region0: #{hyena_forward.1}
  #allocation0 [shape = 'u32[]', space=smem, size = 0x4, offset = 0x4, fixed_abs, tag = 'smem constant byte address 0x4 - core index']
  #allocation1 [shape = 'u32[144,128]{1,0:T(1,128)}', space=vmem, size = 0x12000, scoped, tag = 'internal scratch']
  %s0 = inlined_call_operand.vmem [shape: f32[2,16,32], index: 0, kind: input, shape index: {}]
  %s1 = inlined_call_operand.vmem [shape: f32[16,3], index: 1, kind: input, shape index: {}]
  %s2 = inlined_call_operand.vmem [shape: f32[16,1], index: 2, kind: input, shape index: {}]
  %s3 = inlined_call_operand.hbm [shape: f32[3,16], index: 3, kind: input, shape index: {}]
  %s4 = inlined_call_operand.hbm [shape: f32[1,16], index: 4, kind: input, shape index: {}]
  %s5 = inlined_call_operand.hbm [shape: f32[1,16], index: 5, kind: input, shape index: {}]
  %s6 = inlined_call_operand.hbm [shape: f32[16,16], index: 6, kind: input, shape index: {}]
  %s7 = inlined_call_operand.hbm [shape: f32[1,16], index: 7, kind: input, shape index: {}]
  %s8 = inlined_call_operand.hbm [shape: f32[16,16], index: 8, kind: input, shape index: {}]
  %s9 = inlined_call_operand.hbm [shape: f32[1,16], index: 9, kind: input, shape index: {}]
  %s10 = inlined_call_operand.hbm [shape: f32[16,32], index: 10, kind: input, shape index: {}]
  %s11 = inlined_call_operand.hbm [shape: f32[1,32], index: 11, kind: input, shape index: {}]
  %s12 = inlined_call_operand.hbm [shape: f32[32,96], index: 12, kind: input, shape index: {}]
  %s13 = inlined_call_operand.hbm [shape: f32[1,96], index: 13, kind: input, shape index: {}]
  %s14 = inlined_call_operand.hbm [shape: f32[3,96], index: 14, kind: input, shape index: {}]
  %s15 = inlined_call_operand.hbm [shape: f32[1,96], index: 15, kind: input, shape index: {}]
  %s16 = inlined_call_operand.vmem [shape: f32[1,32], index: 16, kind: input, shape index: {}]
  %s17 = inlined_call_operand.vmem [shape: f32[32,32], index: 17, kind: input, shape index: {}]
  %s18 = inlined_call_operand.vmem [shape: f32[1,32], index: 18, kind: input, shape index: {}]
  %s19 = inlined_call_operand.hbm [shape: f32[2,16,32], index: 19, kind: output, shape index: {}]
  %s20 = sld [smem:[#allocation0]]
  $region161: #{hyena_forward.1} parent=0
    _
  %s22 = ssub.s32 1, %s20
  %s23 = scalar_select 0, %s22, %s20
  $region1: #{hyena_forward.1} parent=0
    #allocation2 [shape = 'u8[2048]{0}', space=vmem, size = 0x800, scoped, tag = 'input window, operand 3, single buffered']
    #allocation3 [shape = 's32[2]{0}', space=sflag, size = 0x8, scoped, tag = 'scoped memory for hyena_forward.1']
    #allocation4 [shape = 's32[2]{0}', space=sflag, size = 0x8, scoped, tag = 'scoped memory for hyena_forward.1']
    #allocation5 [shape = 'u8[512]{0}', space=vmem, size = 0x400, scoped, tag = 'input window, operand 4, single buffered']
    #allocation6 [shape = 's32[1]{0}', space=sflag, size = 0x4, scoped, tag = 'scoped memory for hyena_forward.1']
    #allocation7 [shape = 'u8[512]{0}', space=vmem, size = 0x400, scoped, tag = 'input window, operand 5, single buffered']
    #allocation8 [shape = 'u8[8192]{0}', space=vmem, size = 0x2000, scoped, tag = 'input window, operand 6, single buffered']
    #allocation9 [shape = 's32[1]{0}', space=sflag, size = 0x4, scoped, tag = 'scoped memory for hyena_forward.1']
    #allocation10 [shape = 'u8[512]{0}', space=vmem, size = 0x400, scoped, tag = 'input window, operand 7, single buffered']
    #allocation11 [shape = 'u8[8192]{0}', space=vmem, size = 0x2000, scoped, tag = 'input window, operand 8, single buffered']
    #allocation12 [shape = 's32[1]{0}', space=sflag, size = 0x4, scoped, tag = 'scoped memory for hyena_forward.1']
    #allocation13 [shape = 'u8[512]{0}', space=vmem, size = 0x400, scoped, tag = 'input window, operand 9, single buffered']
    #allocation14 [shape = 'u8[8192]{0}', space=vmem, size = 0x2000, scoped, tag = 'input window, operand 10, single buffered']
    #allocation15 [shape = 's32[1]{0}', space=sflag, size = 0x4, scoped, tag = 'scoped memory for hyena_forward.1']
    #allocation16 [shape = 'u8[512]{0}', space=vmem, size = 0x400, scoped, tag = 'input window, operand 11, single buffered']
    #allocation17 [shape = 'u8[16384]{0}', space=vmem, size = 0x4000, scoped, tag = 'input window, operand 12, single buffered']
    #allocation18 [shape = 's32[1]{0}', space=sflag, size = 0x4, scoped, tag = 'scoped memory for hyena_forward.1']
    #allocation19 [shape = 'u8[512]{0}', space=vmem, size = 0x400, scoped, tag = 'input window, operand 13, single buffered']
    #allocation20 [shape = 'u8[2048]{0}', space=vmem, size = 0x800, scoped, tag = 'input window, operand 14, single buffered']
    #allocation21 [shape = 's32[1]{0}', space=sflag, size = 0x4, scoped, tag = 'scoped memory for hyena_forward.1']
    #allocation22 [shape = 'u8[512]{0}', space=vmem, size = 0x400, scoped, tag = 'input window, operand 15, single buffered']
    #allocation23 [shape = 'u8[16384]{0}', space=vmem, size = 0x4000, scoped, tag = 'output window, operand 0']
    %24 = vsyncpa [#allocation3], 0
    %25 = vsyncpa [#allocation6], 0
    %26 = vsyncpa [#allocation9], 0
    %27 = vsyncpa [#allocation12], 0
    %28 = vsyncpa [#allocation15], 0
    %29 = vsyncpa [#allocation18], 0
    %30 = vsyncpa [#allocation21], 0
    %31 = vsyncpa [#allocation4], 0
    %s32 = scalar_lea.sflag [#allocation4], 1
    %33 = vsyncpa %s32, 0
    loop: start=0, step=1, limit=4
    $region2: #{hyena_forward.1} parent=1 // loop_pre_header
      _
    $region3: #{hyena_forward.1} parent=1 // loop_header
      %s35 = sphi 0, %s39
      %p36 = scmp.ge.s32.totalorder %s35, 4
      %s45 = sphi 0, %s47
      %s48 = sphi 0, %s45
      %s49 = sphi 0, %s48
      %s65 = sphi 0, %s49
      %s69 = sphi 0, %s69
      %s71 = sphi 0, %s69
      %s72 = sphi 0, %s71
      %s86 = sphi 0, %s72
      %s90 = sphi 0, %s90
      %s92 = sphi 0, %s90
      %s93 = sphi 0, %s92
      %s107 = sphi 0, %s93
      %s111 = sphi 0, %s111
      %s113 = sphi 0, %s111
      %s114 = sphi 0, %s113
      %s128 = sphi 0, %s114
      %s132 = sphi 0, %s132
      %s134 = sphi 0, %s132
      %s135 = sphi 0, %s134
      %s149 = sphi 0, %s135
      %s153 = sphi 0, %s153
      %s155 = sphi 0, %s153
      %s156 = sphi 0, %s155
      %s170 = sphi 0, %s156
      %s174 = sphi 0, %s174
      %s176 = sphi 0, %s174
      %s177 = sphi 0, %s176
      %s191 = sphi 0, %s177
      %s195 = sphi 0, %s195
      %s197 = sphi 0, %s195
      %s198 = sphi 0, %s197
      %s212 = sphi 0, %s198
      %s216 = sphi 0, %s216
      %s218 = sphi 0, %s216
      %s219 = sphi 0, %s218
      %s233 = sphi 0, %s219
      %s237 = sphi 0, %s237
      %s239 = sphi 0, %s237
      %s240 = sphi 0, %s239
      %s254 = sphi 0, %s240
      %s258 = sphi 0, %s258
      %s260 = sphi 0, %s258
      %s261 = sphi 0, %s260
      %s275 = sphi 0, %s261
      %s279 = sphi 0, %s279
      %s281 = sphi 0, %s279
      %s282 = sphi 0, %s281
      %s296 = sphi 0, %s282
      %s300 = sphi 0, %s300
      %s302 = sphi 0, %s300
      %s303 = sphi 0, %s302
      %s317 = sphi 0, %s303
      %s321 = sphi 0, %s321
      %s323 = sphi 0, %s321
      %s324 = sphi 0, %s323
      %s338 = sphi 0, %s324
      %s342 = sphi 0, %s342
      %s344 = sphi 0, %s342
      %s345 = sphi 0, %s344
      %s359 = sphi 0, %s345
      %s363 = sphi 0, %s363
      %s365 = sphi 0, %s363
      %s366 = sphi 0, %s365
      %s380 = sphi 0, %s366
      %s384 = sphi 0, %s384
      %s386 = sphi 0, %s384
      %s387 = sphi 0, %s386
      %s401 = sphi 0, %s387
      %s405 = sphi 0, %s405
      %s407 = sphi 0, %s405
      %s408 = sphi 0, %s407
      %s422 = sphi 0, %s408
      %s426 = sphi 0, %s426
      %s428 = sphi 0, %s426
      %s429 = sphi 0, %s428
      %s443 = sphi 0, %s429
      %s449 = sphi 0, %s451
      %s452 = sphi 0, %s449
      %s453 = sphi 0, %s452
      %s469 = sphi 0, %s453
    $region4: #{hyena_forward.1} parent=1 // loop_header_branch
      %38 = sbr.rel (%p36) target = $region8
    $region5: #{hyena_forward.1} parent=1 // loop_body
      %s40 = ssub.s32 %s35, 1
      %s41 = ssub.s32 %s35, 2
      %s42 = sadd.s32 %s35, 1
      %s43 = ssub.s32 %s35, %s42
      %p44 = scmp.eq.s32.totalorder %s43, 0
      %s46 = sadd.s32 %s45, 1
      %s47 = scalar_select %p44, %s45, %s46
      %p50 = pneg %p44
      %p51 = scmp.eq.s32.totalorder %s35, 1
      %p52 = por %p50, %p51
      %p53 = scmp.ne.s32.totalorder %s45, %s48
      %p54 = scmp.eq.s32.totalorder %s35, 0
      %p55 = por %p53, %p54
      %p56 = scmp.ne.s32.totalorder %s45, %s48
      %p57 = scmp.eq.s32.totalorder %s40, 1
      %p58 = por %p56, %p57
      %p59 = scmp.ne.s32.totalorder %s48, %s49
      %p60 = scmp.eq.s32.totalorder %s40, 0
      %p61 = por %p59, %p60
      %p62 = scmp.ne.s32.totalorder %s48, %s49
      %p63 = scmp.eq.s32.totalorder %s41, 1
      %p64 = por %p62, %p63
      %p66 = scmp.ne.s32.totalorder %s49, %s65
      %p67 = scmp.eq.s32.totalorder %s41, 0
      %p68 = por %p66, %p67
      %s70 = sadd.s32 %s69, 1
      %p73 = scmp.eq.s32.totalorder %s35, 1
      %p74 = scmp.ne.s32.totalorder %s69, %s71
      %p75 = scmp.eq.s32.totalorder %s35, 0
      %p76 = por %p74, %p75
      %p77 = scmp.ne.s32.totalorder %s69, %s71
      %p78 = scmp.eq.s32.totalorder %s40, 1
      %p79 = por %p77, %p78
      %p80 = scmp.ne.s32.totalorder %s71, %s72
      %p81 = scmp.eq.s32.totalorder %s40, 0
      %p82 = por %p80, %p81
      %p83 = scmp.ne.s32.totalorder %s71, %s72
      %p84 = scmp.eq.s32.totalorder %s41, 1
      %p85 = por %p83, %p84
      %p87 = scmp.ne.s32.totalorder %s72, %s86
      %p88 = scmp.eq.s32.totalorder %s41, 0
      %p89 = por %p87, %p88
      %s91 = sadd.s32 %s90, 1
      %p94 = scmp.eq.s32.totalorder %s35, 1
      %p95 = scmp.ne.s32.totalorder %s90, %s92
      %p96 = scmp.eq.s32.totalorder %s35, 0
      %p97 = por %p95, %p96
      %p98 = scmp.ne.s32.totalorder %s90, %s92
      %p99 = scmp.eq.s32.totalorder %s40, 1
      %p100 = por %p98, %p99
      %p101 = scmp.ne.s32.totalorder %s92, %s93
      %p102 = scmp.eq.s32.totalorder %s40, 0
      %p103 = por %p101, %p102
      %p104 = scmp.ne.s32.totalorder %s92, %s93
      %p105 = scmp.eq.s32.totalorder %s41, 1
      %p106 = por %p104, %p105
      %p108 = scmp.ne.s32.totalorder %s93, %s107
      %p109 = scmp.eq.s32.totalorder %s41, 0
      %p110 = por %p108, %p109
      %s112 = sadd.s32 %s111, 1
      %p115 = scmp.eq.s32.totalorder %s35, 1
      %p116 = scmp.ne.s32.totalorder %s111, %s113
      %p117 = scmp.eq.s32.totalorder %s35, 0
      %p118 = por %p116, %p117
      %p119 = scmp.ne.s32.totalorder %s111, %s113
      %p120 = scmp.eq.s32.totalorder %s40, 1
      %p121 = por %p119, %p120
      %p122 = scmp.ne.s32.totalorder %s113, %s114
      %p123 = scmp.eq.s32.totalorder %s40, 0
      %p124 = por %p122, %p123
      %p125 = scmp.ne.s32.totalorder %s113, %s114
      %p126 = scmp.eq.s32.totalorder %s41, 1
      %p127 = por %p125, %p126
      %p129 = scmp.ne.s32.totalorder %s114, %s128
      %p130 = scmp.eq.s32.totalorder %s41, 0
      %p131 = por %p129, %p130
      %s133 = sadd.s32 %s132, 1
      %p136 = scmp.eq.s32.totalorder %s35, 1
      %p137 = scmp.ne.s32.totalorder %s132, %s134
      %p138 = scmp.eq.s32.totalorder %s35, 0
      %p139 = por %p137, %p138
      %p140 = scmp.ne.s32.totalorder %s132, %s134
      %p141 = scmp.eq.s32.totalorder %s40, 1
      %p142 = por %p140, %p141
      %p143 = scmp.ne.s32.totalorder %s134, %s135
      %p144 = scmp.eq.s32.totalorder %s40, 0
      %p145 = por %p143, %p144
      %p146 = scmp.ne.s32.totalorder %s134, %s135
      %p147 = scmp.eq.s32.totalorder %s41, 1
      %p148 = por %p146, %p147
      %p150 = scmp.ne.s32.totalorder %s135, %s149
      %p151 = scmp.eq.s32.totalorder %s41, 0
      %p152 = por %p150, %p151
      %s154 = sadd.s32 %s153, 1
      %p157 = scmp.eq.s32.totalorder %s35, 1
      %p158 = scmp.ne.s32.totalorder %s153, %s155
      %p159 = scmp.eq.s32.totalorder %s35, 0
      %p160 = por %p158, %p159
      %p161 = scmp.ne.s32.totalorder %s153, %s155
      %p162 = scmp.eq.s32.totalorder %s40, 1
      %p163 = por %p161, %p162
      %p164 = scmp.ne.s32.totalorder %s155, %s156
      %p165 = scmp.eq.s32.totalorder %s40, 0
      %p166 = por %p164, %p165
      %p167 = scmp.ne.s32.totalorder %s155, %s156
      %p168 = scmp.eq.s32.totalorder %s41, 1
      %p169 = por %p167, %p168
      %p171 = scmp.ne.s32.totalorder %s156, %s170
      %p172 = scmp.eq.s32.totalorder %s41, 0
      %p173 = por %p171, %p172
      %s175 = sadd.s32 %s174, 1
      %p178 = scmp.eq.s32.totalorder %s35, 1
      %p179 = scmp.ne.s32.totalorder %s174, %s176
      %p180 = scmp.eq.s32.totalorder %s35, 0
      %p181 = por %p179, %p180
      %p182 = scmp.ne.s32.totalorder %s174, %s176
      %p183 = scmp.eq.s32.totalorder %s40, 1
      %p184 = por %p182, %p183
      %p185 = scmp.ne.s32.totalorder %s176, %s177
      %p186 = scmp.eq.s32.totalorder %s40, 0
      %p187 = por %p185, %p186
      %p188 = scmp.ne.s32.totalorder %s176, %s177
      %p189 = scmp.eq.s32.totalorder %s41, 1
      %p190 = por %p188, %p189
      %p192 = scmp.ne.s32.totalorder %s177, %s191
      %p193 = scmp.eq.s32.totalorder %s41, 0
      %p194 = por %p192, %p193
      %s196 = sadd.s32 %s195, 1
      %p199 = scmp.eq.s32.totalorder %s35, 1
      %p200 = scmp.ne.s32.totalorder %s195, %s197
      %p201 = scmp.eq.s32.totalorder %s35, 0
      %p202 = por %p200, %p201
      %p203 = scmp.ne.s32.totalorder %s195, %s197
      %p204 = scmp.eq.s32.totalorder %s40, 1
      %p205 = por %p203, %p204
      %p206 = scmp.ne.s32.totalorder %s197, %s198
      %p207 = scmp.eq.s32.totalorder %s40, 0
      %p208 = por %p206, %p207
      %p209 = scmp.ne.s32.totalorder %s197, %s198
      %p210 = scmp.eq.s32.totalorder %s41, 1
      %p211 = por %p209, %p210
      %p213 = scmp.ne.s32.totalorder %s198, %s212
      %p214 = scmp.eq.s32.totalorder %s41, 0
      %p215 = por %p213, %p214
      %s217 = sadd.s32 %s216, 1
      %p220 = scmp.eq.s32.totalorder %s35, 1
      %p221 = scmp.ne.s32.totalorder %s216, %s218
      %p222 = scmp.eq.s32.totalorder %s35, 0
      %p223 = por %p221, %p222
      %p224 = scmp.ne.s32.totalorder %s216, %s218
      %p225 = scmp.eq.s32.totalorder %s40, 1
      %p226 = por %p224, %p225
      %p227 = scmp.ne.s32.totalorder %s218, %s219
      %p228 = scmp.eq.s32.totalorder %s40, 0
      %p229 = por %p227, %p228
      %p230 = scmp.ne.s32.totalorder %s218, %s219
      %p231 = scmp.eq.s32.totalorder %s41, 1
      %p232 = por %p230, %p231
      %p234 = scmp.ne.s32.totalorder %s219, %s233
      %p235 = scmp.eq.s32.totalorder %s41, 0
      %p236 = por %p234, %p235
      %s238 = sadd.s32 %s237, 1
      %p241 = scmp.eq.s32.totalorder %s35, 1
      %p242 = scmp.ne.s32.totalorder %s237, %s239
      %p243 = scmp.eq.s32.totalorder %s35, 0
      %p244 = por %p242, %p243
      %p245 = scmp.ne.s32.totalorder %s237, %s239
      %p246 = scmp.eq.s32.totalorder %s40, 1
      %p247 = por %p245, %p246
      %p248 = scmp.ne.s32.totalorder %s239, %s240
      %p249 = scmp.eq.s32.totalorder %s40, 0
      %p250 = por %p248, %p249
      %p251 = scmp.ne.s32.totalorder %s239, %s240
      %p252 = scmp.eq.s32.totalorder %s41, 1
      %p253 = por %p251, %p252
      %p255 = scmp.ne.s32.totalorder %s240, %s254
      %p256 = scmp.eq.s32.totalorder %s41, 0
      %p257 = por %p255, %p256
      %s259 = sadd.s32 %s258, 1
      %p262 = scmp.eq.s32.totalorder %s35, 1
      %p263 = scmp.ne.s32.totalorder %s258, %s260
      %p264 = scmp.eq.s32.totalorder %s35, 0
      %p265 = por %p263, %p264
      %p266 = scmp.ne.s32.totalorder %s258, %s260
      %p267 = scmp.eq.s32.totalorder %s40, 1
      %p268 = por %p266, %p267
      %p269 = scmp.ne.s32.totalorder %s260, %s261
      %p270 = scmp.eq.s32.totalorder %s40, 0
      %p271 = por %p269, %p270
      %p272 = scmp.ne.s32.totalorder %s260, %s261
      %p273 = scmp.eq.s32.totalorder %s41, 1
      %p274 = por %p272, %p273
      %p276 = scmp.ne.s32.totalorder %s261, %s275
      %p277 = scmp.eq.s32.totalorder %s41, 0
      %p278 = por %p276, %p277
      %s280 = sadd.s32 %s279, 1
      %p283 = scmp.eq.s32.totalorder %s35, 1
      %p284 = scmp.ne.s32.totalorder %s279, %s281
      %p285 = scmp.eq.s32.totalorder %s35, 0
      %p286 = por %p284, %p285
      %p287 = scmp.ne.s32.totalorder %s279, %s281
      %p288 = scmp.eq.s32.totalorder %s40, 1
      %p289 = por %p287, %p288
      %p290 = scmp.ne.s32.totalorder %s281, %s282
      %p291 = scmp.eq.s32.totalorder %s40, 0
      %p292 = por %p290, %p291
      %p293 = scmp.ne.s32.totalorder %s281, %s282
      %p294 = scmp.eq.s32.totalorder %s41, 1
      %p295 = por %p293, %p294
      %p297 = scmp.ne.s32.totalorder %s282, %s296
      %p298 = scmp.eq.s32.totalorder %s41, 0
      %p299 = por %p297, %p298
      %s301 = sadd.s32 %s300, 1
      %p304 = scmp.eq.s32.totalorder %s35, 1
      %p305 = scmp.ne.s32.totalorder %s300, %s302
      %p306 = scmp.eq.s32.totalorder %s35, 0
      %p307 = por %p305, %p306
      %p308 = scmp.ne.s32.totalorder %s300, %s302
      %p309 = scmp.eq.s32.totalorder %s40, 1
      %p310 = por %p308, %p309
      %p311 = scmp.ne.s32.totalorder %s302, %s303
      %p312 = scmp.eq.s32.totalorder %s40, 0
      %p313 = por %p311, %p312
      %p314 = scmp.ne.s32.totalorder %s302, %s303
      %p315 = scmp.eq.s32.totalorder %s41, 1
      %p316 = por %p314, %p315
      %p318 = scmp.ne.s32.totalorder %s303, %s317
      %p319 = scmp.eq.s32.totalorder %s41, 0
      %p320 = por %p318, %p319
      %s322 = sadd.s32 %s321, 1
      %p325 = scmp.eq.s32.totalorder %s35, 1
      %p326 = scmp.ne.s32.totalorder %s321, %s323
      %p327 = scmp.eq.s32.totalorder %s35, 0
      %p328 = por %p326, %p327
      %p329 = scmp.ne.s32.totalorder %s321, %s323
      %p330 = scmp.eq.s32.totalorder %s40, 1
      %p331 = por %p329, %p330
      %p332 = scmp.ne.s32.totalorder %s323, %s324
      %p333 = scmp.eq.s32.totalorder %s40, 0
      %p334 = por %p332, %p333
      %p335 = scmp.ne.s32.totalorder %s323, %s324
      %p336 = scmp.eq.s32.totalorder %s41, 1
      %p337 = por %p335, %p336
      %p339 = scmp.ne.s32.totalorder %s324, %s338
      %p340 = scmp.eq.s32.totalorder %s41, 0
      %p341 = por %p339, %p340
      %s343 = sadd.s32 %s342, 1
      %p346 = scmp.eq.s32.totalorder %s35, 1
      %p347 = scmp.ne.s32.totalorder %s342, %s344
      %p348 = scmp.eq.s32.totalorder %s35, 0
      %p349 = por %p347, %p348
      %p350 = scmp.ne.s32.totalorder %s342, %s344
      %p351 = scmp.eq.s32.totalorder %s40, 1
      %p352 = por %p350, %p351
      %p353 = scmp.ne.s32.totalorder %s344, %s345
      %p354 = scmp.eq.s32.totalorder %s40, 0
      %p355 = por %p353, %p354
      %p356 = scmp.ne.s32.totalorder %s344, %s345
      %p357 = scmp.eq.s32.totalorder %s41, 1
      %p358 = por %p356, %p357
      %p360 = scmp.ne.s32.totalorder %s345, %s359
      %p361 = scmp.eq.s32.totalorder %s41, 0
      %p362 = por %p360, %p361
      %s364 = sadd.s32 %s363, 1
      %p367 = scmp.eq.s32.totalorder %s35, 1
      %p368 = scmp.ne.s32.totalorder %s363, %s365
      %p369 = scmp.eq.s32.totalorder %s35, 0
      %p370 = por %p368, %p369
      %p371 = scmp.ne.s32.totalorder %s363, %s365
      %p372 = scmp.eq.s32.totalorder %s40, 1
      %p373 = por %p371, %p372
      %p374 = scmp.ne.s32.totalorder %s365, %s366
      %p375 = scmp.eq.s32.totalorder %s40, 0
      %p376 = por %p374, %p375
      %p377 = scmp.ne.s32.totalorder %s365, %s366
      %p378 = scmp.eq.s32.totalorder %s41, 1
      %p379 = por %p377, %p378
      %p381 = scmp.ne.s32.totalorder %s366, %s380
      %p382 = scmp.eq.s32.totalorder %s41, 0
      %p383 = por %p381, %p382
      %s385 = sadd.s32 %s384, 1
      %p388 = scmp.eq.s32.totalorder %s35, 1
      %p389 = scmp.ne.s32.totalorder %s384, %s386
      %p390 = scmp.eq.s32.totalorder %s35, 0
      %p391 = por %p389, %p390
      %p392 = scmp.ne.s32.totalorder %s384, %s386
      %p393 = scmp.eq.s32.totalorder %s40, 1
      %p394 = por %p392, %p393
      %p395 = scmp.ne.s32.totalorder %s386, %s387
      %p396 = scmp.eq.s32.totalorder %s40, 0
      %p397 = por %p395, %p396
      %p398 = scmp.ne.s32.totalorder %s386, %s387
      %p399 = scmp.eq.s32.totalorder %s41, 1
      %p400 = por %p398, %p399
      %p402 = scmp.ne.s32.totalorder %s387, %s401
      %p403 = scmp.eq.s32.totalorder %s41, 0
      %p404 = por %p402, %p403
      %s406 = sadd.s32 %s405, 1
      %p409 = scmp.eq.s32.totalorder %s35, 1
      %p410 = scmp.ne.s32.totalorder %s405, %s407
      %p411 = scmp.eq.s32.totalorder %s35, 0
      %p412 = por %p410, %p411
      %p413 = scmp.ne.s32.totalorder %s405, %s407
      %p414 = scmp.eq.s32.totalorder %s40, 1
      %p415 = por %p413, %p414
      %p416 = scmp.ne.s32.totalorder %s407, %s408
      %p417 = scmp.eq.s32.totalorder %s40, 0
      %p418 = por %p416, %p417
      %p419 = scmp.ne.s32.totalorder %s407, %s408
      %p420 = scmp.eq.s32.totalorder %s41, 1
      %p421 = por %p419, %p420
      %p423 = scmp.ne.s32.totalorder %s408, %s422
      %p424 = scmp.eq.s32.totalorder %s41, 0
      %p425 = por %p423, %p424
      %s427 = sadd.s32 %s426, 1
      %p430 = scmp.eq.s32.totalorder %s35, 1
      %p431 = scmp.ne.s32.totalorder %s426, %s428
      %p432 = scmp.eq.s32.totalorder %s35, 0
      %p433 = por %p431, %p432
      %p434 = scmp.ne.s32.totalorder %s426, %s428
      %p435 = scmp.eq.s32.totalorder %s40, 1
      %p436 = por %p434, %p435
      %p437 = scmp.ne.s32.totalorder %s428, %s429
      %p438 = scmp.eq.s32.totalorder %s40, 0
      %p439 = por %p437, %p438
      %p440 = scmp.ne.s32.totalorder %s428, %s429
      %p441 = scmp.eq.s32.totalorder %s41, 1
      %p442 = por %p440, %p441
      %p444 = scmp.ne.s32.totalorder %s429, %s443
      %p445 = scmp.eq.s32.totalorder %s41, 0
      %p446 = por %p444, %p445
      %s447 = ssub.s32 %s35, %s42
      %p448 = scmp.eq.s32.totalorder %s447, 0
      %s450 = sadd.s32 %s449, 1
      %s451 = scalar_select %p448, %s449, %s450
      %p454 = pneg %p448
      %p455 = scmp.eq.s32.totalorder %s35, 1
      %p456 = por %p454, %p455
      %p457 = scmp.ne.s32.totalorder %s449, %s452
      %p458 = scmp.eq.s32.totalorder %s35, 0
      %p459 = por %p457, %p458
      %p460 = scmp.ne.s32.totalorder %s449, %s452
      %p461 = scmp.eq.s32.totalorder %s40, 1
      %p462 = por %p460, %p461
      %p463 = scmp.ne.s32.totalorder %s452, %s453
      %p464 = scmp.eq.s32.totalorder %s40, 0
      %p465 = por %p463, %p464
      %p466 = scmp.ne.s32.totalorder %s452, %s453
      %p467 = scmp.eq.s32.totalorder %s41, 1
      %p468 = por %p466, %p467
      %p470 = scmp.ne.s32.totalorder %s453, %s469
      %p471 = scmp.eq.s32.totalorder %s41, 0
      %p472 = por %p470, %p471
      %p473 = scmp.le.s32.totalorder 1, %s35
      %p474 = scmp.lt.s32.totalorder %s35, 3
      %p475 = pnand %p473, %p474
      %p476 = pneg %p475
      // Predicated region
      $region9: #{hyena_forward.1} parent=5 // pred_check
        _
      $region10: #{hyena_forward.1} parent=5 // pred_check_branch
        %478 = sbr.rel (%p475) target = $region12
      $region11: #{hyena_forward.1} parent=5 // pred_region
        %s479 = ssub.s32 %s35, 1
        // Predicated region
        $region13: #{hyena_forward.1} parent=11 // pred_check
          %p480 = pneg %p82
        $region14: #{hyena_forward.1} parent=11 // pred_check_branch
          %482 = sbr.rel (%p480) target = $region16
        $region15: #{hyena_forward.1} parent=11 // pred_region
          _
        $region16: #{hyena_forward.1} parent=11 // pred_fallthru
          _
        // Predicated region
        $region17: #{hyena_forward.1} parent=11 // pred_check
          %p483 = pneg %p103
        $region18: #{hyena_forward.1} parent=11 // pred_check_branch
          %485 = sbr.rel (%p483) target = $region20
        $region19: #{hyena_forward.1} parent=11 // pred_region
          _
        $region20: #{hyena_forward.1} parent=11 // pred_fallthru
          _
        // Predicated region
        $region21: #{hyena_forward.1} parent=11 // pred_check
          %p486 = pneg %p124
        $region22: #{hyena_forward.1} parent=11 // pred_check_branch
          %488 = sbr.rel (%p486) target = $region24
        $region23: #{hyena_forward.1} parent=11 // pred_region
          %s490 = ssub.s32 64, 64
          %491 = vsyncadd [#allocation3], %s490
          %s493 = sshll.u32 [#allocation2], 4
          %s494 = int_to_ptr.vmem [resolvable:$true] %s493
          %496 = dma.hbm_to_vmem [thread:$0]  %s3, 64, %s494, [#allocation3]
        $region24: #{hyena_forward.1} parent=11 // pred_fallthru
          _
        // Predicated region
        $region25: #{hyena_forward.1} parent=11 // pred_check
          %p497 = pneg %p145
        $region26: #{hyena_forward.1} parent=11 // pred_check_branch
          %499 = sbr.rel (%p497) target = $region28
        $region27: #{hyena_forward.1} parent=11 // pred_region
          %s501 = ssub.s32 16, 16
          %502 = vsyncadd [#allocation6], %s501
          %s504 = sshll.u32 [#allocation5], 4
          %s505 = int_to_ptr.vmem [resolvable:$true] %s504
          %507 = dma.hbm_to_vmem [thread:$0]  %s4, 16, %s505, [#allocation6]
        $region28: #{hyena_forward.1} parent=11 // pred_fallthru
          _
        // Predicated region
        $region29: #{hyena_forward.1} parent=11 // pred_check
          %p508 = pneg %p166
        $region30: #{hyena_forward.1} parent=11 // pred_check_branch
          %510 = sbr.rel (%p508) target = $region32
        $region31: #{hyena_forward.1} parent=11 // pred_region
          %s512 = ssub.s32 16, 16
          %513 = vsyncadd [#allocation6], %s512
          %s515 = sshll.u32 [#allocation7], 4
          %s516 = int_to_ptr.vmem [resolvable:$true] %s515
          %518 = dma.hbm_to_vmem [thread:$0]  %s5, 16, %s516, [#allocation6]
        $region32: #{hyena_forward.1} parent=11 // pred_fallthru
          _
        // Predicated region
        $region33: #{hyena_forward.1} parent=11 // pred_check
          %p519 = pneg %p187
        $region34: #{hyena_forward.1} parent=11 // pred_check_branch
          %521 = sbr.rel (%p519) target = $region36
        $region35: #{hyena_forward.1} parent=11 // pred_region
          %s523 = ssub.s32 256, 256
          %524 = vsyncadd [#allocation9], %s523
          %s525 = sshll.u32 [#allocation8], 4
          %s526 = int_to_ptr.vmem [resolvable:$true] %s525
          %531 = dma.hbm_to_vmem [thread:$0]  %s6, 256, %s526, [#allocation9], 128, 128, 8
        $region36: #{hyena_forward.1} parent=11 // pred_fallthru
          _
        // Predicated region
        $region37: #{hyena_forward.1} parent=11 // pred_check
          %p532 = pneg %p208
        $region38: #{hyena_forward.1} parent=11 // pred_check_branch
          %534 = sbr.rel (%p532) target = $region40
        $region39: #{hyena_forward.1} parent=11 // pred_region
          %s536 = ssub.s32 16, 16
          %537 = vsyncadd [#allocation9], %s536
          %s539 = sshll.u32 [#allocation10], 4
          %s540 = int_to_ptr.vmem [resolvable:$true] %s539
          %542 = dma.hbm_to_vmem [thread:$0]  %s7, 16, %s540, [#allocation9]
        $region40: #{hyena_forward.1} parent=11 // pred_fallthru
          _
        // Predicated region
        $region41: #{hyena_forward.1} parent=11 // pred_check
          %p543 = pneg %p229
        $region42: #{hyena_forward.1} parent=11 // pred_check_branch
          %545 = sbr.rel (%p543) target = $region44
        $region43: #{hyena_forward.1} parent=11 // pred_region
          %s547 = ssub.s32 256, 256
          %548 = vsyncadd [#allocation12], %s547
          %s549 = sshll.u32 [#allocation11], 4
          %s550 = int_to_ptr.vmem [resolvable:$true] %s549
          %555 = dma.hbm_to_vmem [thread:$0]  %s8, 256, %s550, [#allocation12], 128, 128, 8
        $region44: #{hyena_forward.1} parent=11 // pred_fallthru
          _
        // Predicated region
        $region45: #{hyena_forward.1} parent=11 // pred_check
          %p556 = pneg %p250
        $region46: #{hyena_forward.1} parent=11 // pred_check_branch
          %558 = sbr.rel (%p556) target = $region48
        $region47: #{hyena_forward.1} parent=11 // pred_region
          %s560 = ssub.s32 16, 16
          %561 = vsyncadd [#allocation12], %s560
          %s563 = sshll.u32 [#allocation13], 4
          %s564 = int_to_ptr.vmem [resolvable:$true] %s563
          %566 = dma.hbm_to_vmem [thread:$0]  %s9, 16, %s564, [#allocation12]
        $region48: #{hyena_forward.1} parent=11 // pred_fallthru
          _
        // Predicated region
        $region49: #{hyena_forward.1} parent=11 // pred_check
          %p567 = pneg %p271
        $region50: #{hyena_forward.1} parent=11 // pred_check_branch
          %569 = sbr.rel (%p567) target = $region52
        $region51: #{hyena_forward.1} parent=11 // pred_region
          %s571 = ssub.s32 256, 256
          %572 = vsyncadd [#allocation15], %s571
          %s573 = sshll.u32 [#allocation14], 4
          %s574 = int_to_ptr.vmem [resolvable:$true] %s573
          %579 = dma.hbm_to_vmem [thread:$0]  %s10, 256, %s574, [#allocation15], 128, 128, 8
        $region52: #{hyena_forward.1} parent=11 // pred_fallthru
          _
        // Predicated region
        $region53: #{hyena_forward.1} parent=11 // pred_check
          %p580 = pneg %p292
        $region54: #{hyena_forward.1} parent=11 // pred_check_branch
          %582 = sbr.rel (%p580) target = $region56
        $region55: #{hyena_forward.1} parent=11 // pred_region
          %s584 = ssub.s32 16, 16
          %585 = vsyncadd [#allocation15], %s584
          %s587 = sshll.u32 [#allocation16], 4
          %s588 = int_to_ptr.vmem [resolvable:$true] %s587
          %590 = dma.hbm_to_vmem [thread:$0]  %s11, 16, %s588, [#allocation15]
        $region56: #{hyena_forward.1} parent=11 // pred_fallthru
          _
        // Predicated region
        $region57: #{hyena_forward.1} parent=11 // pred_check
          %p591 = pneg %p313
        $region58: #{hyena_forward.1} parent=11 // pred_check_branch
          %593 = sbr.rel (%p591) target = $region60
        $region59: #{hyena_forward.1} parent=11 // pred_region
          %s595 = ssub.s32 512, 512
          %596 = vsyncadd [#allocation18], %s595
          %s597 = sshll.u32 [#allocation17], 4
          %s598 = int_to_ptr.vmem [resolvable:$true] %s597
          %603 = dma.hbm_to_vmem [thread:$0]  %s12, 512, %s598, [#allocation18], 128, 128, 8
        $region60: #{hyena_forward.1} parent=11 // pred_fallthru
          _
        // Predicated region
        $region61: #{hyena_forward.1} parent=11 // pred_check
          %p604 = pneg %p334
        $region62: #{hyena_forward.1} parent=11 // pred_check_branch
          %606 = sbr.rel (%p604) target = $region64
        $region63: #{hyena_forward.1} parent=11 // pred_region
          %s608 = ssub.s32 16, 16
          %609 = vsyncadd [#allocation18], %s608
          %s611 = sshll.u32 [#allocation19], 4
          %s612 = int_to_ptr.vmem [resolvable:$true] %s611
          %614 = dma.hbm_to_vmem [thread:$0]  %s13, 16, %s612, [#allocation18]
        $region64: #{hyena_forward.1} parent=11 // pred_fallthru
          _
        // Predicated region
        $region65: #{hyena_forward.1} parent=11 // pred_check
          %p615 = pneg %p355
        $region66: #{hyena_forward.1} parent=11 // pred_check_branch
          %617 = sbr.rel (%p615) target = $region68
        $region67: #{hyena_forward.1} parent=11 // pred_region
          %s619 = ssub.s32 64, 64
          %620 = vsyncadd [#allocation21], %s619
          %s622 = sshll.u32 [#allocation20], 4
          %s623 = int_to_ptr.vmem [resolvable:$true] %s622
          %625 = dma.hbm_to_vmem [thread:$0]  %s14, 64, %s623, [#allocation21]
        $region68: #{hyena_forward.1} parent=11 // pred_fallthru
          _
        // Predicated region
        $region69: #{hyena_forward.1} parent=11 // pred_check
          %p626 = pneg %p376
        $region70: #{hyena_forward.1} parent=11 // pred_check_branch
          %628 = sbr.rel (%p626) target = $region72
        $region71: #{hyena_forward.1} parent=11 // pred_region
          %s630 = ssub.s32 16, 16
          %631 = vsyncadd [#allocation21], %s630
          %s633 = sshll.u32 [#allocation22], 4
          %s634 = int_to_ptr.vmem [resolvable:$true] %s633
          %636 = dma.hbm_to_vmem [thread:$0]  %s15, 16, %s634, [#allocation21]
        $region72: #{hyena_forward.1} parent=11 // pred_fallthru
          _
        // Predicated region
        $region73: #{hyena_forward.1} parent=11 // pred_check
          %p637 = pneg %p397
        $region74: #{hyena_forward.1} parent=11 // pred_check_branch
          %639 = sbr.rel (%p637) target = $region76
        $region75: #{hyena_forward.1} parent=11 // pred_region
          _
        $region76: #{hyena_forward.1} parent=11 // pred_fallthru
          _
        // Predicated region
        $region77: #{hyena_forward.1} parent=11 // pred_check
          %p640 = pneg %p418
        $region78: #{hyena_forward.1} parent=11 // pred_check_branch
          %642 = sbr.rel (%p640) target = $region80
        $region79: #{hyena_forward.1} parent=11 // pred_region
          _
        $region80: #{hyena_forward.1} parent=11 // pred_fallthru
          _
        // Predicated region
        $region81: #{hyena_forward.1} parent=11 // pred_check
          %p643 = pneg %p439
        $region82: #{hyena_forward.1} parent=11 // pred_check_branch
          %645 = sbr.rel (%p643) target = $region84
        $region83: #{hyena_forward.1} parent=11 // pred_region
          _
        $region84: #{hyena_forward.1} parent=11 // pred_fallthru
          _
      $region12: #{hyena_forward.1} parent=5 // pred_fallthru
        _
      %p646 = scmp.lt.s32.totalorder %s35, 2
      // Predicated region
      $region85: #{hyena_forward.1} parent=5 // pred_check
        %p647 = pneg %p646
      $region86: #{hyena_forward.1} parent=5 // pred_check_branch
        %649 = sbr.rel (%p647) target = $region88
      $region87: #{hyena_forward.1} parent=5 // pred_region
        // Predicated region
        $region89: #{hyena_forward.1} parent=87 // pred_check
          %p650 = pneg %p55
        $region90: #{hyena_forward.1} parent=87 // pred_check_branch
          %652 = sbr.rel (%p650) target = $region92
        $region91: #{hyena_forward.1} parent=87 // pred_region
          %p653 = scmp.lt.s32.totalorder %s35, 1
          %s654 = scalar_select %p653, %s35, 1
          %s655 = smul.addr %s654, 2
          %s656 = smul.addr %s655, 8
          %s657 = scalar_lea.vmem %s0, %s656
        $region92: #{hyena_forward.1} parent=87 // pred_fallthru
          _
      $region88: #{hyena_forward.1} parent=5 // pred_fallthru
        _
      %p658 = scmp.le.s32.totalorder 1, %s35
      %p659 = scmp.lt.s32.totalorder %s35, 3
      %p660 = pnand %p658, %p659
      %p661 = pneg %p660
      // Predicated region
      $region93: #{hyena_forward.1} parent=5 // pred_check
        _
      $region94: #{hyena_forward.1} parent=5 // pred_check_branch
        %663 = sbr.rel (%p660) target = $region96
      $region95: #{hyena_forward.1} parent=5 // pred_region
        %s664 = ssub.s32 %s35, 1
        // Predicated region
        $region97: #{hyena_forward.1} parent=95 // pred_check
          %p665 = pneg %p124
        $region98: #{hyena_forward.1} parent=95 // pred_check_branch
          %667 = sbr.rel (%p665) target = $region100
        $region99: #{hyena_forward.1} parent=95 // pred_region
          %668 = dma.done [#allocation3], 64
        $region100: #{hyena_forward.1} parent=95 // pred_fallthru
          _
        // Predicated region
        $region101: #{hyena_forward.1} parent=95 // pred_check
          %p669 = pneg %p145
        $region102: #{hyena_forward.1} parent=95 // pred_check_branch
          %671 = sbr.rel (%p669) target = $region104
        $region103: #{hyena_forward.1} parent=95 // pred_region
          %672 = dma.done [#allocation6], 16
        $region104: #{hyena_forward.1} parent=95 // pred_fallthru
          _
        // Predicated region
        $region105: #{hyena_forward.1} parent=95 // pred_check
          %p673 = pneg %p166
        $region106: #{hyena_forward.1} parent=95 // pred_check_branch
          %675 = sbr.rel (%p673) target = $region108
        $region107: #{hyena_forward.1} parent=95 // pred_region
          %676 = dma.done [#allocation6], 16
        $region108: #{hyena_forward.1} parent=95 // pred_fallthru
          _
        // Predicated region
        $region109: #{hyena_forward.1} parent=95 // pred_check
          %p677 = pneg %p187
        $region110: #{hyena_forward.1} parent=95 // pred_check_branch
          %679 = sbr.rel (%p677) target = $region112
        $region111: #{hyena_forward.1} parent=95 // pred_region
          %680 = dma.done [#allocation9], 256
        $region112: #{hyena_forward.1} parent=95 // pred_fallthru
          _
        // Predicated region
        $region113: #{hyena_forward.1} parent=95 // pred_check
          %p681 = pneg %p208
        $region114: #{hyena_forward.1} parent=95 // pred_check_branch
          %683 = sbr.rel (%p681) target = $region116
        $region115: #{hyena_forward.1} parent=95 // pred_region
          %684 = dma.done [#allocation9], 16
        $region116: #{hyena_forward.1} parent=95 // pred_fallthru
          _
        // Predicated region
        $region117: #{hyena_forward.1} parent=95 // pred_check
          %p685 = pneg %p229
        $region118: #{hyena_forward.1} parent=95 // pred_check_branch
          %687 = sbr.rel (%p685) target = $region120
        $region119: #{hyena_forward.1} parent=95 // pred_region
          %688 = dma.done [#allocation12], 256
        $region120: #{hyena_forward.1} parent=95 // pred_fallthru
          _
        // Predicated region
        $region121: #{hyena_forward.1} parent=95 // pred_check
          %p689 = pneg %p250
        $region122: #{hyena_forward.1} parent=95 // pred_check_branch
          %691 = sbr.rel (%p689) target = $region124
        $region123: #{hyena_forward.1} parent=95 // pred_region
          %692 = dma.done [#allocation12], 16
        $region124: #{hyena_forward.1} parent=95 // pred_fallthru
          _
        // Predicated region
        $region125: #{hyena_forward.1} parent=95 // pred_check
          %p693 = pneg %p271
        $region126: #{hyena_forward.1} parent=95 // pred_check_branch
          %695 = sbr.rel (%p693) target = $region128
        $region127: #{hyena_forward.1} parent=95 // pred_region
          %696 = dma.done [#allocation15], 256
        $region128: #{hyena_forward.1} parent=95 // pred_fallthru
          _
        // Predicated region
        $region129: #{hyena_forward.1} parent=95 // pred_check
          %p697 = pneg %p292
        $region130: #{hyena_forward.1} parent=95 // pred_check_branch
          %699 = sbr.rel (%p697) target = $region132
        $region131: #{hyena_forward.1} parent=95 // pred_region
          %700 = dma.done [#allocation15], 16
        $region132: #{hyena_forward.1} parent=95 // pred_fallthru
          _
        // Predicated region
        $region133: #{hyena_forward.1} parent=95 // pred_check
          %p701 = pneg %p313
        $region134: #{hyena_forward.1} parent=95 // pred_check_branch
          %703 = sbr.rel (%p701) target = $region136
        $region135: #{hyena_forward.1} parent=95 // pred_region
          %704 = dma.done [#allocation18], 512
        $region136: #{hyena_forward.1} parent=95 // pred_fallthru
          _
        // Predicated region
        $region137: #{hyena_forward.1} parent=95 // pred_check
          %p705 = pneg %p334
        $region138: #{hyena_forward.1} parent=95 // pred_check_branch
          %707 = sbr.rel (%p705) target = $region140
        $region139: #{hyena_forward.1} parent=95 // pred_region
          %708 = dma.done [#allocation18], 16
        $region140: #{hyena_forward.1} parent=95 // pred_fallthru
          _
        // Predicated region
        $region141: #{hyena_forward.1} parent=95 // pred_check
          %p709 = pneg %p355
        $region142: #{hyena_forward.1} parent=95 // pred_check_branch
          %711 = sbr.rel (%p709) target = $region144
        $region143: #{hyena_forward.1} parent=95 // pred_region
          %712 = dma.done [#allocation21], 64
        $region144: #{hyena_forward.1} parent=95 // pred_fallthru
          _
        // Predicated region
        $region145: #{hyena_forward.1} parent=95 // pred_check
          %p713 = pneg %p376
        $region146: #{hyena_forward.1} parent=95 // pred_check_branch
          %715 = sbr.rel (%p713) target = $region148
        $region147: #{hyena_forward.1} parent=95 // pred_region
          %716 = dma.done [#allocation21], 16
        $region148: #{hyena_forward.1} parent=95 // pred_fallthru
          _
        %p717 = scmp.lt.s32.totalorder %s40, 1
        %s718 = scalar_select %p717, %s40, 1
        %s719 = smul.addr %s718, 2
        %s720 = smul.addr %s719, 8
        %s721 = scalar_lea.vmem %s0, %s720
        %p722 = pneg %p61
        %p723 = pneg %p58
        %p724 = pneg %p82
        %p725 = pneg %p79
        %p726 = pneg %p103
        %p727 = pneg %p100
        %p728 = pneg %p124
        %p729 = pneg %p121
        %p730 = pneg %p145
        %p731 = pneg %p142
        %p732 = pneg %p166
        %p733 = pneg %p163
        %p734 = pneg %p187
        %p735 = pneg %p184
        %p736 = pneg %p208
        %p737 = pneg %p205
        %p738 = pneg %p229
        %p739 = pneg %p226
        %p740 = pneg %p250
        %p741 = pneg %p247
        %p742 = pneg %p271
        %p743 = pneg %p268
        %p744 = pneg %p292
        %p745 = pneg %p289
        %p746 = pneg %p313
        %p747 = pneg %p310
        %p748 = pneg %p334
        %p749 = pneg %p331
        %p750 = pneg %p355
        %p751 = pneg %p352
        %p752 = pneg %p376
        %p753 = pneg %p373
        %p754 = pneg %p397
        %p755 = pneg %p394
        %p756 = pneg %p418
        %p757 = pneg %p415
        %p758 = pneg %p439
        %p759 = pneg %p436
        %p760 = pneg %p465
        %p761 = pneg %p462
        %s762 = sand.u32 %s452, 1
        %s763 = scalar_lea.sflag [#allocation4], %s762
        %s764 = sand.u32 %s452, 1
        %s765 = smul.addr %s764, 16
        %s766 = scalar_lea.vmem [#allocation23], %s765
        %p767 = scmp.lt.s32.totalorder %s40, 1
        %s768 = scalar_select %p767, %s40, 1
        %s769 = smul.addr %s768, 2
        %s770 = smul.addr %s769, 8
        %s771 = scalar_lea.vmem %s0, %s770
        %v772 = vld [vmem:[#allocation7] sm:$0x1]
        %v773 = vld [vmem:[%s1] sm:$0xff]
        %v774 = vld [vmem:[%s1 + $0x8] sm:$0xff]
        %v775 = vld [vmem:[#allocation2] sm:$0x7]
        %v776 = vld [vmem:[#allocation5] sm:$0x1]
        %v778 = vlaneseq
        %v779 = vshrl.u32 %v778, 7
        %v780 = vsub.s32 0, %v779
        %v781 = vrot.slane %v776, %v780
        %vm783 = vcmask 23552
        %v785 = vsel %vm783, %v773, 0
        %v788 = vsel %vm783, %v774, 0
        %vm790 = vcmask 1042432
        %v792 = vsel %vm790, %v775, 0
        %794 = vmatprep.subr.mxu0 0.0
        %795 = vmatpush1.msra.mxu0 0.0
        %796 = vmatprep.subr.mxu0 0.0
        %797 = vmatpush1.msra.mxu0 0.0
        %798 = vmatprep.subr.mxu0 0.0
        %799 = vmatpush1.msra.mxu0 0.0
        %800 = vmatprep.subr.mxu0 0.0
        %801 = vmatpush1.msra.mxu0 0.0
        %802 = vmatprep.subr.mxu0 0.0
        %803 = vmatpush1.msra.mxu0 0.0
        %804 = vmatprep.subr.mxu0 0.0
        %805 = vmatpush1.msra.mxu0 0.0
        %806 = vmatprep.subr.mxu0 0.0
        %807 = vmatpush1.msra.mxu0 0.0
        %808 = vmatprep.subr.mxu0 0.0
        %809 = vmatpush1.msra.mxu0 0.0
        %810 = vmatprep.subr.mxu0 0.0
        %811 = vmatpush1.msra.mxu0 0.0
        %812 = vmatprep.subr.mxu0 0.0
        %813 = vmatpush1.msra.mxu0 0.0
        %814 = vmatprep.subr.mxu0 0.0
        %815 = vmatpush1.msra.mxu0 0.0
        %816 = vmatprep.subr.mxu0 0.0
        %817 = vmatpush1.msra.mxu0 0.0
        %818 = vmatprep.subr.mxu0 0.0
        %819 = vmatpush1.msra.mxu0 0.0
        %820 = vmatprep.subr.mxu0 0.0
        %821 = vmatpush1.msra.mxu0 0.0
        %822 = vmatprep.subr.mxu0 0.0
        %823 = vmatpush1.msra.mxu0 0.0
        %824 = vmatprep.subr.mxu0 0.0
        %v825 = vand.u32 %v792, 4294901760
        %826 = vmatpush1.msra.mxu0 %v825
        %827 = vmatprep.subr.mxu0 0.0
        %828 = vmatpush2.msra.mxu0 0.0
        %829 = vmatprep.subr.mxu0 0.0
        %830 = vmatpush2.msra.mxu0 0.0
        %831 = vmatprep.subr.mxu0 0.0
        %832 = vmatpush2.msra.mxu0 0.0
        %833 = vmatprep.subr.mxu0 0.0
        %834 = vmatpush2.msra.mxu0 0.0
        %835 = vmatprep.subr.mxu0 0.0
        %836 = vmatpush2.msra.mxu0 0.0
        %837 = vmatprep.subr.mxu0 0.0
        %838 = vmatpush2.msra.mxu0 0.0
        %839 = vmatprep.subr.mxu0 0.0
        %840 = vmatpush2.msra.mxu0 0.0
        %841 = vmatprep.subr.mxu0 0.0
        %842 = vmatpush2.msra.mxu0 0.0
        %843 = vmatprep.subr.mxu0 0.0
        %844 = vmatpush2.msra.mxu0 0.0
        %845 = vmatprep.subr.mxu0 0.0
        %846 = vmatpush2.msra.mxu0 0.0
        %847 = vmatprep.subr.mxu0 0.0
        %848 = vmatpush2.msra.mxu0 0.0
        %849 = vmatprep.subr.mxu0 0.0
        %850 = vmatpush2.msra.mxu0 0.0
        %851 = vmatprep.subr.mxu0 0.0
        %852 = vmatpush2.msra.mxu0 0.0
        %853 = vmatprep.subr.mxu0 0.0
        %854 = vmatpush2.msra.mxu0 0.0
        %855 = vmatprep.subr.mxu0 0.0
        %856 = vmatpush2.msra.mxu0 0.0
        %857 = vmatprep.subr.mxu0 0.0
        %858 = vmatpush2.msra.mxu0 0.0
        %859 = vmatprep.mubr.f32.mxu0 0.0
        %v860 = vand.u32 %v785, 4294901760
        %v861 = vsub.f32 %v785, %v860
        %v862 = vand.u32 %v861, 4294901760
        %v863 = vsub.f32 %v861, %v862
        %v864 = vand.u32 %v863, 4294901760
        %865 = vmatmul.mubr.f32.gmra.mxu0 %v864
        %v866 = vpop.f32.mrf.mxu0
        %v867 = vadd.f32 %v781, %v866
        %v868 = vpop.f32.mrf.mxu0
        %869 = vmatprep.mubr.f32.mxu0 0.0
        %v870 = vand.u32 %v788, 4294901760
        %v871 = vsub.f32 %v788, %v870
        %v872 = vand.u32 %v871, 4294901760
        %v873 = vsub.f32 %v871, %v872
        %v874 = vand.u32 %v873, 4294901760
        %875 = vmatmul.mubr.f32.gmra.mxu0 %v874
        %v876 = vpop.f32.mrf.mxu0
        %v877 = vadd.f32 %v781, %v876
        %v878 = vpop.f32.mrf.mxu0
        %879 = vdwg.mxu0
        %880 = vmatprep.subr.mxu0 0.0
        %881 = vmatpush1.msra.mxu0 0.0
        %882 = vmatprep.subr.mxu0 0.0
        %883 = vmatpush1.msra.mxu0 0.0
        %884 = vmatprep.subr.mxu0 0.0
        %885 = vmatpush1.msra.mxu0 0.0
        %886 = vmatprep.subr.mxu0 0.0
        %887 = vmatpush1.msra.mxu0 0.0
        %888 = vmatprep.subr.mxu0 0.0
        %889 = vmatpush1.msra.mxu0 0.0
        %890 = vmatprep.subr.mxu0 0.0
        %891 = vmatpush1.msra.mxu0 0.0
        %892 = vmatprep.subr.mxu0 0.0
        %893 = vmatpush1.msra.mxu0 0.0
        %894 = vmatprep.subr.mxu0 0.0
        %895 = vmatpush1.msra.mxu0 0.0
        %896 = vmatprep.subr.mxu0 0.0
        %897 = vmatpush1.msra.mxu0 0.0
        %898 = vmatprep.subr.mxu0 0.0
        %899 = vmatpush1.msra.mxu0 0.0
        %900 = vmatprep.subr.mxu0 0.0
        %901 = vmatpush1.msra.mxu0 0.0
        %902 = vmatprep.subr.mxu0 0.0
        %903 = vmatpush1.msra.mxu0 0.0
        %904 = vmatprep.subr.mxu0 0.0
        %905 = vmatpush1.msra.mxu0 0.0
        %906 = vmatprep.subr.mxu0 0.0
        %907 = vmatpush1.msra.mxu0 0.0
        %908 = vmatprep.subr.mxu0 0.0
        %909 = vmatpush1.msra.mxu0 0.0
        %910 = vmatprep.subr.mxu0 0.0
        %v911 = vand.u32 %v792, 4294901760
        %v912 = vsub.f32 %v792, %v911
        %v913 = vand.u32 %v912, 4294901760
        %v914 = vsub.f32 %v912, %v913
        %v915 = vand.u32 %v914, 4294901760
        %916 = vmatpush1.msra.mxu0 %v915
        %917 = vmatprep.subr.mxu0 0.0
        %918 = vmatpush2.msra.mxu0 0.0
        %919 = vmatprep.subr.mxu0 0.0
        %920 = vmatpush2.msra.mxu0 0.0
        %921 = vmatprep.subr.mxu0 0.0
        %922 = vmatpush2.msra.mxu0 0.0
        %923 = vmatprep.subr.mxu0 0.0
        %924 = vmatpush2.msra.mxu0 0.0
        %925 = vmatprep.subr.mxu0 0.0
        %926 = vmatpush2.msra.mxu0 0.0
        %927 = vmatprep.subr.mxu0 0.0
        %928 = vmatpush2.msra.mxu0 0.0
        %929 = vmatprep.subr.mxu0 0.0
        %930 = vmatpush2.msra.mxu0 0.0
        %931 = vmatprep.subr.mxu0 0.0
        %932 = vmatpush2.msra.mxu0 0.0
        %933 = vmatprep.subr.mxu0 0.0
        %934 = vmatpush2.msra.mxu0 0.0
        %935 = vmatprep.subr.mxu0 0.0
        %936 = vmatpush2.msra.mxu0 0.0
        %937 = vmatprep.subr.mxu0 0.0
        %938 = vmatpush2.msra.mxu0 0.0
        %939 = vmatprep.subr.mxu0 0.0
        %940 = vmatpush2.msra.mxu0 0.0
        %941 = vmatprep.subr.mxu0 0.0
        %942 = vmatpush2.msra.mxu0 0.0
        %943 = vmatprep.subr.mxu0 0.0
        %944 = vmatpush2.msra.mxu0 0.0
        %945 = vmatprep.subr.mxu0 0.0
        %946 = vmatpush2.msra.mxu0 0.0
        %947 = vmatprep.subr.mxu0 0.0
        %948 = vmatpush2.msra.mxu0 0.0
        %949 = vmatprep.mubr.f32.mxu0 0.0
        %v950 = vand.u32 %v785, 4294901760
        %951 = vmatmul.mubr.f32.gmra.mxu0 %v950
        %v952 = vpop.f32.mrf.mxu0
        %v953 = vadd.f32 %v867, %v952
        %v954 = vpop.f32.mrf.mxu0
        %955 = vmatprep.mubr.f32.mxu0 0.0
        %v956 = vand.u32 %v788, 4294901760
        %957 = vmatmul.mubr.f32.gmra.mxu0 %v956
        %v958 = vpop.f32.mrf.mxu0
        %v959 = vadd.f32 %v877, %v958
        %v960 = vpop.f32.mrf.mxu0
        %961 = vdwg.mxu0
        %962 = vmatprep.subr.mxu0 0.0
        %963 = vmatpush1.msra.mxu0 0.0
        %964 = vmatprep.subr.mxu0 0.0
        %965 = vmatpush1.msra.mxu0 0.0
        %966 = vmatprep.subr.mxu0 0.0
        %967 = vmatpush1.msra.mxu0 0.0
        %968 = vmatprep.subr.mxu0 0.0
        %969 = vmatpush1.msra.mxu0 0.0
        %970 = vmatprep.subr.mxu0 0.0
        %971 = vmatpush1.msra.mxu0 0.0
        %972 = vmatprep.subr.mxu0 0.0
        %973 = vmatpush1.msra.mxu0 0.0
        %974 = vmatprep.subr.mxu0 0.0
        %975 = vmatpush1.msra.mxu0 0.0
        %976 = vmatprep.subr.mxu0 0.0
        %977 = vmatpush1.msra.mxu0 0.0
        %978 = vmatprep.subr.mxu0 0.0
        %979 = vmatpush1.msra.mxu0 0.0
        %980 = vmatprep.subr.mxu0 0.0
        %981 = vmatpush1.msra.mxu0 0.0
        %982 = vmatprep.subr.mxu0 0.0
        %983 = vmatpush1.msra.mxu0 0.0
        %984 = vmatprep.subr.mxu0 0.0
        %985 = vmatpush1.msra.mxu0 0.0
        %986 = vmatprep.subr.mxu0 0.0
        %987 = vmatpush1.msra.mxu0 0.0
        %988 = vmatprep.subr.mxu0 0.0
        %989 = vmatpush1.msra.mxu0 0.0
        %990 = vmatprep.subr.mxu0 0.0
        %991 = vmatpush1.msra.mxu0 0.0
        %992 = vmatprep.subr.mxu0 0.0
        %v993 = vand.u32 %v792, 4294901760
        %v994 = vsub.f32 %v792, %v993
        %995 = vmatpush1.msra.mxu0 %v994
        %996 = vmatprep.subr.mxu0 0.0
        %997 = vmatpush2.msra.mxu0 0.0
        %998 = vmatprep.subr.mxu0 0.0
        %999 = vmatpush2.msra.mxu0 0.0
        %1000 = vmatprep.subr.mxu0 0.0
        %1001 = vmatpush2.msra.mxu0 0.0
        %1002 = vmatprep.subr.mxu0 0.0
        %1003 = vmatpush2.msra.mxu0 0.0
        %1004 = vmatprep.subr.mxu0 0.0
        %1005 = vmatpush2.msra.mxu0 0.0
        %1006 = vmatprep.subr.mxu0 0.0
        %1007 = vmatpush2.msra.mxu0 0.0
        %1008 = vmatprep.subr.mxu0 0.0
        %1009 = vmatpush2.msra.mxu0 0.0
        %1010 = vmatprep.subr.mxu0 0.0
        %1011 = vmatpush2.msra.mxu0 0.0
        %1012 = vmatprep.subr.mxu0 0.0
        %1013 = vmatpush2.msra.mxu0 0.0
        %1014 = vmatprep.subr.mxu0 0.0
        %1015 = vmatpush2.msra.mxu0 0.0
        %1016 = vmatprep.subr.mxu0 0.0
        %1017 = vmatpush2.msra.mxu0 0.0
        %1018 = vmatprep.subr.mxu0 0.0
        %1019 = vmatpush2.msra.mxu0 0.0
        %1020 = vmatprep.subr.mxu0 0.0
        %1021 = vmatpush2.msra.mxu0 0.0
        %1022 = vmatprep.subr.mxu0 0.0
        %1023 = vmatpush2.msra.mxu0 0.0
        %1024 = vmatprep.subr.mxu0 0.0
        %1025 = vmatpush2.msra.mxu0 0.0
        %1026 = vmatprep.subr.mxu0 0.0
        %1027 = vmatpush2.msra.mxu0 0.0
        %1028 = vmatprep.mubr.f32.mxu0 0.0
        %v1029 = vand.u32 %v785, 4294901760
        %v1030 = vsub.f32 %v785, %v1029
        %1031 = vmatmul.mubr.f32.gmra.mxu0 %v1030
        %v1032 = vpop.f32.mrf.mxu0
        %v1033 = vadd.f32 %v953, %v1032
        %v1034 = vpop.f32.mrf.mxu0
        %1035 = vmatprep.mubr.f32.mxu0 0.0
        %v1036 = vand.u32 %v788, 4294901760
        %v1037 = vsub.f32 %v788, %v1036
        %1038 = vmatmul.mubr.f32.gmra.mxu0 %v1037
        %v1039 = vpop.f32.mrf.mxu0
        %v1040 = vadd.f32 %v959, %v1039
        %v1041 = vpop.f32.mrf.mxu0
        %1042 = vdwg.mxu0
        %1043 = vmatprep.subr.mxu0 0.0
        %1044 = vmatpush1.msra.mxu0 0.0
        %1045 = vmatprep.subr.mxu0 0.0
        %1046 = vmatpush1.msra.mxu0 0.0
        %1047 = vmatprep.subr.mxu0 0.0
        %1048 = vmatpush1.msra.mxu0 0.0
        %1049 = vmatprep.subr.mxu0 0.0
        %1050 = vmatpush1.msra.mxu0 0.0
        %1051 = vmatprep.subr.mxu0 0.0
        %1052 = vmatpush1.msra.mxu0 0.0
        %1053 = vmatprep.subr.mxu0 0.0
        %1054 = vmatpush1.msra.mxu0 0.0
        %1055 = vmatprep.subr.mxu0 0.0
        %1056 = vmatpush1.msra.mxu0 0.0
        %1057 = vmatprep.subr.mxu0 0.0
        %1058 = vmatpush1.msra.mxu0 0.0
        %1059 = vmatprep.subr.mxu0 0.0
        %1060 = vmatpush1.msra.mxu0 0.0
        %1061 = vmatprep.subr.mxu0 0.0
        %1062 = vmatpush1.msra.mxu0 0.0
        %1063 = vmatprep.subr.mxu0 0.0
        %1064 = vmatpush1.msra.mxu0 0.0
        %1065 = vmatprep.subr.mxu0 0.0
        %1066 = vmatpush1.msra.mxu0 0.0
        %1067 = vmatprep.subr.mxu0 0.0
        %1068 = vmatpush1.msra.mxu0 0.0
        %1069 = vmatprep.subr.mxu0 0.0
        %1070 = vmatpush1.msra.mxu0 0.0
        %1071 = vmatprep.subr.mxu0 0.0
        %1072 = vmatpush1.msra.mxu0 0.0
        %1073 = vmatprep.subr.mxu0 0.0
        %v1074 = vand.u32 %v792, 4294901760
        %1075 = vmatpush1.msra.mxu0 %v1074
        %1076 = vmatprep.subr.mxu0 0.0
        %1077 = vmatpush2.msra.mxu0 0.0
        %1078 = vmatprep.subr.mxu0 0.0
        %1079 = vmatpush2.msra.mxu0 0.0
        %1080 = vmatprep.subr.mxu0 0.0
        %1081 = vmatpush2.msra.mxu0 0.0
        %1082 = vmatprep.subr.mxu0 0.0
        %1083 = vmatpush2.msra.mxu0 0.0
        %1084 = vmatprep.subr.mxu0 0.0
        %1085 = vmatpush2.msra.mxu0 0.0
        %1086 = vmatprep.subr.mxu0 0.0
        %1087 = vmatpush2.msra.mxu0 0.0
        %1088 = vmatprep.subr.mxu0 0.0
        %1089 = vmatpush2.msra.mxu0 0.0
        %1090 = vmatprep.subr.mxu0 0.0
        %1091 = vmatpush2.msra.mxu0 0.0
        %1092 = vmatprep.subr.mxu0 0.0
        %1093 = vmatpush2.msra.mxu0 0.0
        %1094 = vmatprep.subr.mxu0 0.0
        %1095 = vmatpush2.msra.mxu0 0.0
        %1096 = vmatprep.subr.mxu0 0.0
        %1097 = vmatpush2.msra.mxu0 0.0
        %1098 = vmatprep.subr.mxu0 0.0
        %1099 = vmatpush2.msra.mxu0 0.0
        %1100 = vmatprep.subr.mxu0 0.0
        %1101 = vmatpush2.msra.mxu0 0.0
        %1102 = vmatprep.subr.mxu0 0.0
        %1103 = vmatpush2.msra.mxu0 0.0
        %1104 = vmatprep.subr.mxu0 0.0
        %1105 = vmatpush2.msra.mxu0 0.0
        %1106 = vmatprep.subr.mxu0 0.0
        %1107 = vmatpush2.msra.mxu0 0.0
        %1108 = vmatprep.mubr.f32.mxu0 0.0
        %v1109 = vand.u32 %v785, 4294901760
        %v1110 = vsub.f32 %v785, %v1109
        %v1111 = vand.u32 %v1110, 4294901760
        %1112 = vmatmul.mubr.f32.gmra.mxu0 %v1111
        %v1113 = vpop.f32.mrf.mxu0
        %v1114 = vadd.f32 %v1033, %v1113
        %v1115 = vpop.f32.mrf.mxu0
        %1116 = vmatprep.mubr.f32.mxu0 0.0
        %v1117 = vand.u32 %v788, 4294901760
        %v1118 = vsub.f32 %v788, %v1117
        %v1119 = vand.u32 %v1118, 4294901760
        %1120 = vmatmul.mubr.f32.gmra.mxu0 %v1119
        %v1121 = vpop.f32.mrf.mxu0
        %v1122 = vadd.f32 %v1040, %v1121
        %v1123 = vpop.f32.mrf.mxu0
        %1124 = vdwg.mxu0
        %1125 = vmatprep.subr.mxu0 0.0
        %1126 = vmatpush1.msra.mxu0 0.0
        %1127 = vmatprep.subr.mxu0 0.0
        %1128 = vmatpush1.msra.mxu0 0.0
        %1129 = vmatprep.subr.mxu0 0.0
        %1130 = vmatpush1.msra.mxu0 0.0
        %1131 = vmatprep.subr.mxu0 0.0
        %1132 = vmatpush1.msra.mxu0 0.0
        %1133 = vmatprep.subr.mxu0 0.0
        %1134 = vmatpush1.msra.mxu0 0.0
        %1135 = vmatprep.subr.mxu0 0.0
        %1136 = vmatpush1.msra.mxu0 0.0
        %1137 = vmatprep.subr.mxu0 0.0
        %1138 = vmatpush1.msra.mxu0 0.0
        %1139 = vmatprep.subr.mxu0 0.0
        %1140 = vmatpush1.msra.mxu0 0.0
        %1141 = vmatprep.subr.mxu0 0.0
        %1142 = vmatpush1.msra.mxu0 0.0
        %1143 = vmatprep.subr.mxu0 0.0
        %1144 = vmatpush1.msra.mxu0 0.0
        %1145 = vmatprep.subr.mxu0 0.0
        %1146 = vmatpush1.msra.mxu0 0.0
        %1147 = vmatprep.subr.mxu0 0.0
        %1148 = vmatpush1.msra.mxu0 0.0
        %1149 = vmatprep.subr.mxu0 0.0
        %1150 = vmatpush1.msra.mxu0 0.0
        %1151 = vmatprep.subr.mxu0 0.0
        %1152 = vmatpush1.msra.mxu0 0.0
        %1153 = vmatprep.subr.mxu0 0.0
        %1154 = vmatpush1.msra.mxu0 0.0
        %1155 = vmatprep.subr.mxu0 0.0
        %v1156 = vand.u32 %v792, 4294901760
        %v1157 = vsub.f32 %v792, %v1156
        %v1158 = vand.u32 %v1157, 4294901760
        %1159 = vmatpush1.msra.mxu0 %v1158
        %1160 = vmatprep.subr.mxu0 0.0
        %1161 = vmatpush2.msra.mxu0 0.0
        %1162 = vmatprep.subr.mxu0 0.0
        %1163 = vmatpush2.msra.mxu0 0.0
        %1164 = vmatprep.subr.mxu0 0.0
        %1165 = vmatpush2.msra.mxu0 0.0
        %1166 = vmatprep.subr.mxu0 0.0
        %1167 = vmatpush2.msra.mxu0 0.0
        %1168 = vmatprep.subr.mxu0 0.0
        %1169 = vmatpush2.msra.mxu0 0.0
        %1170 = vmatprep.subr.mxu0 0.0
        %1171 = vmatpush2.msra.mxu0 0.0
        %1172 = vmatprep.subr.mxu0 0.0
        %1173 = vmatpush2.msra.mxu0 0.0
        %1174 = vmatprep.subr.mxu0 0.0
        %1175 = vmatpush2.msra.mxu0 0.0
        %1176 = vmatprep.subr.mxu0 0.0
        %1177 = vmatpush2.msra.mxu0 0.0
        %1178 = vmatprep.subr.mxu0 0.0
        %1179 = vmatpush2.msra.mxu0 0.0
        %1180 = vmatprep.subr.mxu0 0.0
        %1181 = vmatpush2.msra.mxu0 0.0
        %1182 = vmatprep.subr.mxu0 0.0
        %1183 = vmatpush2.msra.mxu0 0.0
        %1184 = vmatprep.subr.mxu0 0.0
        %1185 = vmatpush2.msra.mxu0 0.0
        %1186 = vmatprep.subr.mxu0 0.0
        %1187 = vmatpush2.msra.mxu0 0.0
        %1188 = vmatprep.subr.mxu0 0.0
        %1189 = vmatpush2.msra.mxu0 0.0
        %1190 = vmatprep.subr.mxu0 0.0
        %1191 = vmatpush2.msra.mxu0 0.0
        %1192 = vmatprep.mubr.f32.mxu0 0.0
        %v1193 = vand.u32 %v785, 4294901760
        %1194 = vmatmul.mubr.f32.gmra.mxu0 %v1193
        %v1195 = vpop.f32.mrf.mxu0
        %v1196 = vadd.f32 %v1114, %v1195
        %v1197 = vpop.f32.mrf.mxu0
        %1198 = vmatprep.mubr.f32.mxu0 0.0
        %v1199 = vand.u32 %v788, 4294901760
        %1200 = vmatmul.mubr.f32.gmra.mxu0 %v1199
        %v1201 = vpop.f32.mrf.mxu0
        %v1202 = vadd.f32 %v1122, %v1201
        %v1203 = vpop.f32.mrf.mxu0
        %1204 = vdwg.mxu0
        %1205 = vmatprep.subr.mxu0 0.0
        %1206 = vmatpush1.msra.mxu0 0.0
        %1207 = vmatprep.subr.mxu0 0.0
        %1208 = vmatpush1.msra.mxu0 0.0
        %1209 = vmatprep.subr.mxu0 0.0
        %1210 = vmatpush1.msra.mxu0 0.0
        %1211 = vmatprep.subr.mxu0 0.0
        %1212 = vmatpush1.msra.mxu0 0.0
        %1213 = vmatprep.subr.mxu0 0.0
        %1214 = vmatpush1.msra.mxu0 0.0
        %1215 = vmatprep.subr.mxu0 0.0
        %1216 = vmatpush1.msra.mxu0 0.0
        %1217 = vmatprep.subr.mxu0 0.0
        %1218 = vmatpush1.msra.mxu0 0.0
        %1219 = vmatprep.subr.mxu0 0.0
        %1220 = vmatpush1.msra.mxu0 0.0
        %1221 = vmatprep.subr.mxu0 0.0
        %1222 = vmatpush1.msra.mxu0 0.0
        %1223 = vmatprep.subr.mxu0 0.0
        %1224 = vmatpush1.msra.mxu0 0.0
        %1225 = vmatprep.subr.mxu0 0.0
        %1226 = vmatpush1.msra.mxu0 0.0
        %1227 = vmatprep.subr.mxu0 0.0
        %1228 = vmatpush1.msra.mxu0 0.0
        %1229 = vmatprep.subr.mxu0 0.0
        %1230 = vmatpush1.msra.mxu0 0.0
        %1231 = vmatprep.subr.mxu0 0.0
        %1232 = vmatpush1.msra.mxu0 0.0
        %1233 = vmatprep.subr.mxu0 0.0
        %1234 = vmatpush1.msra.mxu0 0.0
        %1235 = vmatprep.subr.mxu0 0.0
        %v1236 = vand.u32 %v792, 4294901760
        %1237 = vmatpush1.msra.mxu0 %v1236
        %1238 = vmatprep.subr.mxu0 0.0
        %1239 = vmatpush2.msra.mxu0 0.0
        %1240 = vmatprep.subr.mxu0 0.0
        %1241 = vmatpush2.msra.mxu0 0.0
        %1242 = vmatprep.subr.mxu0 0.0
        %1243 = vmatpush2.msra.mxu0 0.0
        %1244 = vmatprep.subr.mxu0 0.0
        %1245 = vmatpush2.msra.mxu0 0.0
        %1246 = vmatprep.subr.mxu0 0.0
        %1247 = vmatpush2.msra.mxu0 0.0
        %1248 = vmatprep.subr.mxu0 0.0
        %1249 = vmatpush2.msra.mxu0 0.0
        %1250 = vmatprep.subr.mxu0 0.0
        %1251 = vmatpush2.msra.mxu0 0.0
        %1252 = vmatprep.subr.mxu0 0.0
        %1253 = vmatpush2.msra.mxu0 0.0
        %1254 = vmatprep.subr.mxu0 0.0
        %1255 = vmatpush2.msra.mxu0 0.0
        %1256 = vmatprep.subr.mxu0 0.0
        %1257 = vmatpush2.msra.mxu0 0.0
        %1258 = vmatprep.subr.mxu0 0.0
        %1259 = vmatpush2.msra.mxu0 0.0
        %1260 = vmatprep.subr.mxu0 0.0
        %1261 = vmatpush2.msra.mxu0 0.0
        %1262 = vmatprep.subr.mxu0 0.0
        %1263 = vmatpush2.msra.mxu0 0.0
        %1264 = vmatprep.subr.mxu0 0.0
        %1265 = vmatpush2.msra.mxu0 0.0
        %1266 = vmatprep.subr.mxu0 0.0
        %1267 = vmatpush2.msra.mxu0 0.0
        %1268 = vmatprep.subr.mxu0 0.0
        %1269 = vmatpush2.msra.mxu0 0.0
        %1270 = vmatprep.mubr.f32.mxu0 0.0
        %v1271 = vand.u32 %v785, 4294901760
        %1272 = vmatmul.mubr.f32.gmra.mxu0 %v1271
        %v1273 = vpop.f32.mrf.mxu0
        %v1274 = vadd.f32 %v1196, %v1273
        %v1275 = vpop.f32.mrf.mxu0
        %1276 = vmatprep.mubr.f32.mxu0 0.0
        %v1277 = vand.u32 %v788, 4294901760
        %1278 = vmatmul.mubr.f32.gmra.mxu0 %v1277
        %v1279 = vpop.f32.mrf.mxu0
        %v1280 = vadd.f32 %v1202, %v1279
        %v1281 = vpop.f32.mrf.mxu0
        %1282 = vdwg.mxu0
        %v1284 = vlaneseq
        %v1285 = vshrl.u32 %v1284, 7
        %v1286 = vsub.s32 0, %v1285
        %v1287 = vrot.slane %v772, %v1286
        %v1289 = vmul.f32 %v1287, %v1274
        %v1290 = vmul.f32 %v1287, %v1280
        %v1291 = vand.u32 2147483647, %v1289
        %vm1292 = vcmp.le.f32.partialorder %v1291, 0.7853982
        %vm1293 = vcmp.lt.s32.totalorder %v1289, 0
        %v1294 = vand.u32 %v1289, 2139095040
        %v1295 = vshrl.u32 %v1294, 23
        %v1296 = vsub.s32 %v1295, 127
        %v1297 = vand.u32 2147483647, %v1289
        %v1298 = vand.u32 %v1297, 8388607
        %v1299 = vor.u32 %v1298, 8388608
        %v1300 = vsub.s32 0, %v1299
        %v1301 = vadd.s32 %v1296, 1
        %vm1302 = vcmp.gt.s32.totalorder %v1301, 0
        %v1303 = vsel %vm1302, %v1301, 0
        %v1304 = vshrl.u32 %v1303, 5
        %v1305 = vand.u32 %v1303, 31
        %v1306 = vsub.s32 32, %v1305
        %v1307 = vshrl.u32 683565275, %v1306
        %v1308 = vshll.u32 683565275, %v1305
        %v1309 = vshrl.u32 2475754826, %v1306
        %v1310 = vor.u32 %v1308, %v1309
        %v1311 = vshll.u32 2475754826, %v1305
        %v1312 = vshrl.u32 2131351028, %v1306
        %v1313 = vor.u32 %v1311, %v1312
        %v1314 = vshll.u32 2131351028, %v1305
        %v1315 = vshrl.u32 2102212464, %v1306
        %v1316 = vor.u32 %v1314, %v1315
        %v1317 = vshll.u32 2102212464, %v1305
        %v1318 = vshrl.u32 920167782, %v1306
        %v1319 = vor.u32 %v1317, %v1318
        %v1320 = vshll.u32 920167782, %v1305
        %v1321 = vshrl.u32 1326507024, %v1306
        %v1322 = vor.u32 %v1320, %v1321
        %vm1323 = vcmp.lt.s32.totalorder %v1304, 1
        %vm1324 = vcmp.lt.s32.totalorder %v1304, 2
        %vm1325 = vcmp.lt.s32.totalorder %v1304, 3
        %vm1326 = vcmp.lt.s32.totalorder %v1304, 4
        %v1327 = vsel %vm1323, %v1307, %v1310
        %v1328 = vsel %vm1326, %v1316, 2102212464
        %v1329 = vsel %vm1325, %v1313, %v1328
        %v1330 = vsel %vm1324, %v1327, %v1329
        %v1331 = vsel %vm1323, %v1310, %v1313
        %v1332 = vsel %vm1326, %v1319, 920167782
        %v1333 = vsel %vm1325, %v1316, %v1332
        %v1334 = vsel %vm1324, %v1331, %v1333
        %v1335 = vsel %vm1323, %v1313, %v1316
        %v1336 = vsel %vm1326, %v1322, 1326507024
        %v1337 = vsel %vm1325, %v1319, %v1336
        %v1338 = vsel %vm1324, %v1335, %v1337
        %v1339 = vshll.u32 %v1299, 8
        %v1340 = vmul.u32.u64.compose %v1339, %v1338
        %v1341 = vextract.low.u32 %v1340
        %v1342 = vextract.high.u32 %v1340
        %v1343 = vmul.u32.u64.compose %v1339, %v1334
        %v1344 = vextract.low.u32 %v1343
        %v1345 = vextract.high.u32 %v1343
        %v1346 = vmul.u32 %v1339, %v1330
        %v1347 = vadd.s32 %v1342, %v1344
        %vm1348 = vc.u32 %v1342, %v1344
        %v1349 = vadd.s32 %v1345, 1
        %v1350 = vsel %vm1348, %v1349, %v1345
        %v1351 = vadd.s32 %v1346, %v1350
        %v1352 = vadd.s32 %v1351, 536870912
        %v1353 = vshrl.u32 %v1352, 30
        %v1354 = vshll.u32 %v1353, 30
        %v1355 = vsub.s32 %v1351, %v1354
        %vm1356 = vcmp.lt.s32.totalorder %v1355, 0
        %v1357 = vsub.s32 0, %v1355
        %v1358 = vsel %vm1356, %v1357, %v1355
        %v1359 = vclz %v1358
        %v1360 = vsub.s32 %v1359, 2
        %vm1361 = vcmp.gt.s32.totalorder 0, %v1360
        %v1362 = vsel %vm1361, 0, %v1360
        %v1363 = vsub.s32 32, %v1362
        %v1364 = vshll.u32 %v1355, %v1362
        %v1365 = vshrl.u32 %v1347, %v1363
        %v1366 = vor.u32 %v1364, %v1365
        %v1367 = vsub.s32 4294967266, %v1362
        %v1368 = vadd.s32 %v1367, 127
        %v1369 = vshll.u32 %v1368, 23
        %v1370 = vor.u32 4788187, %v1369
        %v1371 = vand.u32 2147483647, %v1370
        %v1373 = vcvt.s32.f32 %v1366
        %v1374 = vmul.f32 %v1373, %v1371
        %v1375 = vxor.u32 %v1374, 2147483648
        %v1376 = vsel %vm1293, %v1375, %v1374
        %v1377 = vsub.s32 4, %v1353
        %v1378 = vsel %vm1293, %v1377, %v1353
        %v1379 = vsel %vm1292, %v1289, %v1376
        %v1380 = vsel %vm1292, 0, %v1378
        %v1381 = vcosq.f32.pop %v1379
        %v1382 = vsinq.f32.pop %v1379
        %vm1383 = vweird.f32 %v1289
        %v1384 = vadd.s32 %v1380, 3
        %v1385 = vand.u32 %v1384, 3
        %vm1386 = vcmp.lt.s32.totalorder %v1385, 2
        %vm1387 = vcmp.eq.s32.totalorder %v1385, 0
        %v1388 = vxor.u32 %v1382, 2147483648
        %v1389 = vsel %vm1387, %v1381, %v1388
        %vm1390 = vcmp.eq.s32.totalorder %v1385, 2
        %v1391 = vxor.u32 %v1381, 2147483648
        %v1392 = vsel %vm1390, %v1391, %v1382
        %v1393 = vsel %vm1386, %v1389, %v1392
        %v1394 = vsel %vm1383, nan, %v1393
        %v1395 = vand.u32 2147483647, %v1290
        %vm1396 = vcmp.le.f32.partialorder %v1395, 0.7853982
        %vm1397 = vcmp.lt.s32.totalorder %v1290, 0
        %v1398 = vand.u32 %v1290, 2139095040
        %v1399 = vshrl.u32 %v1398, 23
        %v1400 = vsub.s32 %v1399, 127
        %v1401 = vand.u32 2147483647, %v1290
        %v1402 = vand.u32 %v1401, 8388607
        %v1403 = vor.u32 %v1402, 8388608
        %v1404 = vsub.s32 0, %v1403
        %v1405 = vadd.s32 %v1400, 1
        %vm1406 = vcmp.gt.s32.totalorder %v1405, 0
        %v1407 = vsel %vm1406, %v1405, 0
        %v1408 = vshrl.u32 %v1407, 5
        %v1409 = vand.u32 %v1407, 31
        %v1410 = vsub.s32 32, %v1409
        %v1411 = vshrl.u32 683565275, %v1410
        %v1412 = vshll.u32 683565275, %v1409
        %v1413 = vshrl.u32 2475754826, %v1410
        %v1414 = vor.u32 %v1412, %v1413
        %v1415 = vshll.u32 2475754826, %v1409
        %v1416 = vshrl.u32 2131351028, %v1410
        %v1417 = vor.u32 %v1415, %v1416
        %v1418 = vshll.u32 2131351028, %v1409
        %v1419 = vshrl.u32 2102212464, %v1410
        %v1420 = vor.u32 %v1418, %v1419
        %v1421 = vshll.u32 2102212464, %v1409
        %v1422 = vshrl.u32 920167782, %v1410
        %v1423 = vor.u32 %v1421, %v1422
        %v1424 = vshll.u32 920167782, %v1409
        %v1425 = vshrl.u32 1326507024, %v1410
        %v1426 = vor.u32 %v1424, %v1425
        %vm1427 = vcmp.lt.s32.totalorder %v1408, 1
        %vm1428 = vcmp.lt.s32.totalorder %v1408, 2
        %vm1429 = vcmp.lt.s32.totalorder %v1408, 3
        %vm1430 = vcmp.lt.s32.totalorder %v1408, 4
        %v1431 = vsel %vm1427, %v1411, %v1414
        %v1432 = vsel %vm1430, %v1420, 2102212464
        %v1433 = vsel %vm1429, %v1417, %v1432
        %v1434 = vsel %vm1428, %v1431, %v1433
        %v1435 = vsel %vm1427, %v1414, %v1417
        %v1436 = vsel %vm1430, %v1423, 920167782
        %v1437 = vsel %vm1429, %v1420, %v1436
        %v1438 = vsel %vm1428, %v1435, %v1437
        %v1439 = vsel %vm1427, %v1417, %v1420
        %v1440 = vsel %vm1430, %v1426, 1326507024
        %v1441 = vsel %vm1429, %v1423, %v1440
        %v1442 = vsel %vm1428, %v1439, %v1441
        %v1443 = vshll.u32 %v1403, 8
        %v1444 = vmul.u32.u64.compose %v1443, %v1442
        %v1445 = vextract.low.u32 %v1444
        %v1446 = vextract.high.u32 %v1444
        %v1447 = vmul.u32.u64.compose %v1443, %v1438
        %v1448 = vextract.low.u32 %v1447
        %v1449 = vextract.high.u32 %v1447
        %v1450 = vmul.u32 %v1443, %v1434
        %v1451 = vadd.s32 %v1446, %v1448
        %vm1452 = vc.u32 %v1446, %v1448
        %v1453 = vadd.s32 %v1449, 1
        %v1454 = vsel %vm1452, %v1453, %v1449
        %v1455 = vadd.s32 %v1450, %v1454
        %v1456 = vadd.s32 %v1455, 536870912
        %v1457 = vshrl.u32 %v1456, 30
        %v1458 = vshll.u32 %v1457, 30
        %v1459 = vsub.s32 %v1455, %v1458
        %vm1460 = vcmp.lt.s32.totalorder %v1459, 0
        %v1461 = vsub.s32 0, %v1459
        %v1462 = vsel %vm1460, %v1461, %v1459
        %v1463 = vclz %v1462
        %v1464 = vsub.s32 %v1463, 2
        %vm1465 = vcmp.gt.s32.totalorder 0, %v1464
        %v1466 = vsel %vm1465, 0, %v1464
        %v1467 = vsub.s32 32, %v1466
        %v1468 = vshll.u32 %v1459, %v1466
        %v1469 = vshrl.u32 %v1451, %v1467
        %v1470 = vor.u32 %v1468, %v1469
        %v1471 = vsub.s32 4294967266, %v1466
        %v1472 = vadd.s32 %v1471, 127
        %v1473 = vshll.u32 %v1472, 23
        %v1474 = vor.u32 4788187, %v1473
        %v1475 = vand.u32 2147483647, %v1474
        %v1477 = vcvt.s32.f32 %v1470
        %v1478 = vmul.f32 %v1477, %v1475
        %v1479 = vxor.u32 %v1478, 2147483648
        %v1480 = vsel %vm1397, %v1479, %v1478
        %v1481 = vsub.s32 4, %v1457
        %v1482 = vsel %vm1397, %v1481, %v1457
        %v1483 = vsel %vm1396, %v1290, %v1480
        %v1484 = vsel %vm1396, 0, %v1482
        %v1485 = vcosq.f32.pop %v1483
        %v1486 = vsinq.f32.pop %v1483
        %vm1487 = vweird.f32 %v1290
        %v1488 = vadd.s32 %v1484, 3
        %v1489 = vand.u32 %v1488, 3
        %vm1490 = vcmp.lt.s32.totalorder %v1489, 2
        %vm1491 = vcmp.eq.s32.totalorder %v1489, 0
        %v1492 = vxor.u32 %v1486, 2147483648
        %v1493 = vsel %vm1491, %v1485, %v1492
        %vm1494 = vcmp.eq.s32.totalorder %v1489, 2
        %v1495 = vxor.u32 %v1485, 2147483648
        %v1496 = vsel %vm1494, %v1495, %v1486
        %v1497 = vsel %vm1490, %v1493, %v1496
        %v1498 = vsel %vm1487, nan, %v1497
        %v1499 = vld [vmem:[#allocation8] sm:$0xff]
        %v1500 = vld [vmem:[#allocation8 + $0x8] sm:$0xff]
        %v1501 = vld [vmem:[#allocation10] sm:$0x1]
        %v1503 = vlaneseq
        %v1504 = vshrl.u32 %v1503, 7
        %v1505 = vsub.s32 0, %v1504
        %v1506 = vrot.slane %v1501, %v1505
        %vm1508 = vcmask 130048
        %v1510 = vsel %vm1508, %v1394, 0
        %v1513 = vsel %vm1508, %v1498, 0
        %1515 = vmatprep.subr.mxu0 0.0
        %1516 = vmatpush1.msra.mxu0 0.0
        %1517 = vmatprep.subr.mxu0 0.0
        %1518 = vmatpush1.msra.mxu0 0.0
        %1519 = vmatprep.subr.mxu0 0.0
        %1520 = vmatpush1.msra.mxu0 0.0
        %1521 = vmatprep.subr.mxu0 0.0
        %1522 = vmatpush1.msra.mxu0 0.0
        %1523 = vmatprep.subr.mxu0 0.0
        %1524 = vmatpush1.msra.mxu0 0.0
        %1525 = vmatprep.subr.mxu0 0.0
        %1526 = vmatpush1.msra.mxu0 0.0
        %1527 = vmatprep.subr.mxu0 0.0
        %1528 = vmatpush1.msra.mxu0 0.0
        %1529 = vmatprep.subr.mxu0 0.0
        %1530 = vmatpush1.msra.mxu0 0.0
        %1531 = vmatprep.subr.mxu0 0.0
        %1532 = vmatpush1.msra.mxu0 0.0
        %1533 = vmatprep.subr.mxu0 0.0
        %1534 = vmatpush1.msra.mxu0 0.0
        %1535 = vmatprep.subr.mxu0 0.0
        %1536 = vmatpush1.msra.mxu0 0.0
        %1537 = vmatprep.subr.mxu0 0.0
        %1538 = vmatpush1.msra.mxu0 0.0
        %1539 = vmatprep.subr.mxu0 0.0
        %1540 = vmatpush1.msra.mxu0 0.0
        %1541 = vmatprep.subr.mxu0 0.0
        %1542 = vmatpush1.msra.mxu0 0.0
        %1543 = vmatprep.subr.mxu0 0.0
        %v1544 = vand.u32 %v1500, 4294901760
        %1545 = vmatpush1.msra.mxu0 %v1544
        %1546 = vmatprep.subr.mxu0 0.0
        %v1547 = vand.u32 %v1499, 4294901760
        %1548 = vmatpush1.msra.mxu0 %v1547
        %1549 = vmatprep.subr.mxu0 0.0
        %1550 = vmatpush2.msra.mxu0 0.0
        %1551 = vmatprep.subr.mxu0 0.0
        %1552 = vmatpush2.msra.mxu0 0.0
        %1553 = vmatprep.subr.mxu0 0.0
        %1554 = vmatpush2.msra.mxu0 0.0
        %1555 = vmatprep.subr.mxu0 0.0
        %1556 = vmatpush2.msra.mxu0 0.0
        %1557 = vmatprep.subr.mxu0 0.0
        %1558 = vmatpush2.msra.mxu0 0.0
        %1559 = vmatprep.subr.mxu0 0.0
        %1560 = vmatpush2.msra.mxu0 0.0
        %1561 = vmatprep.subr.mxu0 0.0
        %1562 = vmatpush2.msra.mxu0 0.0
        %1563 = vmatprep.subr.mxu0 0.0
        %1564 = vmatpush2.msra.mxu0 0.0
        %1565 = vmatprep.subr.mxu0 0.0
        %1566 = vmatpush2.msra.mxu0 0.0
        %1567 = vmatprep.subr.mxu0 0.0
        %1568 = vmatpush2.msra.mxu0 0.0
        %1569 = vmatprep.subr.mxu0 0.0
        %1570 = vmatpush2.msra.mxu0 0.0
        %1571 = vmatprep.subr.mxu0 0.0
        %1572 = vmatpush2.msra.mxu0 0.0
        %1573 = vmatprep.subr.mxu0 0.0
        %1574 = vmatpush2.msra.mxu0 0.0
        %1575 = vmatprep.subr.mxu0 0.0
        %1576 = vmatpush2.msra.mxu0 0.0
        %1577 = vmatprep.subr.mxu0 0.0
        %1578 = vmatpush2.msra.mxu0 0.0
        %1579 = vmatprep.subr.mxu0 0.0
        %1580 = vmatpush2.msra.mxu0 0.0
        %1581 = vmatprep.mubr.f32.mxu0 0.0
        %v1582 = vand.u32 %v1510, 4294901760
        %v1583 = vsub.f32 %v1510, %v1582
        %v1584 = vand.u32 %v1583, 4294901760
        %v1585 = vsub.f32 %v1583, %v1584
        %v1586 = vand.u32 %v1585, 4294901760
        %1587 = vmatmul.mubr.f32.gmra.mxu0 %v1586
        %v1588 = vpop.f32.mrf.mxu0
        %v1589 = vadd.f32 %v1506, %v1588
        %v1590 = vpop.f32.mrf.mxu0
        %1591 = vmatprep.mubr.f32.mxu0 0.0
        %v1592 = vand.u32 %v1513, 4294901760
        %v1593 = vsub.f32 %v1513, %v1592
        %v1594 = vand.u32 %v1593, 4294901760
        %v1595 = vsub.f32 %v1593, %v1594
        %v1596 = vand.u32 %v1595, 4294901760
        %1597 = vmatmul.mubr.f32.gmra.mxu0 %v1596
        %v1598 = vpop.f32.mrf.mxu0
        %v1599 = vadd.f32 %v1506, %v1598
        %v1600 = vpop.f32.mrf.mxu0
        %1601 = vdwg.mxu0
        %1602 = vmatprep.subr.mxu0 0.0
        %1603 = vmatpush1.msra.mxu0 0.0
        %1604 = vmatprep.subr.mxu0 0.0
        %1605 = vmatpush1.msra.mxu0 0.0
        %1606 = vmatprep.subr.mxu0 0.0
        %1607 = vmatpush1.msra.mxu0 0.0
        %1608 = vmatprep.subr.mxu0 0.0
        %1609 = vmatpush1.msra.mxu0 0.0
        %1610 = vmatprep.subr.mxu0 0.0
        %1611 = vmatpush1.msra.mxu0 0.0
        %1612 = vmatprep.subr.mxu0 0.0
        %1613 = vmatpush1.msra.mxu0 0.0
        %1614 = vmatprep.subr.mxu0 0.0
        %1615 = vmatpush1.msra.mxu0 0.0
        %1616 = vmatprep.subr.mxu0 0.0
        %1617 = vmatpush1.msra.mxu0 0.0
        %1618 = vmatprep.subr.mxu0 0.0
        %1619 = vmatpush1.msra.mxu0 0.0
        %1620 = vmatprep.subr.mxu0 0.0
        %1621 = vmatpush1.msra.mxu0 0.0
        %1622 = vmatprep.subr.mxu0 0.0
        %1623 = vmatpush1.msra.mxu0 0.0
        %1624 = vmatprep.subr.mxu0 0.0
        %1625 = vmatpush1.msra.mxu0 0.0
        %1626 = vmatprep.subr.mxu0 0.0
        %1627 = vmatpush1.msra.mxu0 0.0
        %1628 = vmatprep.subr.mxu0 0.0
        %1629 = vmatpush1.msra.mxu0 0.0
        %1630 = vmatprep.subr.mxu0 0.0
        %v1631 = vand.u32 %v1500, 4294901760
        %v1632 = vsub.f32 %v1500, %v1631
        %v1633 = vand.u32 %v1632, 4294901760
        %v1634 = vsub.f32 %v1632, %v1633
        %v1635 = vand.u32 %v1634, 4294901760
        %1636 = vmatpush1.msra.mxu0 %v1635
        %1637 = vmatprep.subr.mxu0 0.0
        %v1638 = vand.u32 %v1499, 4294901760
        %v1639 = vsub.f32 %v1499, %v1638
        %v1640 = vand.u32 %v1639, 4294901760
        %v1641 = vsub.f32 %v1639, %v1640
        %v1642 = vand.u32 %v1641, 4294901760
        %1643 = vmatpush1.msra.mxu0 %v1642
        %1644 = vmatprep.subr.mxu0 0.0
        %1645 = vmatpush2.msra.mxu0 0.0
        %1646 = vmatprep.subr.mxu0 0.0
        %1647 = vmatpush2.msra.mxu0 0.0
        %1648 = vmatprep.subr.mxu0 0.0
        %1649 = vmatpush2.msra.mxu0 0.0
        %1650 = vmatprep.subr.mxu0 0.0
        %1651 = vmatpush2.msra.mxu0 0.0
        %1652 = vmatprep.subr.mxu0 0.0
        %1653 = vmatpush2.msra.mxu0 0.0
        %1654 = vmatprep.subr.mxu0 0.0
        %1655 = vmatpush2.msra.mxu0 0.0
        %1656 = vmatprep.subr.mxu0 0.0
        %1657 = vmatpush2.msra.mxu0 0.0
        %1658 = vmatprep.subr.mxu0 0.0
        %1659 = vmatpush2.msra.mxu0 0.0
        %1660 = vmatprep.subr.mxu0 0.0
        %1661 = vmatpush2.msra.mxu0 0.0
        %1662 = vmatprep.subr.mxu0 0.0
        %1663 = vmatpush2.msra.mxu0 0.0
        %1664 = vmatprep.subr.mxu0 0.0
        %1665 = vmatpush2.msra.mxu0 0.0
        %1666 = vmatprep.subr.mxu0 0.0
        %1667 = vmatpush2.msra.mxu0 0.0
        %1668 = vmatprep.subr.mxu0 0.0
        %1669 = vmatpush2.msra.mxu0 0.0
        %1670 = vmatprep.subr.mxu0 0.0
        %1671 = vmatpush2.msra.mxu0 0.0
        %1672 = vmatprep.subr.mxu0 0.0
        %1673 = vmatpush2.msra.mxu0 0.0
        %1674 = vmatprep.subr.mxu0 0.0
        %1675 = vmatpush2.msra.mxu0 0.0
        %1676 = vmatprep.mubr.f32.mxu0 0.0
        %v1677 = vand.u32 %v1510, 4294901760
        %1678 = vmatmul.mubr.f32.gmra.mxu0 %v1677
        %v1679 = vpop.f32.mrf.mxu0
        %v1680 = vadd.f32 %v1589, %v1679
        %v1681 = vpop.f32.mrf.mxu0
        %1682 = vmatprep.mubr.f32.mxu0 0.0
        %v1683 = vand.u32 %v1513, 4294901760
        %1684 = vmatmul.mubr.f32.gmra.mxu0 %v1683
        %v1685 = vpop.f32.mrf.mxu0
        %v1686 = vadd.f32 %v1599, %v1685
        %v1687 = vpop.f32.mrf.mxu0
        %1688 = vdwg.mxu0
        %1689 = vmatprep.subr.mxu0 0.0
        %1690 = vmatpush1.msra.mxu0 0.0
        %1691 = vmatprep.subr.mxu0 0.0
        %1692 = vmatpush1.msra.mxu0 0.0
        %1693 = vmatprep.subr.mxu0 0.0
        %1694 = vmatpush1.msra.mxu0 0.0
        %1695 = vmatprep.subr.mxu0 0.0
        %1696 = vmatpush1.msra.mxu0 0.0
        %1697 = vmatprep.subr.mxu0 0.0
        %1698 = vmatpush1.msra.mxu0 0.0
        %1699 = vmatprep.subr.mxu0 0.0
        %1700 = vmatpush1.msra.mxu0 0.0
        %1701 = vmatprep.subr.mxu0 0.0
        %1702 = vmatpush1.msra.mxu0 0.0
        %1703 = vmatprep.subr.mxu0 0.0
        %1704 = vmatpush1.msra.mxu0 0.0
        %1705 = vmatprep.subr.mxu0 0.0
        %1706 = vmatpush1.msra.mxu0 0.0
        %1707 = vmatprep.subr.mxu0 0.0
        %1708 = vmatpush1.msra.mxu0 0.0
        %1709 = vmatprep.subr.mxu0 0.0
        %1710 = vmatpush1.msra.mxu0 0.0
        %1711 = vmatprep.subr.mxu0 0.0
        %1712 = vmatpush1.msra.mxu0 0.0
        %1713 = vmatprep.subr.mxu0 0.0
        %1714 = vmatpush1.msra.mxu0 0.0
        %1715 = vmatprep.subr.mxu0 0.0
        %1716 = vmatpush1.msra.mxu0 0.0
        %1717 = vmatprep.subr.mxu0 0.0
        %v1718 = vand.u32 %v1500, 4294901760
        %v1719 = vsub.f32 %v1500, %v1718
        %1720 = vmatpush1.msra.mxu0 %v1719
        %1721 = vmatprep.subr.mxu0 0.0
        %v1722 = vand.u32 %v1499, 4294901760
        %v1723 = vsub.f32 %v1499, %v1722
        %1724 = vmatpush1.msra.mxu0 %v1723
        %1725 = vmatprep.subr.mxu0 0.0
        %1726 = vmatpush2.msra.mxu0 0.0
        %1727 = vmatprep.subr.mxu0 0.0
        %1728 = vmatpush2.msra.mxu0 0.0
        %1729 = vmatprep.subr.mxu0 0.0
        %1730 = vmatpush2.msra.mxu0 0.0
        %1731 = vmatprep.subr.mxu0 0.0
        %1732 = vmatpush2.msra.mxu0 0.0
        %1733 = vmatprep.subr.mxu0 0.0
        %1734 = vmatpush2.msra.mxu0 0.0
        %1735 = vmatprep.subr.mxu0 0.0
        %1736 = vmatpush2.msra.mxu0 0.0
        %1737 = vmatprep.subr.mxu0 0.0
        %1738 = vmatpush2.msra.mxu0 0.0
        %1739 = vmatprep.subr.mxu0 0.0
        %1740 = vmatpush2.msra.mxu0 0.0
        %1741 = vmatprep.subr.mxu0 0.0
        %1742 = vmatpush2.msra.mxu0 0.0
        %1743 = vmatprep.subr.mxu0 0.0
        %1744 = vmatpush2.msra.mxu0 0.0
        %1745 = vmatprep.subr.mxu0 0.0
        %1746 = vmatpush2.msra.mxu0 0.0
        %1747 = vmatprep.subr.mxu0 0.0
        %1748 = vmatpush2.msra.mxu0 0.0
        %1749 = vmatprep.subr.mxu0 0.0
        %1750 = vmatpush2.msra.mxu0 0.0
        %1751 = vmatprep.subr.mxu0 0.0
        %1752 = vmatpush2.msra.mxu0 0.0
        %1753 = vmatprep.subr.mxu0 0.0
        %1754 = vmatpush2.msra.mxu0 0.0
        %1755 = vmatprep.subr.mxu0 0.0
        %1756 = vmatpush2.msra.mxu0 0.0
        %1757 = vmatprep.mubr.f32.mxu0 0.0
        %v1758 = vand.u32 %v1510, 4294901760
        %v1759 = vsub.f32 %v1510, %v1758
        %1760 = vmatmul.mubr.f32.gmra.mxu0 %v1759
        %v1761 = vpop.f32.mrf.mxu0
        %v1762 = vadd.f32 %v1680, %v1761
        %v1763 = vpop.f32.mrf.mxu0
        %1764 = vmatprep.mubr.f32.mxu0 0.0
        %v1765 = vand.u32 %v1513, 4294901760
        %v1766 = vsub.f32 %v1513, %v1765
        %1767 = vmatmul.mubr.f32.gmra.mxu0 %v1766
        %v1768 = vpop.f32.mrf.mxu0
        %v1769 = vadd.f32 %v1686, %v1768
        %v1770 = vpop.f32.mrf.mxu0
        %1771 = vdwg.mxu0
        %1772 = vmatprep.subr.mxu0 0.0
        %1773 = vmatpush1.msra.mxu0 0.0
        %1774 = vmatprep.subr.mxu0 0.0
        %1775 = vmatpush1.msra.mxu0 0.0
        %1776 = vmatprep.subr.mxu0 0.0
        %1777 = vmatpush1.msra.mxu0 0.0
        %1778 = vmatprep.subr.mxu0 0.0
        %1779 = vmatpush1.msra.mxu0 0.0
        %1780 = vmatprep.subr.mxu0 0.0
        %1781 = vmatpush1.msra.mxu0 0.0
        %1782 = vmatprep.subr.mxu0 0.0
        %1783 = vmatpush1.msra.mxu0 0.0
        %1784 = vmatprep.subr.mxu0 0.0
        %1785 = vmatpush1.msra.mxu0 0.0
        %1786 = vmatprep.subr.mxu0 0.0
        %1787 = vmatpush1.msra.mxu0 0.0
        %1788 = vmatprep.subr.mxu0 0.0
        %1789 = vmatpush1.msra.mxu0 0.0
        %1790 = vmatprep.subr.mxu0 0.0
        %1791 = vmatpush1.msra.mxu0 0.0
        %1792 = vmatprep.subr.mxu0 0.0
        %1793 = vmatpush1.msra.mxu0 0.0
        %1794 = vmatprep.subr.mxu0 0.0
        %1795 = vmatpush1.msra.mxu0 0.0
        %1796 = vmatprep.subr.mxu0 0.0
        %1797 = vmatpush1.msra.mxu0 0.0
        %1798 = vmatprep.subr.mxu0 0.0
        %1799 = vmatpush1.msra.mxu0 0.0
        %1800 = vmatprep.subr.mxu0 0.0
        %v1801 = vand.u32 %v1500, 4294901760
        %1802 = vmatpush1.msra.mxu0 %v1801
        %1803 = vmatprep.subr.mxu0 0.0
        %v1804 = vand.u32 %v1499, 4294901760
        %1805 = vmatpush1.msra.mxu0 %v1804
        %1806 = vmatprep.subr.mxu0 0.0
        %1807 = vmatpush2.msra.mxu0 0.0
        %1808 = vmatprep.subr.mxu0 0.0
        %1809 = vmatpush2.msra.mxu0 0.0
        %1810 = vmatprep.subr.mxu0 0.0
        %1811 = vmatpush2.msra.mxu0 0.0
        %1812 = vmatprep.subr.mxu0 0.0
        %1813 = vmatpush2.msra.mxu0 0.0
        %1814 = vmatprep.subr.mxu0 0.0
        %1815 = vmatpush2.msra.mxu0 0.0
        %1816 = vmatprep.subr.mxu0 0.0
        %1817 = vmatpush2.msra.mxu0 0.0
        %1818 = vmatprep.subr.mxu0 0.0
        %1819 = vmatpush2.msra.mxu0 0.0
        %1820 = vmatprep.subr.mxu0 0.0
        %1821 = vmatpush2.msra.mxu0 0.0
        %1822 = vmatprep.subr.mxu0 0.0
        %1823 = vmatpush2.msra.mxu0 0.0
        %1824 = vmatprep.subr.mxu0 0.0
        %1825 = vmatpush2.msra.mxu0 0.0
        %1826 = vmatprep.subr.mxu0 0.0
        %1827 = vmatpush2.msra.mxu0 0.0
        %1828 = vmatprep.subr.mxu0 0.0
        %1829 = vmatpush2.msra.mxu0 0.0
        %1830 = vmatprep.subr.mxu0 0.0
        %1831 = vmatpush2.msra.mxu0 0.0
        %1832 = vmatprep.subr.mxu0 0.0
        %1833 = vmatpush2.msra.mxu0 0.0
        %1834 = vmatprep.subr.mxu0 0.0
        %1835 = vmatpush2.msra.mxu0 0.0
        %1836 = vmatprep.subr.mxu0 0.0
        %1837 = vmatpush2.msra.mxu0 0.0
        %1838 = vmatprep.mubr.f32.mxu0 0.0
        %v1839 = vand.u32 %v1510, 4294901760
        %v1840 = vsub.f32 %v1510, %v1839
        %v1841 = vand.u32 %v1840, 4294901760
        %1842 = vmatmul.mubr.f32.gmra.mxu0 %v1841
        %v1843 = vpop.f32.mrf.mxu0
        %v1844 = vadd.f32 %v1762, %v1843
        %v1845 = vpop.f32.mrf.mxu0
        %1846 = vmatprep.mubr.f32.mxu0 0.0
        %v1847 = vand.u32 %v1513, 4294901760
        %v1848 = vsub.f32 %v1513, %v1847
        %v1849 = vand.u32 %v1848, 4294901760
        %1850 = vmatmul.mubr.f32.gmra.mxu0 %v1849
        %v1851 = vpop.f32.mrf.mxu0
        %v1852 = vadd.f32 %v1769, %v1851
        %v1853 = vpop.f32.mrf.mxu0
        %1854 = vdwg.mxu0
        %1855 = vmatprep.subr.mxu0 0.0
        %1856 = vmatpush1.msra.mxu0 0.0
        %1857 = vmatprep.subr.mxu0 0.0
        %1858 = vmatpush1.msra.mxu0 0.0
        %1859 = vmatprep.subr.mxu0 0.0
        %1860 = vmatpush1.msra.mxu0 0.0
        %1861 = vmatprep.subr.mxu0 0.0
        %1862 = vmatpush1.msra.mxu0 0.0
        %1863 = vmatprep.subr.mxu0 0.0
        %1864 = vmatpush1.msra.mxu0 0.0
        %1865 = vmatprep.subr.mxu0 0.0
        %1866 = vmatpush1.msra.mxu0 0.0
        %1867 = vmatprep.subr.mxu0 0.0
        %1868 = vmatpush1.msra.mxu0 0.0
        %1869 = vmatprep.subr.mxu0 0.0
        %1870 = vmatpush1.msra.mxu0 0.0
        %1871 = vmatprep.subr.mxu0 0.0
        %1872 = vmatpush1.msra.mxu0 0.0
        %1873 = vmatprep.subr.mxu0 0.0
        %1874 = vmatpush1.msra.mxu0 0.0
        %1875 = vmatprep.subr.mxu0 0.0
        %1876 = vmatpush1.msra.mxu0 0.0
        %1877 = vmatprep.subr.mxu0 0.0
        %1878 = vmatpush1.msra.mxu0 0.0
        %1879 = vmatprep.subr.mxu0 0.0
        %1880 = vmatpush1.msra.mxu0 0.0
        %1881 = vmatprep.subr.mxu0 0.0
        %1882 = vmatpush1.msra.mxu0 0.0
        %1883 = vmatprep.subr.mxu0 0.0
        %v1884 = vand.u32 %v1500, 4294901760
        %v1885 = vsub.f32 %v1500, %v1884
        %v1886 = vand.u32 %v1885, 4294901760
        %1887 = vmatpush1.msra.mxu0 %v1886
        %1888 = vmatprep.subr.mxu0 0.0
        %v1889 = vand.u32 %v1499, 4294901760
        %v1890 = vsub.f32 %v1499, %v1889
        %v1891 = vand.u32 %v1890, 4294901760
        %1892 = vmatpush1.msra.mxu0 %v1891
        %1893 = vmatprep.subr.mxu0 0.0
        %1894 = vmatpush2.msra.mxu0 0.0
        %1895 = vmatprep.subr.mxu0 0.0
        %1896 = vmatpush2.msra.mxu0 0.0
        %1897 = vmatprep.subr.mxu0 0.0
        %1898 = vmatpush2.msra.mxu0 0.0
        %1899 = vmatprep.subr.mxu0 0.0
        %1900 = vmatpush2.msra.mxu0 0.0
        %1901 = vmatprep.subr.mxu0 0.0
        %1902 = vmatpush2.msra.mxu0 0.0
        %1903 = vmatprep.subr.mxu0 0.0
        %1904 = vmatpush2.msra.mxu0 0.0
        %1905 = vmatprep.subr.mxu0 0.0
        %1906 = vmatpush2.msra.mxu0 0.0
        %1907 = vmatprep.subr.mxu0 0.0
        %1908 = vmatpush2.msra.mxu0 0.0
        %1909 = vmatprep.subr.mxu0 0.0
        %1910 = vmatpush2.msra.mxu0 0.0
        %1911 = vmatprep.subr.mxu0 0.0
        %1912 = vmatpush2.msra.mxu0 0.0
        %1913 = vmatprep.subr.mxu0 0.0
        %1914 = vmatpush2.msra.mxu0 0.0
        %1915 = vmatprep.subr.mxu0 0.0
        %1916 = vmatpush2.msra.mxu0 0.0
        %1917 = vmatprep.subr.mxu0 0.0
        %1918 = vmatpush2.msra.mxu0 0.0
        %1919 = vmatprep.subr.mxu0 0.0
        %1920 = vmatpush2.msra.mxu0 0.0
        %1921 = vmatprep.subr.mxu0 0.0
        %1922 = vmatpush2.msra.mxu0 0.0
        %1923 = vmatprep.subr.mxu0 0.0
        %1924 = vmatpush2.msra.mxu0 0.0
        %1925 = vmatprep.mubr.f32.mxu0 0.0
        %v1926 = vand.u32 %v1510, 4294901760
        %1927 = vmatmul.mubr.f32.gmra.mxu0 %v1926
        %v1928 = vpop.f32.mrf.mxu0
        %v1929 = vadd.f32 %v1844, %v1928
        %v1930 = vpop.f32.mrf.mxu0
        %1931 = vmatprep.mubr.f32.mxu0 0.0
        %v1932 = vand.u32 %v1513, 4294901760
        %1933 = vmatmul.mubr.f32.gmra.mxu0 %v1932
        %v1934 = vpop.f32.mrf.mxu0
        %v1935 = vadd.f32 %v1852, %v1934
        %v1936 = vpop.f32.mrf.mxu0
        %1937 = vdwg.mxu0
        %1938 = vmatprep.subr.mxu0 0.0
        %1939 = vmatpush1.msra.mxu0 0.0
        %1940 = vmatprep.subr.mxu0 0.0
        %1941 = vmatpush1.msra.mxu0 0.0
        %1942 = vmatprep.subr.mxu0 0.0
        %1943 = vmatpush1.msra.mxu0 0.0
        %1944 = vmatprep.subr.mxu0 0.0
        %1945 = vmatpush1.msra.mxu0 0.0
        %1946 = vmatprep.subr.mxu0 0.0
        %1947 = vmatpush1.msra.mxu0 0.0
        %1948 = vmatprep.subr.mxu0 0.0
        %1949 = vmatpush1.msra.mxu0 0.0
        %1950 = vmatprep.subr.mxu0 0.0
        %1951 = vmatpush1.msra.mxu0 0.0
        %1952 = vmatprep.subr.mxu0 0.0
        %1953 = vmatpush1.msra.mxu0 0.0
        %1954 = vmatprep.subr.mxu0 0.0
        %1955 = vmatpush1.msra.mxu0 0.0
        %1956 = vmatprep.subr.mxu0 0.0
        %1957 = vmatpush1.msra.mxu0 0.0
        %1958 = vmatprep.subr.mxu0 0.0
        %1959 = vmatpush1.msra.mxu0 0.0
        %1960 = vmatprep.subr.mxu0 0.0
        %1961 = vmatpush1.msra.mxu0 0.0
        %1962 = vmatprep.subr.mxu0 0.0
        %1963 = vmatpush1.msra.mxu0 0.0
        %1964 = vmatprep.subr.mxu0 0.0
        %1965 = vmatpush1.msra.mxu0 0.0
        %1966 = vmatprep.subr.mxu0 0.0
        %v1967 = vand.u32 %v1500, 4294901760
        %1968 = vmatpush1.msra.mxu0 %v1967
        %1969 = vmatprep.subr.mxu0 0.0
        %v1970 = vand.u32 %v1499, 4294901760
        %1971 = vmatpush1.msra.mxu0 %v1970
        %1972 = vmatprep.subr.mxu0 0.0
        %1973 = vmatpush2.msra.mxu0 0.0
        %1974 = vmatprep.subr.mxu0 0.0
        %1975 = vmatpush2.msra.mxu0 0.0
        %1976 = vmatprep.subr.mxu0 0.0
        %1977 = vmatpush2.msra.mxu0 0.0
        %1978 = vmatprep.subr.mxu0 0.0
        %1979 = vmatpush2.msra.mxu0 0.0
        %1980 = vmatprep.subr.mxu0 0.0
        %1981 = vmatpush2.msra.mxu0 0.0
        %1982 = vmatprep.subr.mxu0 0.0
        %1983 = vmatpush2.msra.mxu0 0.0
        %1984 = vmatprep.subr.mxu0 0.0
        %1985 = vmatpush2.msra.mxu0 0.0
        %1986 = vmatprep.subr.mxu0 0.0
        %1987 = vmatpush2.msra.mxu0 0.0
        %1988 = vmatprep.subr.mxu0 0.0
        %1989 = vmatpush2.msra.mxu0 0.0
        %1990 = vmatprep.subr.mxu0 0.0
        %1991 = vmatpush2.msra.mxu0 0.0
        %1992 = vmatprep.subr.mxu0 0.0
        %1993 = vmatpush2.msra.mxu0 0.0
        %1994 = vmatprep.subr.mxu0 0.0
        %1995 = vmatpush2.msra.mxu0 0.0
        %1996 = vmatprep.subr.mxu0 0.0
        %1997 = vmatpush2.msra.mxu0 0.0
        %1998 = vmatprep.subr.mxu0 0.0
        %1999 = vmatpush2.msra.mxu0 0.0
        %2000 = vmatprep.subr.mxu0 0.0
        %2001 = vmatpush2.msra.mxu0 0.0
        %2002 = vmatprep.subr.mxu0 0.0
        %2003 = vmatpush2.msra.mxu0 0.0
        %2004 = vmatprep.mubr.f32.mxu0 0.0
        %v2005 = vand.u32 %v1510, 4294901760
        %2006 = vmatmul.mubr.f32.gmra.mxu0 %v2005
        %v2007 = vpop.f32.mrf.mxu0
        %v2008 = vadd.f32 %v1929, %v2007
        %v2009 = vpop.f32.mrf.mxu0
        %2010 = vmatprep.mubr.f32.mxu0 0.0
        %v2011 = vand.u32 %v1513, 4294901760
        %2012 = vmatmul.mubr.f32.gmra.mxu0 %v2011
        %v2013 = vpop.f32.mrf.mxu0
        %v2014 = vadd.f32 %v1935, %v2013
        %v2015 = vpop.f32.mrf.mxu0
        %2016 = vdwg.mxu0
        %v2017 = vmul.f32 %v1287, %v2008
        %v2018 = vmul.f32 %v1287, %v2014
        %v2019 = vand.u32 2147483647, %v2017
        %vm2020 = vcmp.le.f32.partialorder %v2019, 0.7853982
        %vm2021 = vcmp.lt.s32.totalorder %v2017, 0
        %v2022 = vand.u32 %v2017, 2139095040
        %v2023 = vshrl.u32 %v2022, 23
        %v2024 = vsub.s32 %v2023, 127
        %v2025 = vand.u32 2147483647, %v2017
        %v2026 = vand.u32 %v2025, 8388607
        %v2027 = vor.u32 %v2026, 8388608
        %v2028 = vsub.s32 0, %v2027
        %v2029 = vadd.s32 %v2024, 1
        %vm2030 = vcmp.gt.s32.totalorder %v2029, 0
        %v2031 = vsel %vm2030, %v2029, 0
        %v2032 = vshrl.u32 %v2031, 5
        %v2033 = vand.u32 %v2031, 31
        %v2034 = vsub.s32 32, %v2033
        %v2035 = vshrl.u32 683565275, %v2034
        %v2036 = vshll.u32 683565275, %v2033
        %v2037 = vshrl.u32 2475754826, %v2034
        %v2038 = vor.u32 %v2036, %v2037
        %v2039 = vshll.u32 2475754826, %v2033
        %v2040 = vshrl.u32 2131351028, %v2034
        %v2041 = vor.u32 %v2039, %v2040
        %v2042 = vshll.u32 2131351028, %v2033
        %v2043 = vshrl.u32 2102212464, %v2034
        %v2044 = vor.u32 %v2042, %v2043
        %v2045 = vshll.u32 2102212464, %v2033
        %v2046 = vshrl.u32 920167782, %v2034
        %v2047 = vor.u32 %v2045, %v2046
        %v2048 = vshll.u32 920167782, %v2033
        %v2049 = vshrl.u32 1326507024, %v2034
        %v2050 = vor.u32 %v2048, %v2049
        %vm2051 = vcmp.lt.s32.totalorder %v2032, 1
        %vm2052 = vcmp.lt.s32.totalorder %v2032, 2
        %vm2053 = vcmp.lt.s32.totalorder %v2032, 3
        %vm2054 = vcmp.lt.s32.totalorder %v2032, 4
        %v2055 = vsel %vm2051, %v2035, %v2038
        %v2056 = vsel %vm2054, %v2044, 2102212464
        %v2057 = vsel %vm2053, %v2041, %v2056
        %v2058 = vsel %vm2052, %v2055, %v2057
        %v2059 = vsel %vm2051, %v2038, %v2041
        %v2060 = vsel %vm2054, %v2047, 920167782
        %v2061 = vsel %vm2053, %v2044, %v2060
        %v2062 = vsel %vm2052, %v2059, %v2061
        %v2063 = vsel %vm2051, %v2041, %v2044
        %v2064 = vsel %vm2054, %v2050, 1326507024
        %v2065 = vsel %vm2053, %v2047, %v2064
        %v2066 = vsel %vm2052, %v2063, %v2065
        %v2067 = vshll.u32 %v2027, 8
        %v2068 = vmul.u32.u64.compose %v2067, %v2066
        %v2069 = vextract.low.u32 %v2068
        %v2070 = vextract.high.u32 %v2068
        %v2071 = vmul.u32.u64.compose %v2067, %v2062
        %v2072 = vextract.low.u32 %v2071
        %v2073 = vextract.high.u32 %v2071
        %v2074 = vmul.u32 %v2067, %v2058
        %v2075 = vadd.s32 %v2070, %v2072
        %vm2076 = vc.u32 %v2070, %v2072
        %v2077 = vadd.s32 %v2073, 1
        %v2078 = vsel %vm2076, %v2077, %v2073
        %v2079 = vadd.s32 %v2074, %v2078
        %v2080 = vadd.s32 %v2079, 536870912
        %v2081 = vshrl.u32 %v2080, 30
        %v2082 = vshll.u32 %v2081, 30
        %v2083 = vsub.s32 %v2079, %v2082
        %vm2084 = vcmp.lt.s32.totalorder %v2083, 0
        %v2085 = vsub.s32 0, %v2083
        %v2086 = vsel %vm2084, %v2085, %v2083
        %v2087 = vclz %v2086
        %v2088 = vsub.s32 %v2087, 2
        %vm2089 = vcmp.gt.s32.totalorder 0, %v2088
        %v2090 = vsel %vm2089, 0, %v2088
        %v2091 = vsub.s32 32, %v2090
        %v2092 = vshll.u32 %v2083, %v2090
        %v2093 = vshrl.u32 %v2075, %v2091
        %v2094 = vor.u32 %v2092, %v2093
        %v2095 = vsub.s32 4294967266, %v2090
        %v2096 = vadd.s32 %v2095, 127
        %v2097 = vshll.u32 %v2096, 23
        %v2098 = vor.u32 4788187, %v2097
        %v2099 = vand.u32 2147483647, %v2098
        %v2101 = vcvt.s32.f32 %v2094
        %v2102 = vmul.f32 %v2101, %v2099
        %v2103 = vxor.u32 %v2102, 2147483648
        %v2104 = vsel %vm2021, %v2103, %v2102
        %v2105 = vsub.s32 4, %v2081
        %v2106 = vsel %vm2021, %v2105, %v2081
        %v2107 = vsel %vm2020, %v2017, %v2104
        %v2108 = vsel %vm2020, 0, %v2106
        %v2109 = vcosq.f32.pop %v2107
        %v2110 = vsinq.f32.pop %v2107
        %vm2111 = vweird.f32 %v2017
        %v2112 = vadd.s32 %v2108, 3
        %v2113 = vand.u32 %v2112, 3
        %vm2114 = vcmp.lt.s32.totalorder %v2113, 2
        %vm2115 = vcmp.eq.s32.totalorder %v2113, 0
        %v2116 = vxor.u32 %v2110, 2147483648
        %v2117 = vsel %vm2115, %v2109, %v2116
        %vm2118 = vcmp.eq.s32.totalorder %v2113, 2
        %v2119 = vxor.u32 %v2109, 2147483648
        %v2120 = vsel %vm2118, %v2119, %v2110
        %v2121 = vsel %vm2114, %v2117, %v2120
        %v2122 = vsel %vm2111, nan, %v2121
        %v2123 = vand.u32 2147483647, %v2018
        %vm2124 = vcmp.le.f32.partialorder %v2123, 0.7853982
        %vm2125 = vcmp.lt.s32.totalorder %v2018, 0
        %v2126 = vand.u32 %v2018, 2139095040
        %v2127 = vshrl.u32 %v2126, 23
        %v2128 = vsub.s32 %v2127, 127
        %v2129 = vand.u32 2147483647, %v2018
        %v2130 = vand.u32 %v2129, 8388607
        %v2131 = vor.u32 %v2130, 8388608
        %v2132 = vsub.s32 0, %v2131
        %v2133 = vadd.s32 %v2128, 1
        %vm2134 = vcmp.gt.s32.totalorder %v2133, 0
        %v2135 = vsel %vm2134, %v2133, 0
        %v2136 = vshrl.u32 %v2135, 5
        %v2137 = vand.u32 %v2135, 31
        %v2138 = vsub.s32 32, %v2137
        %v2139 = vshrl.u32 683565275, %v2138
        %v2140 = vshll.u32 683565275, %v2137
        %v2141 = vshrl.u32 2475754826, %v2138
        %v2142 = vor.u32 %v2140, %v2141
        %v2143 = vshll.u32 2475754826, %v2137
        %v2144 = vshrl.u32 2131351028, %v2138
        %v2145 = vor.u32 %v2143, %v2144
        %v2146 = vshll.u32 2131351028, %v2137
        %v2147 = vshrl.u32 2102212464, %v2138
        %v2148 = vor.u32 %v2146, %v2147
        %v2149 = vshll.u32 2102212464, %v2137
        %v2150 = vshrl.u32 920167782, %v2138
        %v2151 = vor.u32 %v2149, %v2150
        %v2152 = vshll.u32 920167782, %v2137
        %v2153 = vshrl.u32 1326507024, %v2138
        %v2154 = vor.u32 %v2152, %v2153
        %vm2155 = vcmp.lt.s32.totalorder %v2136, 1
        %vm2156 = vcmp.lt.s32.totalorder %v2136, 2
        %vm2157 = vcmp.lt.s32.totalorder %v2136, 3
        %vm2158 = vcmp.lt.s32.totalorder %v2136, 4
        %v2159 = vsel %vm2155, %v2139, %v2142
        %v2160 = vsel %vm2158, %v2148, 2102212464
        %v2161 = vsel %vm2157, %v2145, %v2160
        %v2162 = vsel %vm2156, %v2159, %v2161
        %v2163 = vsel %vm2155, %v2142, %v2145
        %v2164 = vsel %vm2158, %v2151, 920167782
        %v2165 = vsel %vm2157, %v2148, %v2164
        %v2166 = vsel %vm2156, %v2163, %v2165
        %v2167 = vsel %vm2155, %v2145, %v2148
        %v2168 = vsel %vm2158, %v2154, 1326507024
        %v2169 = vsel %vm2157, %v2151, %v2168
        %v2170 = vsel %vm2156, %v2167, %v2169
        %v2171 = vshll.u32 %v2131, 8
        %v2172 = vmul.u32.u64.compose %v2171, %v2170
        %v2173 = vextract.low.u32 %v2172
        %v2174 = vextract.high.u32 %v2172
        %v2175 = vmul.u32.u64.compose %v2171, %v2166
        %v2176 = vextract.low.u32 %v2175
        %v2177 = vextract.high.u32 %v2175
        %v2178 = vmul.u32 %v2171, %v2162
        %v2179 = vadd.s32 %v2174, %v2176
        %vm2180 = vc.u32 %v2174, %v2176
        %v2181 = vadd.s32 %v2177, 1
        %v2182 = vsel %vm2180, %v2181, %v2177
        %v2183 = vadd.s32 %v2178, %v2182
        %v2184 = vadd.s32 %v2183, 536870912
        %v2185 = vshrl.u32 %v2184, 30
        %v2186 = vshll.u32 %v2185, 30
        %v2187 = vsub.s32 %v2183, %v2186
        %vm2188 = vcmp.lt.s32.totalorder %v2187, 0
        %v2189 = vsub.s32 0, %v2187
        %v2190 = vsel %vm2188, %v2189, %v2187
        %v2191 = vclz %v2190
        %v2192 = vsub.s32 %v2191, 2
        %vm2193 = vcmp.gt.s32.totalorder 0, %v2192
        %v2194 = vsel %vm2193, 0, %v2192
        %v2195 = vsub.s32 32, %v2194
        %v2196 = vshll.u32 %v2187, %v2194
        %v2197 = vshrl.u32 %v2179, %v2195
        %v2198 = vor.u32 %v2196, %v2197
        %v2199 = vsub.s32 4294967266, %v2194
        %v2200 = vadd.s32 %v2199, 127
        %v2201 = vshll.u32 %v2200, 23
        %v2202 = vor.u32 4788187, %v2201
        %v2203 = vand.u32 2147483647, %v2202
        %v2205 = vcvt.s32.f32 %v2198
        %v2206 = vmul.f32 %v2205, %v2203
        %v2207 = vxor.u32 %v2206, 2147483648
        %v2208 = vsel %vm2125, %v2207, %v2206
        %v2209 = vsub.s32 4, %v2185
        %v2210 = vsel %vm2125, %v2209, %v2185
        %v2211 = vsel %vm2124, %v2018, %v2208
        %v2212 = vsel %vm2124, 0, %v2210
        %v2213 = vcosq.f32.pop %v2211
        %v2214 = vsinq.f32.pop %v2211
        %vm2215 = vweird.f32 %v2018
        %v2216 = vadd.s32 %v2212, 3
        %v2217 = vand.u32 %v2216, 3
        %vm2218 = vcmp.lt.s32.totalorder %v2217, 2
        %vm2219 = vcmp.eq.s32.totalorder %v2217, 0
        %v2220 = vxor.u32 %v2214, 2147483648
        %v2221 = vsel %vm2219, %v2213, %v2220
        %vm2222 = vcmp.eq.s32.totalorder %v2217, 2
        %v2223 = vxor.u32 %v2213, 2147483648
        %v2224 = vsel %vm2222, %v2223, %v2214
        %v2225 = vsel %vm2218, %v2221, %v2224
        %v2226 = vsel %vm2215, nan, %v2225
        %v2227 = vld [vmem:[#allocation11] sm:$0xff]
        %v2228 = vld [vmem:[#allocation11 + $0x8] sm:$0xff]
        %v2229 = vld [vmem:[#allocation13] sm:$0x1]
        %v2231 = vlaneseq
        %v2232 = vshrl.u32 %v2231, 7
        %v2233 = vsub.s32 0, %v2232
        %v2234 = vrot.slane %v2229, %v2233
        %v2237 = vsel %vm1508, %v2122, 0
        %v2240 = vsel %vm1508, %v2226, 0
        %2242 = vmatprep.subr.mxu0 0.0
        %2243 = vmatpush1.msra.mxu0 0.0
        %2244 = vmatprep.subr.mxu0 0.0
        %2245 = vmatpush1.msra.mxu0 0.0
        %2246 = vmatprep.subr.mxu0 0.0
        %2247 = vmatpush1.msra.mxu0 0.0
        %2248 = vmatprep.subr.mxu0 0.0
        %2249 = vmatpush1.msra.mxu0 0.0
        %2250 = vmatprep.subr.mxu0 0.0
        %2251 = vmatpush1.msra.mxu0 0.0
        %2252 = vmatprep.subr.mxu0 0.0
        %2253 = vmatpush1.msra.mxu0 0.0
        %2254 = vmatprep.subr.mxu0 0.0
        %2255 = vmatpush1.msra.mxu0 0.0
        %2256 = vmatprep.subr.mxu0 0.0
        %2257 = vmatpush1.msra.mxu0 0.0
        %2258 = vmatprep.subr.mxu0 0.0
        %2259 = vmatpush1.msra.mxu0 0.0
        %2260 = vmatprep.subr.mxu0 0.0
        %2261 = vmatpush1.msra.mxu0 0.0
        %2262 = vmatprep.subr.mxu0 0.0
        %2263 = vmatpush1.msra.mxu0 0.0
        %2264 = vmatprep.subr.mxu0 0.0
        %2265 = vmatpush1.msra.mxu0 0.0
        %2266 = vmatprep.subr.mxu0 0.0
        %2267 = vmatpush1.msra.mxu0 0.0
        %2268 = vmatprep.subr.mxu0 0.0
        %2269 = vmatpush1.msra.mxu0 0.0
        %2270 = vmatprep.subr.mxu0 0.0
        %v2271 = vand.u32 %v2228, 4294901760
        %2272 = vmatpush1.msra.mxu0 %v2271
        %2273 = vmatprep.subr.mxu0 0.0
        %v2274 = vand.u32 %v2227, 4294901760
        %2275 = vmatpush1.msra.mxu0 %v2274
        %2276 = vmatprep.subr.mxu0 0.0
        %2277 = vmatpush2.msra.mxu0 0.0
        %2278 = vmatprep.subr.mxu0 0.0
        %2279 = vmatpush2.msra.mxu0 0.0
        %2280 = vmatprep.subr.mxu0 0.0
        %2281 = vmatpush2.msra.mxu0 0.0
        %2282 = vmatprep.subr.mxu0 0.0
        %2283 = vmatpush2.msra.mxu0 0.0
        %2284 = vmatprep.subr.mxu0 0.0
        %2285 = vmatpush2.msra.mxu0 0.0
        %2286 = vmatprep.subr.mxu0 0.0
        %2287 = vmatpush2.msra.mxu0 0.0
        %2288 = vmatprep.subr.mxu0 0.0
        %2289 = vmatpush2.msra.mxu0 0.0
        %2290 = vmatprep.subr.mxu0 0.0
        %2291 = vmatpush2.msra.mxu0 0.0
        %2292 = vmatprep.subr.mxu0 0.0
        %2293 = vmatpush2.msra.mxu0 0.0
        %2294 = vmatprep.subr.mxu0 0.0
        %2295 = vmatpush2.msra.mxu0 0.0
        %2296 = vmatprep.subr.mxu0 0.0
        %2297 = vmatpush2.msra.mxu0 0.0
        %2298 = vmatprep.subr.mxu0 0.0
        %2299 = vmatpush2.msra.mxu0 0.0
        %2300 = vmatprep.subr.mxu0 0.0
        %2301 = vmatpush2.msra.mxu0 0.0
        %2302 = vmatprep.subr.mxu0 0.0
        %2303 = vmatpush2.msra.mxu0 0.0
        %2304 = vmatprep.subr.mxu0 0.0
        %2305 = vmatpush2.msra.mxu0 0.0
        %2306 = vmatprep.subr.mxu0 0.0
        %2307 = vmatpush2.msra.mxu0 0.0
        %2308 = vmatprep.mubr.f32.mxu0 0.0
        %v2309 = vand.u32 %v2237, 4294901760
        %v2310 = vsub.f32 %v2237, %v2309
        %v2311 = vand.u32 %v2310, 4294901760
        %v2312 = vsub.f32 %v2310, %v2311
        %v2313 = vand.u32 %v2312, 4294901760
        %2314 = vmatmul.mubr.f32.gmra.mxu0 %v2313
        %v2315 = vpop.f32.mrf.mxu0
        %v2316 = vadd.f32 %v2234, %v2315
        %v2317 = vpop.f32.mrf.mxu0
        %2318 = vmatprep.mubr.f32.mxu0 0.0
        %v2319 = vand.u32 %v2240, 4294901760
        %v2320 = vsub.f32 %v2240, %v2319
        %v2321 = vand.u32 %v2320, 4294901760
        %v2322 = vsub.f32 %v2320, %v2321
        %v2323 = vand.u32 %v2322, 4294901760
        %2324 = vmatmul.mubr.f32.gmra.mxu0 %v2323
        %v2325 = vpop.f32.mrf.mxu0
        %v2326 = vadd.f32 %v2234, %v2325
        %v2327 = vpop.f32.mrf.mxu0
        %2328 = vdwg.mxu0
        %2329 = vmatprep.subr.mxu0 0.0
        %2330 = vmatpush1.msra.mxu0 0.0
        %2331 = vmatprep.subr.mxu0 0.0
        %2332 = vmatpush1.msra.mxu0 0.0
        %2333 = vmatprep.subr.mxu0 0.0
        %2334 = vmatpush1.msra.mxu0 0.0
        %2335 = vmatprep.subr.mxu0 0.0
        %2336 = vmatpush1.msra.mxu0 0.0
        %2337 = vmatprep.subr.mxu0 0.0
        %2338 = vmatpush1.msra.mxu0 0.0
        %2339 = vmatprep.subr.mxu0 0.0
        %2340 = vmatpush1.msra.mxu0 0.0
        %2341 = vmatprep.subr.mxu0 0.0
        %2342 = vmatpush1.msra.mxu0 0.0
        %2343 = vmatprep.subr.mxu0 0.0
        %2344 = vmatpush1.msra.mxu0 0.0
        %2345 = vmatprep.subr.mxu0 0.0
        %2346 = vmatpush1.msra.mxu0 0.0
        %2347 = vmatprep.subr.mxu0 0.0
        %2348 = vmatpush1.msra.mxu0 0.0
        %2349 = vmatprep.subr.mxu0 0.0
        %2350 = vmatpush1.msra.mxu0 0.0
        %2351 = vmatprep.subr.mxu0 0.0
        %2352 = vmatpush1.msra.mxu0 0.0
        %2353 = vmatprep.subr.mxu0 0.0
        %2354 = vmatpush1.msra.mxu0 0.0
        %2355 = vmatprep.subr.mxu0 0.0
        %2356 = vmatpush1.msra.mxu0 0.0
        %2357 = vmatprep.subr.mxu0 0.0
        %v2358 = vand.u32 %v2228, 4294901760
        %v2359 = vsub.f32 %v2228, %v2358
        %v2360 = vand.u32 %v2359, 4294901760
        %v2361 = vsub.f32 %v2359, %v2360
        %v2362 = vand.u32 %v2361, 4294901760
        %2363 = vmatpush1.msra.mxu0 %v2362
        %2364 = vmatprep.subr.mxu0 0.0
        %v2365 = vand.u32 %v2227, 4294901760
        %v2366 = vsub.f32 %v2227, %v2365
        %v2367 = vand.u32 %v2366, 4294901760
        %v2368 = vsub.f32 %v2366, %v2367
        %v2369 = vand.u32 %v2368, 4294901760
        %2370 = vmatpush1.msra.mxu0 %v2369
        %2371 = vmatprep.subr.mxu0 0.0
        %2372 = vmatpush2.msra.mxu0 0.0
        %2373 = vmatprep.subr.mxu0 0.0
        %2374 = vmatpush2.msra.mxu0 0.0
        %2375 = vmatprep.subr.mxu0 0.0
        %2376 = vmatpush2.msra.mxu0 0.0
        %2377 = vmatprep.subr.mxu0 0.0
        %2378 = vmatpush2.msra.mxu0 0.0
        %2379 = vmatprep.subr.mxu0 0.0
        %2380 = vmatpush2.msra.mxu0 0.0
        %2381 = vmatprep.subr.mxu0 0.0
        %2382 = vmatpush2.msra.mxu0 0.0
        %2383 = vmatprep.subr.mxu0 0.0
        %2384 = vmatpush2.msra.mxu0 0.0
        %2385 = vmatprep.subr.mxu0 0.0
        %2386 = vmatpush2.msra.mxu0 0.0
        %2387 = vmatprep.subr.mxu0 0.0
        %2388 = vmatpush2.msra.mxu0 0.0
        %2389 = vmatprep.subr.mxu0 0.0
        %2390 = vmatpush2.msra.mxu0 0.0
        %2391 = vmatprep.subr.mxu0 0.0
        %2392 = vmatpush2.msra.mxu0 0.0
        %2393 = vmatprep.subr.mxu0 0.0
        %2394 = vmatpush2.msra.mxu0 0.0
        %2395 = vmatprep.subr.mxu0 0.0
        %2396 = vmatpush2.msra.mxu0 0.0
        %2397 = vmatprep.subr.mxu0 0.0
        %2398 = vmatpush2.msra.mxu0 0.0
        %2399 = vmatprep.subr.mxu0 0.0
        %2400 = vmatpush2.msra.mxu0 0.0
        %2401 = vmatprep.subr.mxu0 0.0
        %2402 = vmatpush2.msra.mxu0 0.0
        %2403 = vmatprep.mubr.f32.mxu0 0.0
        %v2404 = vand.u32 %v2237, 4294901760
        %2405 = vmatmul.mubr.f32.gmra.mxu0 %v2404
        %v2406 = vpop.f32.mrf.mxu0
        %v2407 = vadd.f32 %v2316, %v2406
        %v2408 = vpop.f32.mrf.mxu0
        %2409 = vmatprep.mubr.f32.mxu0 0.0
        %v2410 = vand.u32 %v2240, 4294901760
        %2411 = vmatmul.mubr.f32.gmra.mxu0 %v2410
        %v2412 = vpop.f32.mrf.mxu0
        %v2413 = vadd.f32 %v2326, %v2412
        %v2414 = vpop.f32.mrf.mxu0
        %2415 = vdwg.mxu0
        %2416 = vmatprep.subr.mxu0 0.0
        %2417 = vmatpush1.msra.mxu0 0.0
        %2418 = vmatprep.subr.mxu0 0.0
        %2419 = vmatpush1.msra.mxu0 0.0
        %2420 = vmatprep.subr.mxu0 0.0
        %2421 = vmatpush1.msra.mxu0 0.0
        %2422 = vmatprep.subr.mxu0 0.0
        %2423 = vmatpush1.msra.mxu0 0.0
        %2424 = vmatprep.subr.mxu0 0.0
        %2425 = vmatpush1.msra.mxu0 0.0
        %2426 = vmatprep.subr.mxu0 0.0
        %2427 = vmatpush1.msra.mxu0 0.0
        %2428 = vmatprep.subr.mxu0 0.0
        %2429 = vmatpush1.msra.mxu0 0.0
        %2430 = vmatprep.subr.mxu0 0.0
        %2431 = vmatpush1.msra.mxu0 0.0
        %2432 = vmatprep.subr.mxu0 0.0
        %2433 = vmatpush1.msra.mxu0 0.0
        %2434 = vmatprep.subr.mxu0 0.0
        %2435 = vmatpush1.msra.mxu0 0.0
        %2436 = vmatprep.subr.mxu0 0.0
        %2437 = vmatpush1.msra.mxu0 0.0
        %2438 = vmatprep.subr.mxu0 0.0
        %2439 = vmatpush1.msra.mxu0 0.0
        %2440 = vmatprep.subr.mxu0 0.0
        %2441 = vmatpush1.msra.mxu0 0.0
        %2442 = vmatprep.subr.mxu0 0.0
        %2443 = vmatpush1.msra.mxu0 0.0
        %2444 = vmatprep.subr.mxu0 0.0
        %v2445 = vand.u32 %v2228, 4294901760
        %v2446 = vsub.f32 %v2228, %v2445
        %2447 = vmatpush1.msra.mxu0 %v2446
        %2448 = vmatprep.subr.mxu0 0.0
        %v2449 = vand.u32 %v2227, 4294901760
        %v2450 = vsub.f32 %v2227, %v2449
        %2451 = vmatpush1.msra.mxu0 %v2450
        %2452 = vmatprep.subr.mxu0 0.0
        %2453 = vmatpush2.msra.mxu0 0.0
        %2454 = vmatprep.subr.mxu0 0.0
        %2455 = vmatpush2.msra.mxu0 0.0
        %2456 = vmatprep.subr.mxu0 0.0
        %2457 = vmatpush2.msra.mxu0 0.0
        %2458 = vmatprep.subr.mxu0 0.0
        %2459 = vmatpush2.msra.mxu0 0.0
        %2460 = vmatprep.subr.mxu0 0.0
        %2461 = vmatpush2.msra.mxu0 0.0
        %2462 = vmatprep.subr.mxu0 0.0
        %2463 = vmatpush2.msra.mxu0 0.0
        %2464 = vmatprep.subr.mxu0 0.0
        %2465 = vmatpush2.msra.mxu0 0.0
        %2466 = vmatprep.subr.mxu0 0.0
        %2467 = vmatpush2.msra.mxu0 0.0
        %2468 = vmatprep.subr.mxu0 0.0
        %2469 = vmatpush2.msra.mxu0 0.0
        %2470 = vmatprep.subr.mxu0 0.0
        %2471 = vmatpush2.msra.mxu0 0.0
        %2472 = vmatprep.subr.mxu0 0.0
        %2473 = vmatpush2.msra.mxu0 0.0
        %2474 = vmatprep.subr.mxu0 0.0
        %2475 = vmatpush2.msra.mxu0 0.0
        %2476 = vmatprep.subr.mxu0 0.0
        %2477 = vmatpush2.msra.mxu0 0.0
        %2478 = vmatprep.subr.mxu0 0.0
        %2479 = vmatpush2.msra.mxu0 0.0
        %2480 = vmatprep.subr.mxu0 0.0
        %2481 = vmatpush2.msra.mxu0 0.0
        %2482 = vmatprep.subr.mxu0 0.0
        %2483 = vmatpush2.msra.mxu0 0.0
        %2484 = vmatprep.mubr.f32.mxu0 0.0
        %v2485 = vand.u32 %v2237, 4294901760
        %v2486 = vsub.f32 %v2237, %v2485
        %2487 = vmatmul.mubr.f32.gmra.mxu0 %v2486
        %v2488 = vpop.f32.mrf.mxu0
        %v2489 = vadd.f32 %v2407, %v2488
        %v2490 = vpop.f32.mrf.mxu0
        %2491 = vmatprep.mubr.f32.mxu0 0.0
        %v2492 = vand.u32 %v2240, 4294901760
        %v2493 = vsub.f32 %v2240, %v2492
        %2494 = vmatmul.mubr.f32.gmra.mxu0 %v2493
        %v2495 = vpop.f32.mrf.mxu0
        %v2496 = vadd.f32 %v2413, %v2495
        %v2497 = vpop.f32.mrf.mxu0
        %2498 = vdwg.mxu0
        %2499 = vmatprep.subr.mxu0 0.0
        %2500 = vmatpush1.msra.mxu0 0.0
        %2501 = vmatprep.subr.mxu0 0.0
        %2502 = vmatpush1.msra.mxu0 0.0
        %2503 = vmatprep.subr.mxu0 0.0
        %2504 = vmatpush1.msra.mxu0 0.0
        %2505 = vmatprep.subr.mxu0 0.0
        %2506 = vmatpush1.msra.mxu0 0.0
        %2507 = vmatprep.subr.mxu0 0.0
        %2508 = vmatpush1.msra.mxu0 0.0
        %2509 = vmatprep.subr.mxu0 0.0
        %2510 = vmatpush1.msra.mxu0 0.0
        %2511 = vmatprep.subr.mxu0 0.0
        %2512 = vmatpush1.msra.mxu0 0.0
        %2513 = vmatprep.subr.mxu0 0.0
        %2514 = vmatpush1.msra.mxu0 0.0
        %2515 = vmatprep.subr.mxu0 0.0
        %2516 = vmatpush1.msra.mxu0 0.0
        %2517 = vmatprep.subr.mxu0 0.0
        %2518 = vmatpush1.msra.mxu0 0.0
        %2519 = vmatprep.subr.mxu0 0.0
        %2520 = vmatpush1.msra.mxu0 0.0
        %2521 = vmatprep.subr.mxu0 0.0
        %2522 = vmatpush1.msra.mxu0 0.0
        %2523 = vmatprep.subr.mxu0 0.0
        %2524 = vmatpush1.msra.mxu0 0.0
        %2525 = vmatprep.subr.mxu0 0.0
        %2526 = vmatpush1.msra.mxu0 0.0
        %2527 = vmatprep.subr.mxu0 0.0
        %v2528 = vand.u32 %v2228, 4294901760
        %2529 = vmatpush1.msra.mxu0 %v2528
        %2530 = vmatprep.subr.mxu0 0.0
        %v2531 = vand.u32 %v2227, 4294901760
        %2532 = vmatpush1.msra.mxu0 %v2531
        %2533 = vmatprep.subr.mxu0 0.0
        %2534 = vmatpush2.msra.mxu0 0.0
        %2535 = vmatprep.subr.mxu0 0.0
        %2536 = vmatpush2.msra.mxu0 0.0
        %2537 = vmatprep.subr.mxu0 0.0
        %2538 = vmatpush2.msra.mxu0 0.0
        %2539 = vmatprep.subr.mxu0 0.0
        %2540 = vmatpush2.msra.mxu0 0.0
        %2541 = vmatprep.subr.mxu0 0.0
        %2542 = vmatpush2.msra.mxu0 0.0
        %2543 = vmatprep.subr.mxu0 0.0
        %2544 = vmatpush2.msra.mxu0 0.0
        %2545 = vmatprep.subr.mxu0 0.0
        %2546 = vmatpush2.msra.mxu0 0.0
        %2547 = vmatprep.subr.mxu0 0.0
        %2548 = vmatpush2.msra.mxu0 0.0
        %2549 = vmatprep.subr.mxu0 0.0
        %2550 = vmatpush2.msra.mxu0 0.0
        %2551 = vmatprep.subr.mxu0 0.0
        %2552 = vmatpush2.msra.mxu0 0.0
        %2553 = vmatprep.subr.mxu0 0.0
        %2554 = vmatpush2.msra.mxu0 0.0
        %2555 = vmatprep.subr.mxu0 0.0
        %2556 = vmatpush2.msra.mxu0 0.0
        %2557 = vmatprep.subr.mxu0 0.0
        %2558 = vmatpush2.msra.mxu0 0.0
        %2559 = vmatprep.subr.mxu0 0.0
        %2560 = vmatpush2.msra.mxu0 0.0
        %2561 = vmatprep.subr.mxu0 0.0
        %2562 = vmatpush2.msra.mxu0 0.0
        %2563 = vmatprep.subr.mxu0 0.0
        %2564 = vmatpush2.msra.mxu0 0.0
        %2565 = vmatprep.mubr.f32.mxu0 0.0
        %v2566 = vand.u32 %v2237, 4294901760
        %v2567 = vsub.f32 %v2237, %v2566
        %v2568 = vand.u32 %v2567, 4294901760
        %2569 = vmatmul.mubr.f32.gmra.mxu0 %v2568
        %v2570 = vpop.f32.mrf.mxu0
        %v2571 = vadd.f32 %v2489, %v2570
        %v2572 = vpop.f32.mrf.mxu0
        %2573 = vmatprep.mubr.f32.mxu0 0.0
        %v2574 = vand.u32 %v2240, 4294901760
        %v2575 = vsub.f32 %v2240, %v2574
        %v2576 = vand.u32 %v2575, 4294901760
        %2577 = vmatmul.mubr.f32.gmra.mxu0 %v2576
        %v2578 = vpop.f32.mrf.mxu0
        %v2579 = vadd.f32 %v2496, %v2578
        %v2580 = vpop.f32.mrf.mxu0
        %2581 = vdwg.mxu0
        %2582 = vmatprep.subr.mxu0 0.0
        %2583 = vmatpush1.msra.mxu0 0.0
        %2584 = vmatprep.subr.mxu0 0.0
        %2585 = vmatpush1.msra.mxu0 0.0
        %2586 = vmatprep.subr.mxu0 0.0
        %2587 = vmatpush1.msra.mxu0 0.0
        %2588 = vmatprep.subr.mxu0 0.0
        %2589 = vmatpush1.msra.mxu0 0.0
        %2590 = vmatprep.subr.mxu0 0.0
        %2591 = vmatpush1.msra.mxu0 0.0
        %2592 = vmatprep.subr.mxu0 0.0
        %2593 = vmatpush1.msra.mxu0 0.0
        %2594 = vmatprep.subr.mxu0 0.0
        %2595 = vmatpush1.msra.mxu0 0.0
        %2596 = vmatprep.subr.mxu0 0.0
        %2597 = vmatpush1.msra.mxu0 0.0
        %2598 = vmatprep.subr.mxu0 0.0
        %2599 = vmatpush1.msra.mxu0 0.0
        %2600 = vmatprep.subr.mxu0 0.0
        %2601 = vmatpush1.msra.mxu0 0.0
        %2602 = vmatprep.subr.mxu0 0.0
        %2603 = vmatpush1.msra.mxu0 0.0
        %2604 = vmatprep.subr.mxu0 0.0
        %2605 = vmatpush1.msra.mxu0 0.0
        %2606 = vmatprep.subr.mxu0 0.0
        %2607 = vmatpush1.msra.mxu0 0.0
        %2608 = vmatprep.subr.mxu0 0.0
        %2609 = vmatpush1.msra.mxu0 0.0
        %2610 = vmatprep.subr.mxu0 0.0
        %v2611 = vand.u32 %v2228, 4294901760
        %v2612 = vsub.f32 %v2228, %v2611
        %v2613 = vand.u32 %v2612, 4294901760
        %2614 = vmatpush1.msra.mxu0 %v2613
        %2615 = vmatprep.subr.mxu0 0.0
        %v2616 = vand.u32 %v2227, 4294901760
        %v2617 = vsub.f32 %v2227, %v2616
        %v2618 = vand.u32 %v2617, 4294901760
        %2619 = vmatpush1.msra.mxu0 %v2618
        %2620 = vmatprep.subr.mxu0 0.0
        %2621 = vmatpush2.msra.mxu0 0.0
        %2622 = vmatprep.subr.mxu0 0.0
        %2623 = vmatpush2.msra.mxu0 0.0
        %2624 = vmatprep.subr.mxu0 0.0
        %2625 = vmatpush2.msra.mxu0 0.0
        %2626 = vmatprep.subr.mxu0 0.0
        %2627 = vmatpush2.msra.mxu0 0.0
        %2628 = vmatprep.subr.mxu0 0.0
        %2629 = vmatpush2.msra.mxu0 0.0
        %2630 = vmatprep.subr.mxu0 0.0
        %2631 = vmatpush2.msra.mxu0 0.0
        %2632 = vmatprep.subr.mxu0 0.0
        %2633 = vmatpush2.msra.mxu0 0.0
        %2634 = vmatprep.subr.mxu0 0.0
        %2635 = vmatpush2.msra.mxu0 0.0
        %2636 = vmatprep.subr.mxu0 0.0
        %2637 = vmatpush2.msra.mxu0 0.0
        %2638 = vmatprep.subr.mxu0 0.0
        %2639 = vmatpush2.msra.mxu0 0.0
        %2640 = vmatprep.subr.mxu0 0.0
        %2641 = vmatpush2.msra.mxu0 0.0
        %2642 = vmatprep.subr.mxu0 0.0
        %2643 = vmatpush2.msra.mxu0 0.0
        %2644 = vmatprep.subr.mxu0 0.0
        %2645 = vmatpush2.msra.mxu0 0.0
        %2646 = vmatprep.subr.mxu0 0.0
        %2647 = vmatpush2.msra.mxu0 0.0
        %2648 = vmatprep.subr.mxu0 0.0
        %2649 = vmatpush2.msra.mxu0 0.0
        %2650 = vmatprep.subr.mxu0 0.0
        %2651 = vmatpush2.msra.mxu0 0.0
        %2652 = vmatprep.mubr.f32.mxu0 0.0
        %v2653 = vand.u32 %v2237, 4294901760
        %2654 = vmatmul.mubr.f32.gmra.mxu0 %v2653
        %v2655 = vpop.f32.mrf.mxu0
        %v2656 = vadd.f32 %v2571, %v2655
        %v2657 = vpop.f32.mrf.mxu0
        %2658 = vmatprep.mubr.f32.mxu0 0.0
        %v2659 = vand.u32 %v2240, 4294901760
        %2660 = vmatmul.mubr.f32.gmra.mxu0 %v2659
        %v2661 = vpop.f32.mrf.mxu0
        %v2662 = vadd.f32 %v2579, %v2661
        %v2663 = vpop.f32.mrf.mxu0
        %2664 = vdwg.mxu0
        %2665 = vmatprep.subr.mxu0 0.0
        %2666 = vmatpush1.msra.mxu0 0.0
        %2667 = vmatprep.subr.mxu0 0.0
        %2668 = vmatpush1.msra.mxu0 0.0
        %2669 = vmatprep.subr.mxu0 0.0
        %2670 = vmatpush1.msra.mxu0 0.0
        %2671 = vmatprep.subr.mxu0 0.0
        %2672 = vmatpush1.msra.mxu0 0.0
        %2673 = vmatprep.subr.mxu0 0.0
        %2674 = vmatpush1.msra.mxu0 0.0
        %2675 = vmatprep.subr.mxu0 0.0
        %2676 = vmatpush1.msra.mxu0 0.0
        %2677 = vmatprep.subr.mxu0 0.0
        %2678 = vmatpush1.msra.mxu0 0.0
        %2679 = vmatprep.subr.mxu0 0.0
        %2680 = vmatpush1.msra.mxu0 0.0
        %2681 = vmatprep.subr.mxu0 0.0
        %2682 = vmatpush1.msra.mxu0 0.0
        %2683 = vmatprep.subr.mxu0 0.0
        %2684 = vmatpush1.msra.mxu0 0.0
        %2685 = vmatprep.subr.mxu0 0.0
        %2686 = vmatpush1.msra.mxu0 0.0
        %2687 = vmatprep.subr.mxu0 0.0
        %2688 = vmatpush1.msra.mxu0 0.0
        %2689 = vmatprep.subr.mxu0 0.0
        %2690 = vmatpush1.msra.mxu0 0.0
        %2691 = vmatprep.subr.mxu0 0.0
        %2692 = vmatpush1.msra.mxu0 0.0
        %2693 = vmatprep.subr.mxu0 0.0
        %v2694 = vand.u32 %v2228, 4294901760
        %2695 = vmatpush1.msra.mxu0 %v2694
        %2696 = vmatprep.subr.mxu0 0.0
        %v2697 = vand.u32 %v2227, 4294901760
        %2698 = vmatpush1.msra.mxu0 %v2697
        %2699 = vmatprep.subr.mxu0 0.0
        %2700 = vmatpush2.msra.mxu0 0.0
        %2701 = vmatprep.subr.mxu0 0.0
        %2702 = vmatpush2.msra.mxu0 0.0
        %2703 = vmatprep.subr.mxu0 0.0
        %2704 = vmatpush2.msra.mxu0 0.0
        %2705 = vmatprep.subr.mxu0 0.0
        %2706 = vmatpush2.msra.mxu0 0.0
        %2707 = vmatprep.subr.mxu0 0.0
        %2708 = vmatpush2.msra.mxu0 0.0
        %2709 = vmatprep.subr.mxu0 0.0
        %2710 = vmatpush2.msra.mxu0 0.0
        %2711 = vmatprep.subr.mxu0 0.0
        %2712 = vmatpush2.msra.mxu0 0.0
        %2713 = vmatprep.subr.mxu0 0.0
        %2714 = vmatpush2.msra.mxu0 0.0
        %2715 = vmatprep.subr.mxu0 0.0
        %2716 = vmatpush2.msra.mxu0 0.0
        %2717 = vmatprep.subr.mxu0 0.0
        %2718 = vmatpush2.msra.mxu0 0.0
        %2719 = vmatprep.subr.mxu0 0.0
        %2720 = vmatpush2.msra.mxu0 0.0
        %2721 = vmatprep.subr.mxu0 0.0
        %2722 = vmatpush2.msra.mxu0 0.0
        %2723 = vmatprep.subr.mxu0 0.0
        %2724 = vmatpush2.msra.mxu0 0.0
        %2725 = vmatprep.subr.mxu0 0.0
        %2726 = vmatpush2.msra.mxu0 0.0
        %2727 = vmatprep.subr.mxu0 0.0
        %2728 = vmatpush2.msra.mxu0 0.0
        %2729 = vmatprep.subr.mxu0 0.0
        %2730 = vmatpush2.msra.mxu0 0.0
        %2731 = vmatprep.mubr.f32.mxu0 0.0
        %v2732 = vand.u32 %v2237, 4294901760
        %2733 = vmatmul.mubr.f32.gmra.mxu0 %v2732
        %v2734 = vpop.f32.mrf.mxu0
        %v2735 = vadd.f32 %v2656, %v2734
        %v2736 = vpop.f32.mrf.mxu0
        %2737 = vmatprep.mubr.f32.mxu0 0.0
        %v2738 = vand.u32 %v2240, 4294901760
        %2739 = vmatmul.mubr.f32.gmra.mxu0 %v2738
        %v2740 = vpop.f32.mrf.mxu0
        %v2741 = vadd.f32 %v2662, %v2740
        %v2742 = vpop.f32.mrf.mxu0
        %2743 = vdwg.mxu0
        %v2744 = vmul.f32 %v1287, %v2735
        %v2745 = vmul.f32 %v1287, %v2741
        %v2746 = vand.u32 2147483647, %v2744
        %vm2747 = vcmp.le.f32.partialorder %v2746, 0.7853982
        %vm2748 = vcmp.lt.s32.totalorder %v2744, 0
        %v2749 = vand.u32 %v2744, 2139095040
        %v2750 = vshrl.u32 %v2749, 23
        %v2751 = vsub.s32 %v2750, 127
        %v2752 = vand.u32 2147483647, %v2744
        %v2753 = vand.u32 %v2752, 8388607
        %v2754 = vor.u32 %v2753, 8388608
        %v2755 = vsub.s32 0, %v2754
        %v2756 = vadd.s32 %v2751, 1
        %vm2757 = vcmp.gt.s32.totalorder %v2756, 0
        %v2758 = vsel %vm2757, %v2756, 0
        %v2759 = vshrl.u32 %v2758, 5
        %v2760 = vand.u32 %v2758, 31
        %v2761 = vsub.s32 32, %v2760
        %v2762 = vshrl.u32 683565275, %v2761
        %v2763 = vshll.u32 683565275, %v2760
        %v2764 = vshrl.u32 2475754826, %v2761
        %v2765 = vor.u32 %v2763, %v2764
        %v2766 = vshll.u32 2475754826, %v2760
        %v2767 = vshrl.u32 2131351028, %v2761
        %v2768 = vor.u32 %v2766, %v2767
        %v2769 = vshll.u32 2131351028, %v2760
        %v2770 = vshrl.u32 2102212464, %v2761
        %v2771 = vor.u32 %v2769, %v2770
        %v2772 = vshll.u32 2102212464, %v2760
        %v2773 = vshrl.u32 920167782, %v2761
        %v2774 = vor.u32 %v2772, %v2773
        %v2775 = vshll.u32 920167782, %v2760
        %v2776 = vshrl.u32 1326507024, %v2761
        %v2777 = vor.u32 %v2775, %v2776
        %vm2778 = vcmp.lt.s32.totalorder %v2759, 1
        %vm2779 = vcmp.lt.s32.totalorder %v2759, 2
        %vm2780 = vcmp.lt.s32.totalorder %v2759, 3
        %vm2781 = vcmp.lt.s32.totalorder %v2759, 4
        %v2782 = vsel %vm2778, %v2762, %v2765
        %v2783 = vsel %vm2781, %v2771, 2102212464
        %v2784 = vsel %vm2780, %v2768, %v2783
        %v2785 = vsel %vm2779, %v2782, %v2784
        %v2786 = vsel %vm2778, %v2765, %v2768
        %v2787 = vsel %vm2781, %v2774, 920167782
        %v2788 = vsel %vm2780, %v2771, %v2787
        %v2789 = vsel %vm2779, %v2786, %v2788
        %v2790 = vsel %vm2778, %v2768, %v2771
        %v2791 = vsel %vm2781, %v2777, 1326507024
        %v2792 = vsel %vm2780, %v2774, %v2791
        %v2793 = vsel %vm2779, %v2790, %v2792
        %v2794 = vshll.u32 %v2754, 8
        %v2795 = vmul.u32.u64.compose %v2794, %v2793
        %v2796 = vextract.low.u32 %v2795
        %v2797 = vextract.high.u32 %v2795
        %v2798 = vmul.u32.u64.compose %v2794, %v2789
        %v2799 = vextract.low.u32 %v2798
        %v2800 = vextract.high.u32 %v2798
        %v2801 = vmul.u32 %v2794, %v2785
        %v2802 = vadd.s32 %v2797, %v2799
        %vm2803 = vc.u32 %v2797, %v2799
        %v2804 = vadd.s32 %v2800, 1
        %v2805 = vsel %vm2803, %v2804, %v2800
        %v2806 = vadd.s32 %v2801, %v2805
        %v2807 = vadd.s32 %v2806, 536870912
        %v2808 = vshrl.u32 %v2807, 30
        %v2809 = vshll.u32 %v2808, 30
        %v2810 = vsub.s32 %v2806, %v2809
        %vm2811 = vcmp.lt.s32.totalorder %v2810, 0
        %v2812 = vsub.s32 0, %v2810
        %v2813 = vsel %vm2811, %v2812, %v2810
        %v2814 = vclz %v2813
        %v2815 = vsub.s32 %v2814, 2
        %vm2816 = vcmp.gt.s32.totalorder 0, %v2815
        %v2817 = vsel %vm2816, 0, %v2815
        %v2818 = vsub.s32 32, %v2817
        %v2819 = vshll.u32 %v2810, %v2817
        %v2820 = vshrl.u32 %v2802, %v2818
        %v2821 = vor.u32 %v2819, %v2820
        %v2822 = vsub.s32 4294967266, %v2817
        %v2823 = vadd.s32 %v2822, 127
        %v2824 = vshll.u32 %v2823, 23
        %v2825 = vor.u32 4788187, %v2824
        %v2826 = vand.u32 2147483647, %v2825
        %v2828 = vcvt.s32.f32 %v2821
        %v2829 = vmul.f32 %v2828, %v2826
        %v2830 = vxor.u32 %v2829, 2147483648
        %v2831 = vsel %vm2748, %v2830, %v2829
        %v2832 = vsub.s32 4, %v2808
        %v2833 = vsel %vm2748, %v2832, %v2808
        %v2834 = vsel %vm2747, %v2744, %v2831
        %v2835 = vsel %vm2747, 0, %v2833
        %v2836 = vcosq.f32.pop %v2834
        %v2837 = vsinq.f32.pop %v2834
        %vm2838 = vweird.f32 %v2744
        %v2839 = vadd.s32 %v2835, 3
        %v2840 = vand.u32 %v2839, 3
        %vm2841 = vcmp.lt.s32.totalorder %v2840, 2
        %vm2842 = vcmp.eq.s32.totalorder %v2840, 0
        %v2843 = vxor.u32 %v2837, 2147483648
        %v2844 = vsel %vm2842, %v2836, %v2843
        %vm2845 = vcmp.eq.s32.totalorder %v2840, 2
        %v2846 = vxor.u32 %v2836, 2147483648
        %v2847 = vsel %vm2845, %v2846, %v2837
        %v2848 = vsel %vm2841, %v2844, %v2847
        %v2849 = vsel %vm2838, nan, %v2848
        %v2850 = vand.u32 2147483647, %v2745
        %vm2851 = vcmp.le.f32.partialorder %v2850, 0.7853982
        %vm2852 = vcmp.lt.s32.totalorder %v2745, 0
        %v2853 = vand.u32 %v2745, 2139095040
        %v2854 = vshrl.u32 %v2853, 23
        %v2855 = vsub.s32 %v2854, 127
        %v2856 = vand.u32 2147483647, %v2745
        %v2857 = vand.u32 %v2856, 8388607
        %v2858 = vor.u32 %v2857, 8388608
        %v2859 = vsub.s32 0, %v2858
        %v2860 = vadd.s32 %v2855, 1
        %vm2861 = vcmp.gt.s32.totalorder %v2860, 0
        %v2862 = vsel %vm2861, %v2860, 0
        %v2863 = vshrl.u32 %v2862, 5
        %v2864 = vand.u32 %v2862, 31
        %v2865 = vsub.s32 32, %v2864
        %v2866 = vshrl.u32 683565275, %v2865
        %v2867 = vshll.u32 683565275, %v2864
        %v2868 = vshrl.u32 2475754826, %v2865
        %v2869 = vor.u32 %v2867, %v2868
        %v2870 = vshll.u32 2475754826, %v2864
        %v2871 = vshrl.u32 2131351028, %v2865
        %v2872 = vor.u32 %v2870, %v2871
        %v2873 = vshll.u32 2131351028, %v2864
        %v2874 = vshrl.u32 2102212464, %v2865
        %v2875 = vor.u32 %v2873, %v2874
        %v2876 = vshll.u32 2102212464, %v2864
        %v2877 = vshrl.u32 920167782, %v2865
        %v2878 = vor.u32 %v2876, %v2877
        %v2879 = vshll.u32 920167782, %v2864
        %v2880 = vshrl.u32 1326507024, %v2865
        %v2881 = vor.u32 %v2879, %v2880
        %vm2882 = vcmp.lt.s32.totalorder %v2863, 1
        %vm2883 = vcmp.lt.s32.totalorder %v2863, 2
        %vm2884 = vcmp.lt.s32.totalorder %v2863, 3
        %vm2885 = vcmp.lt.s32.totalorder %v2863, 4
        %v2886 = vsel %vm2882, %v2866, %v2869
        %v2887 = vsel %vm2885, %v2875, 2102212464
        %v2888 = vsel %vm2884, %v2872, %v2887
        %v2889 = vsel %vm2883, %v2886, %v2888
        %v2890 = vsel %vm2882, %v2869, %v2872
        %v2891 = vsel %vm2885, %v2878, 920167782
        %v2892 = vsel %vm2884, %v2875, %v2891
        %v2893 = vsel %vm2883, %v2890, %v2892
        %v2894 = vsel %vm2882, %v2872, %v2875
        %v2895 = vsel %vm2885, %v2881, 1326507024
        %v2896 = vsel %vm2884, %v2878, %v2895
        %v2897 = vsel %vm2883, %v2894, %v2896
        %v2898 = vshll.u32 %v2858, 8
        %v2899 = vmul.u32.u64.compose %v2898, %v2897
        %v2900 = vextract.low.u32 %v2899
        %v2901 = vextract.high.u32 %v2899
        %v2902 = vmul.u32.u64.compose %v2898, %v2893
        %v2903 = vextract.low.u32 %v2902
        %v2904 = vextract.high.u32 %v2902
        %v2905 = vmul.u32 %v2898, %v2889
        %v2906 = vadd.s32 %v2901, %v2903
        %vm2907 = vc.u32 %v2901, %v2903
        %v2908 = vadd.s32 %v2904, 1
        %v2909 = vsel %vm2907, %v2908, %v2904
        %v2910 = vadd.s32 %v2905, %v2909
        %v2911 = vadd.s32 %v2910, 536870912
        %v2912 = vshrl.u32 %v2911, 30
        %v2913 = vshll.u32 %v2912, 30
        %v2914 = vsub.s32 %v2910, %v2913
        %vm2915 = vcmp.lt.s32.totalorder %v2914, 0
        %v2916 = vsub.s32 0, %v2914
        %v2917 = vsel %vm2915, %v2916, %v2914
        %v2918 = vclz %v2917
        %v2919 = vsub.s32 %v2918, 2
        %vm2920 = vcmp.gt.s32.totalorder 0, %v2919
        %v2921 = vsel %vm2920, 0, %v2919
        %v2922 = vsub.s32 32, %v2921
        %v2923 = vshll.u32 %v2914, %v2921
        %v2924 = vshrl.u32 %v2906, %v2922
        %v2925 = vor.u32 %v2923, %v2924
        %v2926 = vsub.s32 4294967266, %v2921
        %v2927 = vadd.s32 %v2926, 127
        %v2928 = vshll.u32 %v2927, 23
        %v2929 = vor.u32 4788187, %v2928
        %v2930 = vand.u32 2147483647, %v2929
        %v2932 = vcvt.s32.f32 %v2925
        %v2933 = vmul.f32 %v2932, %v2930
        %v2934 = vxor.u32 %v2933, 2147483648
        %v2935 = vsel %vm2852, %v2934, %v2933
        %v2936 = vsub.s32 4, %v2912
        %v2937 = vsel %vm2852, %v2936, %v2912
        %v2938 = vsel %vm2851, %v2745, %v2935
        %v2939 = vsel %vm2851, 0, %v2937
        %v2940 = vcosq.f32.pop %v2938
        %v2941 = vsinq.f32.pop %v2938
        %vm2942 = vweird.f32 %v2745
        %v2943 = vadd.s32 %v2939, 3
        %v2944 = vand.u32 %v2943, 3
        %vm2945 = vcmp.lt.s32.totalorder %v2944, 2
        %vm2946 = vcmp.eq.s32.totalorder %v2944, 0
        %v2947 = vxor.u32 %v2941, 2147483648
        %v2948 = vsel %vm2946, %v2940, %v2947
        %vm2949 = vcmp.eq.s32.totalorder %v2944, 2
        %v2950 = vxor.u32 %v2940, 2147483648
        %v2951 = vsel %vm2949, %v2950, %v2941
        %v2952 = vsel %vm2945, %v2948, %v2951
        %v2953 = vsel %vm2942, nan, %v2952
        %v2954 = vld [vmem:[#allocation14] sm:$0xff]
        %v2955 = vld [vmem:[#allocation14 + $0x8] sm:$0xff]
        %v2957 = vsel %vm1508, %v2849, 0
        %v2960 = vsel %vm1508, %v2953, 0
        %2962 = vmatprep.subr.mxu0 0.0
        %2963 = vmatpush1.msra.mxu0 0.0
        %2964 = vmatprep.subr.mxu0 0.0
        %2965 = vmatpush1.msra.mxu0 0.0
        %2966 = vmatprep.subr.mxu0 0.0
        %2967 = vmatpush1.msra.mxu0 0.0
        %2968 = vmatprep.subr.mxu0 0.0
        %2969 = vmatpush1.msra.mxu0 0.0
        %2970 = vmatprep.subr.mxu0 0.0
        %2971 = vmatpush1.msra.mxu0 0.0
        %2972 = vmatprep.subr.mxu0 0.0
        %2973 = vmatpush1.msra.mxu0 0.0
        %2974 = vmatprep.subr.mxu0 0.0
        %2975 = vmatpush1.msra.mxu0 0.0
        %2976 = vmatprep.subr.mxu0 0.0
        %2977 = vmatpush1.msra.mxu0 0.0
        %2978 = vmatprep.subr.mxu0 0.0
        %2979 = vmatpush1.msra.mxu0 0.0
        %2980 = vmatprep.subr.mxu0 0.0
        %2981 = vmatpush1.msra.mxu0 0.0
        %2982 = vmatprep.subr.mxu0 0.0
        %2983 = vmatpush1.msra.mxu0 0.0
        %2984 = vmatprep.subr.mxu0 0.0
        %2985 = vmatpush1.msra.mxu0 0.0
        %2986 = vmatprep.subr.mxu0 0.0
        %2987 = vmatpush1.msra.mxu0 0.0
        %2988 = vmatprep.subr.mxu0 0.0
        %2989 = vmatpush1.msra.mxu0 0.0
        %2990 = vmatprep.subr.mxu0 0.0
        %v2991 = vand.u32 %v2955, 4294901760
        %2992 = vmatpush1.msra.mxu0 %v2991
        %2993 = vmatprep.subr.mxu0 0.0
        %v2994 = vand.u32 %v2954, 4294901760
        %2995 = vmatpush1.msra.mxu0 %v2994
        %2996 = vmatprep.subr.mxu0 0.0
        %2997 = vmatpush2.msra.mxu0 0.0
        %2998 = vmatprep.subr.mxu0 0.0
        %2999 = vmatpush2.msra.mxu0 0.0
        %3000 = vmatprep.subr.mxu0 0.0
        %3001 = vmatpush2.msra.mxu0 0.0
        %3002 = vmatprep.subr.mxu0 0.0
        %3003 = vmatpush2.msra.mxu0 0.0
        %3004 = vmatprep.subr.mxu0 0.0
        %3005 = vmatpush2.msra.mxu0 0.0
        %3006 = vmatprep.subr.mxu0 0.0
        %3007 = vmatpush2.msra.mxu0 0.0
        %3008 = vmatprep.subr.mxu0 0.0
        %3009 = vmatpush2.msra.mxu0 0.0
        %3010 = vmatprep.subr.mxu0 0.0
        %3011 = vmatpush2.msra.mxu0 0.0
        %3012 = vmatprep.subr.mxu0 0.0
        %3013 = vmatpush2.msra.mxu0 0.0
        %3014 = vmatprep.subr.mxu0 0.0
        %3015 = vmatpush2.msra.mxu0 0.0
        %3016 = vmatprep.subr.mxu0 0.0
        %3017 = vmatpush2.msra.mxu0 0.0
        %3018 = vmatprep.subr.mxu0 0.0
        %3019 = vmatpush2.msra.mxu0 0.0
        %3020 = vmatprep.subr.mxu0 0.0
        %3021 = vmatpush2.msra.mxu0 0.0
        %3022 = vmatprep.subr.mxu0 0.0
        %3023 = vmatpush2.msra.mxu0 0.0
        %3024 = vmatprep.subr.mxu0 0.0
        %3025 = vmatpush2.msra.mxu0 0.0
        %3026 = vmatprep.subr.mxu0 0.0
        %3027 = vmatpush2.msra.mxu0 0.0
        %3028 = vmatprep.mubr.f32.mxu0 0.0
        %v3029 = vand.u32 %v2957, 4294901760
        %v3030 = vsub.f32 %v2957, %v3029
        %v3031 = vand.u32 %v3030, 4294901760
        %v3032 = vsub.f32 %v3030, %v3031
        %v3033 = vand.u32 %v3032, 4294901760
        %3034 = vmatmul.mubr.f32.gmra.mxu0 %v3033
        %v3035 = vpop.f32.mrf.mxu0
        %v3036 = vadd.f32 0.0, %v3035
        %v3037 = vpop.f32.mrf.mxu0
        %3038 = vmatprep.mubr.f32.mxu0 0.0
        %v3039 = vand.u32 %v2960, 4294901760
        %v3040 = vsub.f32 %v2960, %v3039
        %v3041 = vand.u32 %v3040, 4294901760
        %v3042 = vsub.f32 %v3040, %v3041
        %v3043 = vand.u32 %v3042, 4294901760
        %3044 = vmatmul.mubr.f32.gmra.mxu0 %v3043
        %v3045 = vpop.f32.mrf.mxu0
        %v3046 = vadd.f32 0.0, %v3045
        %v3047 = vpop.f32.mrf.mxu0
        %3048 = vdwg.mxu0
        %3049 = vmatprep.subr.mxu0 0.0
        %3050 = vmatpush1.msra.mxu0 0.0
        %3051 = vmatprep.subr.mxu0 0.0
        %3052 = vmatpush1.msra.mxu0 0.0
        %3053 = vmatprep.subr.mxu0 0.0
        %3054 = vmatpush1.msra.mxu0 0.0
        %3055 = vmatprep.subr.mxu0 0.0
        %3056 = vmatpush1.msra.mxu0 0.0
        %3057 = vmatprep.subr.mxu0 0.0
        %3058 = vmatpush1.msra.mxu0 0.0
        %3059 = vmatprep.subr.mxu0 0.0
        %3060 = vmatpush1.msra.mxu0 0.0
        %3061 = vmatprep.subr.mxu0 0.0
        %3062 = vmatpush1.msra.mxu0 0.0
        %3063 = vmatprep.subr.mxu0 0.0
        %3064 = vmatpush1.msra.mxu0 0.0
        %3065 = vmatprep.subr.mxu0 0.0
        %3066 = vmatpush1.msra.mxu0 0.0
        %3067 = vmatprep.subr.mxu0 0.0
        %3068 = vmatpush1.msra.mxu0 0.0
        %3069 = vmatprep.subr.mxu0 0.0
        %3070 = vmatpush1.msra.mxu0 0.0
        %3071 = vmatprep.subr.mxu0 0.0
        %3072 = vmatpush1.msra.mxu0 0.0
        %3073 = vmatprep.subr.mxu0 0.0
        %3074 = vmatpush1.msra.mxu0 0.0
        %3075 = vmatprep.subr.mxu0 0.0
        %3076 = vmatpush1.msra.mxu0 0.0
        %3077 = vmatprep.subr.mxu0 0.0
        %v3078 = vand.u32 %v2955, 4294901760
        %v3079 = vsub.f32 %v2955, %v3078
        %v3080 = vand.u32 %v3079, 4294901760
        %v3081 = vsub.f32 %v3079, %v3080
        %v3082 = vand.u32 %v3081, 4294901760
        %3083 = vmatpush1.msra.mxu0 %v3082
        %3084 = vmatprep.subr.mxu0 0.0
        %v3085 = vand.u32 %v2954, 4294901760
        %v3086 = vsub.f32 %v2954, %v3085
        %v3087 = vand.u32 %v3086, 4294901760
        %v3088 = vsub.f32 %v3086, %v3087
        %v3089 = vand.u32 %v3088, 4294901760
        %3090 = vmatpush1.msra.mxu0 %v3089
        %3091 = vmatprep.subr.mxu0 0.0
        %3092 = vmatpush2.msra.mxu0 0.0
        %3093 = vmatprep.subr.mxu0 0.0
        %3094 = vmatpush2.msra.mxu0 0.0
        %3095 = vmatprep.subr.mxu0 0.0
        %3096 = vmatpush2.msra.mxu0 0.0
        %3097 = vmatprep.subr.mxu0 0.0
        %3098 = vmatpush2.msra.mxu0 0.0
        %3099 = vmatprep.subr.mxu0 0.0
        %3100 = vmatpush2.msra.mxu0 0.0
        %3101 = vmatprep.subr.mxu0 0.0
        %3102 = vmatpush2.msra.mxu0 0.0
        %3103 = vmatprep.subr.mxu0 0.0
        %3104 = vmatpush2.msra.mxu0 0.0
        %3105 = vmatprep.subr.mxu0 0.0
        %3106 = vmatpush2.msra.mxu0 0.0
        %3107 = vmatprep.subr.mxu0 0.0
        %3108 = vmatpush2.msra.mxu0 0.0
        %3109 = vmatprep.subr.mxu0 0.0
        %3110 = vmatpush2.msra.mxu0 0.0
        %3111 = vmatprep.subr.mxu0 0.0
        %3112 = vmatpush2.msra.mxu0 0.0
        %3113 = vmatprep.subr.mxu0 0.0
        %3114 = vmatpush2.msra.mxu0 0.0
        %3115 = vmatprep.subr.mxu0 0.0
        %3116 = vmatpush2.msra.mxu0 0.0
        %3117 = vmatprep.subr.mxu0 0.0
        %3118 = vmatpush2.msra.mxu0 0.0
        %3119 = vmatprep.subr.mxu0 0.0
        %3120 = vmatpush2.msra.mxu0 0.0
        %3121 = vmatprep.subr.mxu0 0.0
        %3122 = vmatpush2.msra.mxu0 0.0
        %3123 = vmatprep.mubr.f32.mxu0 0.0
        %v3124 = vand.u32 %v2957, 4294901760
        %3125 = vmatmul.mubr.f32.gmra.mxu0 %v3124
        %v3126 = vpop.f32.mrf.mxu0
        %v3127 = vadd.f32 %v3036, %v3126
        %v3128 = vpop.f32.mrf.mxu0
        %3129 = vmatprep.mubr.f32.mxu0 0.0
        %v3130 = vand.u32 %v2960, 4294901760
        %3131 = vmatmul.mubr.f32.gmra.mxu0 %v3130
        %v3132 = vpop.f32.mrf.mxu0
        %v3133 = vadd.f32 %v3046, %v3132
        %v3134 = vpop.f32.mrf.mxu0
        %3135 = vdwg.mxu0
        %3136 = vmatprep.subr.mxu0 0.0
        %3137 = vmatpush1.msra.mxu0 0.0
        %3138 = vmatprep.subr.mxu0 0.0
        %3139 = vmatpush1.msra.mxu0 0.0
        %3140 = vmatprep.subr.mxu0 0.0
        %3141 = vmatpush1.msra.mxu0 0.0
        %3142 = vmatprep.subr.mxu0 0.0
        %3143 = vmatpush1.msra.mxu0 0.0
        %3144 = vmatprep.subr.mxu0 0.0
        %3145 = vmatpush1.msra.mxu0 0.0
        %3146 = vmatprep.subr.mxu0 0.0
        %3147 = vmatpush1.msra.mxu0 0.0
        %3148 = vmatprep.subr.mxu0 0.0
        %3149 = vmatpush1.msra.mxu0 0.0
        %3150 = vmatprep.subr.mxu0 0.0
        %3151 = vmatpush1.msra.mxu0 0.0
        %3152 = vmatprep.subr.mxu0 0.0
        %3153 = vmatpush1.msra.mxu0 0.0
        %3154 = vmatprep.subr.mxu0 0.0
        %3155 = vmatpush1.msra.mxu0 0.0
        %3156 = vmatprep.subr.mxu0 0.0
        %3157 = vmatpush1.msra.mxu0 0.0
        %3158 = vmatprep.subr.mxu0 0.0
        %3159 = vmatpush1.msra.mxu0 0.0
        %3160 = vmatprep.subr.mxu0 0.0
        %3161 = vmatpush1.msra.mxu0 0.0
        %3162 = vmatprep.subr.mxu0 0.0
        %3163 = vmatpush1.msra.mxu0 0.0
        %3164 = vmatprep.subr.mxu0 0.0
        %v3165 = vand.u32 %v2955, 4294901760
        %v3166 = vsub.f32 %v2955, %v3165
        %3167 = vmatpush1.msra.mxu0 %v3166
        %3168 = vmatprep.subr.mxu0 0.0
        %v3169 = vand.u32 %v2954, 4294901760
        %v3170 = vsub.f32 %v2954, %v3169
        %3171 = vmatpush1.msra.mxu0 %v3170
        %3172 = vmatprep.subr.mxu0 0.0
        %3173 = vmatpush2.msra.mxu0 0.0
        %3174 = vmatprep.subr.mxu0 0.0
        %3175 = vmatpush2.msra.mxu0 0.0
        %3176 = vmatprep.subr.mxu0 0.0
        %3177 = vmatpush2.msra.mxu0 0.0
        %3178 = vmatprep.subr.mxu0 0.0
        %3179 = vmatpush2.msra.mxu0 0.0
        %3180 = vmatprep.subr.mxu0 0.0
        %3181 = vmatpush2.msra.mxu0 0.0
        %3182 = vmatprep.subr.mxu0 0.0
        %3183 = vmatpush2.msra.mxu0 0.0
        %3184 = vmatprep.subr.mxu0 0.0
        %3185 = vmatpush2.msra.mxu0 0.0
        %3186 = vmatprep.subr.mxu0 0.0
        %3187 = vmatpush2.msra.mxu0 0.0
        %3188 = vmatprep.subr.mxu0 0.0
        %3189 = vmatpush2.msra.mxu0 0.0
        %3190 = vmatprep.subr.mxu0 0.0
        %3191 = vmatpush2.msra.mxu0 0.0
        %3192 = vmatprep.subr.mxu0 0.0
        %3193 = vmatpush2.msra.mxu0 0.0
        %3194 = vmatprep.subr.mxu0 0.0
        %3195 = vmatpush2.msra.mxu0 0.0
        %3196 = vmatprep.subr.mxu0 0.0
        %3197 = vmatpush2.msra.mxu0 0.0
        %3198 = vmatprep.subr.mxu0 0.0
        %3199 = vmatpush2.msra.mxu0 0.0
        %3200 = vmatprep.subr.mxu0 0.0
        %3201 = vmatpush2.msra.mxu0 0.0
        %3202 = vmatprep.subr.mxu0 0.0
        %3203 = vmatpush2.msra.mxu0 0.0
        %3204 = vmatprep.mubr.f32.mxu0 0.0
        %v3205 = vand.u32 %v2957, 4294901760
        %v3206 = vsub.f32 %v2957, %v3205
        %3207 = vmatmul.mubr.f32.gmra.mxu0 %v3206
        %v3208 = vpop.f32.mrf.mxu0
        %v3209 = vadd.f32 %v3127, %v3208
        %v3210 = vpop.f32.mrf.mxu0
        %3211 = vmatprep.mubr.f32.mxu0 0.0
        %v3212 = vand.u32 %v2960, 4294901760
        %v3213 = vsub.f32 %v2960, %v3212
        %3214 = vmatmul.mubr.f32.gmra.mxu0 %v3213
        %v3215 = vpop.f32.mrf.mxu0
        %v3216 = vadd.f32 %v3133, %v3215
        %v3217 = vpop.f32.mrf.mxu0
        %3218 = vdwg.mxu0
        %3219 = vmatprep.subr.mxu0 0.0
        %3220 = vmatpush1.msra.mxu0 0.0
        %3221 = vmatprep.subr.mxu0 0.0
        %3222 = vmatpush1.msra.mxu0 0.0
        %3223 = vmatprep.subr.mxu0 0.0
        %3224 = vmatpush1.msra.mxu0 0.0
        %3225 = vmatprep.subr.mxu0 0.0
        %3226 = vmatpush1.msra.mxu0 0.0
        %3227 = vmatprep.subr.mxu0 0.0
        %3228 = vmatpush1.msra.mxu0 0.0
        %3229 = vmatprep.subr.mxu0 0.0
        %3230 = vmatpush1.msra.mxu0 0.0
        %3231 = vmatprep.subr.mxu0 0.0
        %3232 = vmatpush1.msra.mxu0 0.0
        %3233 = vmatprep.subr.mxu0 0.0
        %3234 = vmatpush1.msra.mxu0 0.0
        %3235 = vmatprep.subr.mxu0 0.0
        %3236 = vmatpush1.msra.mxu0 0.0
        %3237 = vmatprep.subr.mxu0 0.0
        %3238 = vmatpush1.msra.mxu0 0.0
        %3239 = vmatprep.subr.mxu0 0.0
        %3240 = vmatpush1.msra.mxu0 0.0
        %3241 = vmatprep.subr.mxu0 0.0
        %3242 = vmatpush1.msra.mxu0 0.0
        %3243 = vmatprep.subr.mxu0 0.0
        %3244 = vmatpush1.msra.mxu0 0.0
        %3245 = vmatprep.subr.mxu0 0.0
        %3246 = vmatpush1.msra.mxu0 0.0
        %3247 = vmatprep.subr.mxu0 0.0
        %v3248 = vand.u32 %v2955, 4294901760
        %3249 = vmatpush1.msra.mxu0 %v3248
        %3250 = vmatprep.subr.mxu0 0.0
        %v3251 = vand.u32 %v2954, 4294901760
        %3252 = vmatpush1.msra.mxu0 %v3251
        %3253 = vmatprep.subr.mxu0 0.0
        %3254 = vmatpush2.msra.mxu0 0.0
        %3255 = vmatprep.subr.mxu0 0.0
        %3256 = vmatpush2.msra.mxu0 0.0
        %3257 = vmatprep.subr.mxu0 0.0
        %3258 = vmatpush2.msra.mxu0 0.0
        %3259 = vmatprep.subr.mxu0 0.0
        %3260 = vmatpush2.msra.mxu0 0.0
        %3261 = vmatprep.subr.mxu0 0.0
        %3262 = vmatpush2.msra.mxu0 0.0
        %3263 = vmatprep.subr.mxu0 0.0
        %3264 = vmatpush2.msra.mxu0 0.0
        %3265 = vmatprep.subr.mxu0 0.0
        %3266 = vmatpush2.msra.mxu0 0.0
        %3267 = vmatprep.subr.mxu0 0.0
        %3268 = vmatpush2.msra.mxu0 0.0
        %3269 = vmatprep.subr.mxu0 0.0
        %3270 = vmatpush2.msra.mxu0 0.0
        %3271 = vmatprep.subr.mxu0 0.0
        %3272 = vmatpush2.msra.mxu0 0.0
        %3273 = vmatprep.subr.mxu0 0.0
        %3274 = vmatpush2.msra.mxu0 0.0
        %3275 = vmatprep.subr.mxu0 0.0
        %3276 = vmatpush2.msra.mxu0 0.0
        %3277 = vmatprep.subr.mxu0 0.0
        %3278 = vmatpush2.msra.mxu0 0.0
        %3279 = vmatprep.subr.mxu0 0.0
        %3280 = vmatpush2.msra.mxu0 0.0
        %3281 = vmatprep.subr.mxu0 0.0
        %3282 = vmatpush2.msra.mxu0 0.0
        %3283 = vmatprep.subr.mxu0 0.0
        %3284 = vmatpush2.msra.mxu0 0.0
        %3285 = vmatprep.mubr.f32.mxu0 0.0
        %v3286 = vand.u32 %v2957, 4294901760
        %v3287 = vsub.f32 %v2957, %v3286
        %v3288 = vand.u32 %v3287, 4294901760
        %3289 = vmatmul.mubr.f32.gmra.mxu0 %v3288
        %v3290 = vpop.f32.mrf.mxu0
        %v3291 = vadd.f32 %v3209, %v3290
        %v3292 = vpop.f32.mrf.mxu0
        %3293 = vmatprep.mubr.f32.mxu0 0.0
        %v3294 = vand.u32 %v2960, 4294901760
        %v3295 = vsub.f32 %v2960, %v3294
        %v3296 = vand.u32 %v3295, 4294901760
        %3297 = vmatmul.mubr.f32.gmra.mxu0 %v3296
        %v3298 = vpop.f32.mrf.mxu0
        %v3299 = vadd.f32 %v3216, %v3298
        %v3300 = vpop.f32.mrf.mxu0
        %3301 = vdwg.mxu0
        %3302 = vmatprep.subr.mxu0 0.0
        %3303 = vmatpush1.msra.mxu0 0.0
        %3304 = vmatprep.subr.mxu0 0.0
        %3305 = vmatpush1.msra.mxu0 0.0
        %3306 = vmatprep.subr.mxu0 0.0
        %3307 = vmatpush1.msra.mxu0 0.0
        %3308 = vmatprep.subr.mxu0 0.0
        %3309 = vmatpush1.msra.mxu0 0.0
        %3310 = vmatprep.subr.mxu0 0.0
        %3311 = vmatpush1.msra.mxu0 0.0
        %3312 = vmatprep.subr.mxu0 0.0
        %3313 = vmatpush1.msra.mxu0 0.0
        %3314 = vmatprep.subr.mxu0 0.0
        %3315 = vmatpush1.msra.mxu0 0.0
        %3316 = vmatprep.subr.mxu0 0.0
        %3317 = vmatpush1.msra.mxu0 0.0
        %3318 = vmatprep.subr.mxu0 0.0
        %3319 = vmatpush1.msra.mxu0 0.0
        %3320 = vmatprep.subr.mxu0 0.0
        %3321 = vmatpush1.msra.mxu0 0.0
        %3322 = vmatprep.subr.mxu0 0.0
        %3323 = vmatpush1.msra.mxu0 0.0
        %3324 = vmatprep.subr.mxu0 0.0
        %3325 = vmatpush1.msra.mxu0 0.0
        %3326 = vmatprep.subr.mxu0 0.0
        %3327 = vmatpush1.msra.mxu0 0.0
        %3328 = vmatprep.subr.mxu0 0.0
        %3329 = vmatpush1.msra.mxu0 0.0
        %3330 = vmatprep.subr.mxu0 0.0
        %v3331 = vand.u32 %v2955, 4294901760
        %v3332 = vsub.f32 %v2955, %v3331
        %v3333 = vand.u32 %v3332, 4294901760
        %3334 = vmatpush1.msra.mxu0 %v3333
        %3335 = vmatprep.subr.mxu0 0.0
        %v3336 = vand.u32 %v2954, 4294901760
        %v3337 = vsub.f32 %v2954, %v3336
        %v3338 = vand.u32 %v3337, 4294901760
        %3339 = vmatpush1.msra.mxu0 %v3338
        %3340 = vmatprep.subr.mxu0 0.0
        %3341 = vmatpush2.msra.mxu0 0.0
        %3342 = vmatprep.subr.mxu0 0.0
        %3343 = vmatpush2.msra.mxu0 0.0
        %3344 = vmatprep.subr.mxu0 0.0
        %3345 = vmatpush2.msra.mxu0 0.0
        %3346 = vmatprep.subr.mxu0 0.0
        %3347 = vmatpush2.msra.mxu0 0.0
        %3348 = vmatprep.subr.mxu0 0.0
        %3349 = vmatpush2.msra.mxu0 0.0
        %3350 = vmatprep.subr.mxu0 0.0
        %3351 = vmatpush2.msra.mxu0 0.0
        %3352 = vmatprep.subr.mxu0 0.0
        %3353 = vmatpush2.msra.mxu0 0.0
        %3354 = vmatprep.subr.mxu0 0.0
        %3355 = vmatpush2.msra.mxu0 0.0
        %3356 = vmatprep.subr.mxu0 0.0
        %3357 = vmatpush2.msra.mxu0 0.0
        %3358 = vmatprep.subr.mxu0 0.0
        %3359 = vmatpush2.msra.mxu0 0.0
        %3360 = vmatprep.subr.mxu0 0.0
        %3361 = vmatpush2.msra.mxu0 0.0
        %3362 = vmatprep.subr.mxu0 0.0
        %3363 = vmatpush2.msra.mxu0 0.0
        %3364 = vmatprep.subr.mxu0 0.0
        %3365 = vmatpush2.msra.mxu0 0.0
        %3366 = vmatprep.subr.mxu0 0.0
        %3367 = vmatpush2.msra.mxu0 0.0
        %3368 = vmatprep.subr.mxu0 0.0
        %3369 = vmatpush2.msra.mxu0 0.0
        %3370 = vmatprep.subr.mxu0 0.0
        %3371 = vmatpush2.msra.mxu0 0.0
        %3372 = vmatprep.mubr.f32.mxu0 0.0
        %v3373 = vand.u32 %v2957, 4294901760
        %3374 = vmatmul.mubr.f32.gmra.mxu0 %v3373
        %v3375 = vpop.f32.mrf.mxu0
        %v3376 = vadd.f32 %v3291, %v3375
        %v3377 = vpop.f32.mrf.mxu0
        %3378 = vmatprep.mubr.f32.mxu0 0.0
        %v3379 = vand.u32 %v2960, 4294901760
        %3380 = vmatmul.mubr.f32.gmra.mxu0 %v3379
        %v3381 = vpop.f32.mrf.mxu0
        %v3382 = vadd.f32 %v3299, %v3381
        %v3383 = vpop.f32.mrf.mxu0
        %3384 = vdwg.mxu0
        %3385 = vmatprep.subr.mxu0 0.0
        %3386 = vmatpush1.msra.mxu0 0.0
        %3387 = vmatprep.subr.mxu0 0.0
        %3388 = vmatpush1.msra.mxu0 0.0
        %3389 = vmatprep.subr.mxu0 0.0
        %3390 = vmatpush1.msra.mxu0 0.0
        %3391 = vmatprep.subr.mxu0 0.0
        %3392 = vmatpush1.msra.mxu0 0.0
        %3393 = vmatprep.subr.mxu0 0.0
        %3394 = vmatpush1.msra.mxu0 0.0
        %3395 = vmatprep.subr.mxu0 0.0
        %3396 = vmatpush1.msra.mxu0 0.0
        %3397 = vmatprep.subr.mxu0 0.0
        %3398 = vmatpush1.msra.mxu0 0.0
        %3399 = vmatprep.subr.mxu0 0.0
        %3400 = vmatpush1.msra.mxu0 0.0
        %3401 = vmatprep.subr.mxu0 0.0
        %3402 = vmatpush1.msra.mxu0 0.0
        %3403 = vmatprep.subr.mxu0 0.0
        %3404 = vmatpush1.msra.mxu0 0.0
        %3405 = vmatprep.subr.mxu0 0.0
        %3406 = vmatpush1.msra.mxu0 0.0
        %3407 = vmatprep.subr.mxu0 0.0
        %3408 = vmatpush1.msra.mxu0 0.0
        %3409 = vmatprep.subr.mxu0 0.0
        %3410 = vmatpush1.msra.mxu0 0.0
        %3411 = vmatprep.subr.mxu0 0.0
        %3412 = vmatpush1.msra.mxu0 0.0
        %3413 = vmatprep.subr.mxu0 0.0
        %v3414 = vand.u32 %v2955, 4294901760
        %3415 = vmatpush1.msra.mxu0 %v3414
        %3416 = vmatprep.subr.mxu0 0.0
        %v3417 = vand.u32 %v2954, 4294901760
        %3418 = vmatpush1.msra.mxu0 %v3417
        %3419 = vmatprep.subr.mxu0 0.0
        %3420 = vmatpush2.msra.mxu0 0.0
        %3421 = vmatprep.subr.mxu0 0.0
        %3422 = vmatpush2.msra.mxu0 0.0
        %3423 = vmatprep.subr.mxu0 0.0
        %3424 = vmatpush2.msra.mxu0 0.0
        %3425 = vmatprep.subr.mxu0 0.0
        %3426 = vmatpush2.msra.mxu0 0.0
        %3427 = vmatprep.subr.mxu0 0.0
        %3428 = vmatpush2.msra.mxu0 0.0
        %3429 = vmatprep.subr.mxu0 0.0
        %3430 = vmatpush2.msra.mxu0 0.0
        %3431 = vmatprep.subr.mxu0 0.0
        %3432 = vmatpush2.msra.mxu0 0.0
        %3433 = vmatprep.subr.mxu0 0.0
        %3434 = vmatpush2.msra.mxu0 0.0
        %3435 = vmatprep.subr.mxu0 0.0
        %3436 = vmatpush2.msra.mxu0 0.0
        %3437 = vmatprep.subr.mxu0 0.0
        %3438 = vmatpush2.msra.mxu0 0.0
        %3439 = vmatprep.subr.mxu0 0.0
        %3440 = vmatpush2.msra.mxu0 0.0
        %3441 = vmatprep.subr.mxu0 0.0
        %3442 = vmatpush2.msra.mxu0 0.0
        %3443 = vmatprep.subr.mxu0 0.0
        %3444 = vmatpush2.msra.mxu0 0.0
        %3445 = vmatprep.subr.mxu0 0.0
        %3446 = vmatpush2.msra.mxu0 0.0
        %3447 = vmatprep.subr.mxu0 0.0
        %3448 = vmatpush2.msra.mxu0 0.0
        %3449 = vmatprep.subr.mxu0 0.0
        %3450 = vmatpush2.msra.mxu0 0.0
        %3451 = vmatprep.mubr.f32.mxu0 0.0
        %v3452 = vand.u32 %v2957, 4294901760
        %3453 = vmatmul.mubr.f32.gmra.mxu0 %v3452
        %v3454 = vpop.f32.mrf.mxu0
        %v3455 = vadd.f32 %v3376, %v3454
        %v3456 = vpop.f32.mrf.mxu0
        %3457 = vmatprep.mubr.f32.mxu0 0.0
        %v3458 = vand.u32 %v2960, 4294901760
        %3459 = vmatmul.mubr.f32.gmra.mxu0 %v3458
        %v3460 = vpop.f32.mrf.mxu0
        %v3461 = vadd.f32 %v3382, %v3460
        %v3462 = vpop.f32.mrf.mxu0
        %3463 = vdwg.mxu0
        %v3464 = vld [vmem:[%s2] sm:$0xff]
        %v3465 = vld [vmem:[%s2 + $0x8] sm:$0xff]
        %v3466 = vsub.f32 0.0, %v3464
        %v3467 = vsub.f32 0.0, %v3465
        %v3468 = vld [vmem:[#allocation16] sm:$0x1]
        %3470 = vset.pattern.permute.xlu0 0
        %3471 = vperm.xlu0 %3470, %v3466
        %v3472 = vpop.permute.xlu0 %3471
        %3475 = vset.pattern.permute.xlu0 0
        %3476 = vperm.xlu0 %3475, %v3467
        %v3477 = vpop.permute.xlu0 %3476
        %v3480 = vlaneseq
        %v3481 = vshrl.u32 %v3480, 7
        %v3482 = vsub.s32 0, %v3481
        %v3483 = vrot.slane %v3468, %v3482
        %v3485 = vmul.f32 %v3472, %v3483
        %v3486 = vmul.f32 %v3477, %v3483
        %v3487 = vmul.f32 %v3485, 1.442695
        %v3488 = vpow.pop %v3487
        %v3489 = vmul.f32 %v3486, 1.442695
        %v3490 = vpow.pop %v3489
        %v3491 = vmul.f32 %v3455, %v3488
        %v3492 = vmul.f32 %v3461, %v3490
        %v3493 = vld [vmem:[%s771] sm:$0xff]
        %v3494 = vld [vmem:[%s771 + $0x8] sm:$0xff]
        %v3495 = vld [vmem:[#allocation17] sm:$0xff]
        %v3496 = vld [vmem:[#allocation17 + $0x8] sm:$0xff]
        %v3497 = vld [vmem:[#allocation17 + $0x10] sm:$0xff]
        %v3498 = vld [vmem:[#allocation17 + $0x18] sm:$0xff]
        %v3499 = vld [vmem:[#allocation19] sm:$0x1]
        %v3501 = vlaneseq
        %v3502 = vshrl.u32 %v3501, 7
        %v3503 = vsub.s32 0, %v3502
        %v3504 = vrot.slane %v3499, %v3503
        %vm3506 = vcmask 261120
        %v3508 = vsel %vm3506, %v3493, 0
        %v3511 = vsel %vm3506, %v3494, 0
        %3513 = vmatprep.subr.mxu0 0.0
        %3514 = vmatpush1.msra.mxu0 0.0
        %3515 = vmatprep.subr.mxu0 0.0
        %3516 = vmatpush1.msra.mxu0 0.0
        %3517 = vmatprep.subr.mxu0 0.0
        %3518 = vmatpush1.msra.mxu0 0.0
        %3519 = vmatprep.subr.mxu0 0.0
        %3520 = vmatpush1.msra.mxu0 0.0
        %3521 = vmatprep.subr.mxu0 0.0
        %3522 = vmatpush1.msra.mxu0 0.0
        %3523 = vmatprep.subr.mxu0 0.0
        %3524 = vmatpush1.msra.mxu0 0.0
        %3525 = vmatprep.subr.mxu0 0.0
        %3526 = vmatpush1.msra.mxu0 0.0
        %3527 = vmatprep.subr.mxu0 0.0
        %3528 = vmatpush1.msra.mxu0 0.0
        %3529 = vmatprep.subr.mxu0 0.0
        %3530 = vmatpush1.msra.mxu0 0.0
        %3531 = vmatprep.subr.mxu0 0.0
        %3532 = vmatpush1.msra.mxu0 0.0
        %3533 = vmatprep.subr.mxu0 0.0
        %3534 = vmatpush1.msra.mxu0 0.0
        %3535 = vmatprep.subr.mxu0 0.0
        %3536 = vmatpush1.msra.mxu0 0.0
        %3537 = vmatprep.subr.mxu0 0.0
        %v3538 = vand.u32 %v3498, 4294901760
        %3539 = vmatpush1.msra.mxu0 %v3538
        %3540 = vmatprep.subr.mxu0 0.0
        %v3541 = vand.u32 %v3497, 4294901760
        %3542 = vmatpush1.msra.mxu0 %v3541
        %3543 = vmatprep.subr.mxu0 0.0
        %v3544 = vand.u32 %v3496, 4294901760
        %3545 = vmatpush1.msra.mxu0 %v3544
        %3546 = vmatprep.subr.mxu0 0.0
        %v3547 = vand.u32 %v3495, 4294901760
        %3548 = vmatpush1.msra.mxu0 %v3547
        %3549 = vmatprep.subr.mxu0 0.0
        %3550 = vmatpush2.msra.mxu0 0.0
        %3551 = vmatprep.subr.mxu0 0.0
        %3552 = vmatpush2.msra.mxu0 0.0
        %3553 = vmatprep.subr.mxu0 0.0
        %3554 = vmatpush2.msra.mxu0 0.0
        %3555 = vmatprep.subr.mxu0 0.0
        %3556 = vmatpush2.msra.mxu0 0.0
        %3557 = vmatprep.subr.mxu0 0.0
        %3558 = vmatpush2.msra.mxu0 0.0
        %3559 = vmatprep.subr.mxu0 0.0
        %3560 = vmatpush2.msra.mxu0 0.0
        %3561 = vmatprep.subr.mxu0 0.0
        %3562 = vmatpush2.msra.mxu0 0.0
        %3563 = vmatprep.subr.mxu0 0.0
        %3564 = vmatpush2.msra.mxu0 0.0
        %3565 = vmatprep.subr.mxu0 0.0
        %3566 = vmatpush2.msra.mxu0 0.0
        %3567 = vmatprep.subr.mxu0 0.0
        %3568 = vmatpush2.msra.mxu0 0.0
        %3569 = vmatprep.subr.mxu0 0.0
        %3570 = vmatpush2.msra.mxu0 0.0
        %3571 = vmatprep.subr.mxu0 0.0
        %3572 = vmatpush2.msra.mxu0 0.0
        %3573 = vmatprep.subr.mxu0 0.0
        %3574 = vmatpush2.msra.mxu0 0.0
        %3575 = vmatprep.subr.mxu0 0.0
        %3576 = vmatpush2.msra.mxu0 0.0
        %3577 = vmatprep.subr.mxu0 0.0
        %3578 = vmatpush2.msra.mxu0 0.0
        %3579 = vmatprep.subr.mxu0 0.0
        %3580 = vmatpush2.msra.mxu0 0.0
        %3581 = vmatprep.mubr.f32.mxu0 0.0
        %v3582 = vand.u32 %v3508, 4294901760
        %v3583 = vsub.f32 %v3508, %v3582
        %v3584 = vand.u32 %v3583, 4294901760
        %v3585 = vsub.f32 %v3583, %v3584
        %v3586 = vand.u32 %v3585, 4294901760
        %3587 = vmatmul.mubr.f32.gmra.mxu0 %v3586
        %v3588 = vpop.f32.mrf.mxu0
        %v3589 = vadd.f32 %v3504, %v3588
        %v3590 = vpop.f32.mrf.mxu0
        %3591 = vmatprep.mubr.f32.mxu0 0.0
        %v3592 = vand.u32 %v3511, 4294901760
        %v3593 = vsub.f32 %v3511, %v3592
        %v3594 = vand.u32 %v3593, 4294901760
        %v3595 = vsub.f32 %v3593, %v3594
        %v3596 = vand.u32 %v3595, 4294901760
        %3597 = vmatmul.mubr.f32.gmra.mxu0 %v3596
        %v3598 = vpop.f32.mrf.mxu0
        %v3599 = vadd.f32 %v3504, %v3598
        %v3600 = vpop.f32.mrf.mxu0
        %3601 = vdwg.mxu0
        %3602 = vmatprep.subr.mxu0 0.0
        %3603 = vmatpush1.msra.mxu0 0.0
        %3604 = vmatprep.subr.mxu0 0.0
        %3605 = vmatpush1.msra.mxu0 0.0
        %3606 = vmatprep.subr.mxu0 0.0
        %3607 = vmatpush1.msra.mxu0 0.0
        %3608 = vmatprep.subr.mxu0 0.0
        %3609 = vmatpush1.msra.mxu0 0.0
        %3610 = vmatprep.subr.mxu0 0.0
        %3611 = vmatpush1.msra.mxu0 0.0
        %3612 = vmatprep.subr.mxu0 0.0
        %3613 = vmatpush1.msra.mxu0 0.0
        %3614 = vmatprep.subr.mxu0 0.0
        %3615 = vmatpush1.msra.mxu0 0.0
        %3616 = vmatprep.subr.mxu0 0.0
        %3617 = vmatpush1.msra.mxu0 0.0
        %3618 = vmatprep.subr.mxu0 0.0
        %3619 = vmatpush1.msra.mxu0 0.0
        %3620 = vmatprep.subr.mxu0 0.0
        %3621 = vmatpush1.msra.mxu0 0.0
        %3622 = vmatprep.subr.mxu0 0.0
        %3623 = vmatpush1.msra.mxu0 0.0
        %3624 = vmatprep.subr.mxu0 0.0
        %3625 = vmatpush1.msra.mxu0 0.0
        %3626 = vmatprep.subr.mxu0 0.0
        %v3627 = vand.u32 %v3498, 4294901760
        %v3628 = vsub.f32 %v3498, %v3627
        %v3629 = vand.u32 %v3628, 4294901760
        %v3630 = vsub.f32 %v3628, %v3629
        %v3631 = vand.u32 %v3630, 4294901760
        %3632 = vmatpush1.msra.mxu0 %v3631
        %3633 = vmatprep.subr.mxu0 0.0
        %v3634 = vand.u32 %v3497, 4294901760
        %v3635 = vsub.f32 %v3497, %v3634
        %v3636 = vand.u32 %v3635, 4294901760
        %v3637 = vsub.f32 %v3635, %v3636
        %v3638 = vand.u32 %v3637, 4294901760
        %3639 = vmatpush1.msra.mxu0 %v3638
        %3640 = vmatprep.subr.mxu0 0.0
        %v3641 = vand.u32 %v3496, 4294901760
        %v3642 = vsub.f32 %v3496, %v3641
        %v3643 = vand.u32 %v3642, 4294901760
        %v3644 = vsub.f32 %v3642, %v3643
        %v3645 = vand.u32 %v3644, 4294901760
        %3646 = vmatpush1.msra.mxu0 %v3645
        %3647 = vmatprep.subr.mxu0 0.0
        %v3648 = vand.u32 %v3495, 4294901760
        %v3649 = vsub.f32 %v3495, %v3648
        %v3650 = vand.u32 %v3649, 4294901760
        %v3651 = vsub.f32 %v3649, %v3650
        %v3652 = vand.u32 %v3651, 4294901760
        %3653 = vmatpush1.msra.mxu0 %v3652
        %3654 = vmatprep.subr.mxu0 0.0
        %3655 = vmatpush2.msra.mxu0 0.0
        %3656 = vmatprep.subr.mxu0 0.0
        %3657 = vmatpush2.msra.mxu0 0.0
        %3658 = vmatprep.subr.mxu0 0.0
        %3659 = vmatpush2.msra.mxu0 0.0
        %3660 = vmatprep.subr.mxu0 0.0
        %3661 = vmatpush2.msra.mxu0 0.0
        %3662 = vmatprep.subr.mxu0 0.0
        %3663 = vmatpush2.msra.mxu0 0.0
        %3664 = vmatprep.subr.mxu0 0.0
        %3665 = vmatpush2.msra.mxu0 0.0
        %3666 = vmatprep.subr.mxu0 0.0
        %3667 = vmatpush2.msra.mxu0 0.0
        %3668 = vmatprep.subr.mxu0 0.0
        %3669 = vmatpush2.msra.mxu0 0.0
        %3670 = vmatprep.subr.mxu0 0.0
        %3671 = vmatpush2.msra.mxu0 0.0
        %3672 = vmatprep.subr.mxu0 0.0
        %3673 = vmatpush2.msra.mxu0 0.0
        %3674 = vmatprep.subr.mxu0 0.0
        %3675 = vmatpush2.msra.mxu0 0.0
        %3676 = vmatprep.subr.mxu0 0.0
        %3677 = vmatpush2.msra.mxu0 0.0
        %3678 = vmatprep.subr.mxu0 0.0
        %3679 = vmatpush2.msra.mxu0 0.0
        %3680 = vmatprep.subr.mxu0 0.0
        %3681 = vmatpush2.msra.mxu0 0.0
        %3682 = vmatprep.subr.mxu0 0.0
        %3683 = vmatpush2.msra.mxu0 0.0
        %3684 = vmatprep.subr.mxu0 0.0
        %3685 = vmatpush2.msra.mxu0 0.0
        %3686 = vmatprep.mubr.f32.mxu0 0.0
        %v3687 = vand.u32 %v3508, 4294901760
        %3688 = vmatmul.mubr.f32.gmra.mxu0 %v3687
        %v3689 = vpop.f32.mrf.mxu0
        %v3690 = vadd.f32 %v3589, %v3689
        %v3691 = vpop.f32.mrf.mxu0
        %3692 = vmatprep.mubr.f32.mxu0 0.0
        %v3693 = vand.u32 %v3511, 4294901760
        %3694 = vmatmul.mubr.f32.gmra.mxu0 %v3693
        %v3695 = vpop.f32.mrf.mxu0
        %v3696 = vadd.f32 %v3599, %v3695
        %v3697 = vpop.f32.mrf.mxu0
        %3698 = vdwg.mxu0
        %3699 = vmatprep.subr.mxu0 0.0
        %3700 = vmatpush1.msra.mxu0 0.0
        %3701 = vmatprep.subr.mxu0 0.0
        %3702 = vmatpush1.msra.mxu0 0.0
        %3703 = vmatprep.subr.mxu0 0.0
        %3704 = vmatpush1.msra.mxu0 0.0
        %3705 = vmatprep.subr.mxu0 0.0
        %3706 = vmatpush1.msra.mxu0 0.0
        %3707 = vmatprep.subr.mxu0 0.0
        %3708 = vmatpush1.msra.mxu0 0.0
        %3709 = vmatprep.subr.mxu0 0.0
        %3710 = vmatpush1.msra.mxu0 0.0
        %3711 = vmatprep.subr.mxu0 0.0
        %3712 = vmatpush1.msra.mxu0 0.0
        %3713 = vmatprep.subr.mxu0 0.0
        %3714 = vmatpush1.msra.mxu0 0.0
        %3715 = vmatprep.subr.mxu0 0.0
        %3716 = vmatpush1.msra.mxu0 0.0
        %3717 = vmatprep.subr.mxu0 0.0
        %3718 = vmatpush1.msra.mxu0 0.0
        %3719 = vmatprep.subr.mxu0 0.0
        %3720 = vmatpush1.msra.mxu0 0.0
        %3721 = vmatprep.subr.mxu0 0.0
        %3722 = vmatpush1.msra.mxu0 0.0
        %3723 = vmatprep.subr.mxu0 0.0
        %v3724 = vand.u32 %v3498, 4294901760
        %v3725 = vsub.f32 %v3498, %v3724
        %3726 = vmatpush1.msra.mxu0 %v3725
        %3727 = vmatprep.subr.mxu0 0.0
        %v3728 = vand.u32 %v3497, 4294901760
        %v3729 = vsub.f32 %v3497, %v3728
        %3730 = vmatpush1.msra.mxu0 %v3729
        %3731 = vmatprep.subr.mxu0 0.0
        %v3732 = vand.u32 %v3496, 4294901760
        %v3733 = vsub.f32 %v3496, %v3732
        %3734 = vmatpush1.msra.mxu0 %v3733
        %3735 = vmatprep.subr.mxu0 0.0
        %v3736 = vand.u32 %v3495, 4294901760
        %v3737 = vsub.f32 %v3495, %v3736
        %3738 = vmatpush1.msra.mxu0 %v3737
        %3739 = vmatprep.subr.mxu0 0.0
        %3740 = vmatpush2.msra.mxu0 0.0
        %3741 = vmatprep.subr.mxu0 0.0
        %3742 = vmatpush2.msra.mxu0 0.0
        %3743 = vmatprep.subr.mxu0 0.0
        %3744 = vmatpush2.msra.mxu0 0.0
        %3745 = vmatprep.subr.mxu0 0.0
        %3746 = vmatpush2.msra.mxu0 0.0
        %3747 = vmatprep.subr.mxu0 0.0
        %3748 = vmatpush2.msra.mxu0 0.0
        %3749 = vmatprep.subr.mxu0 0.0
        %3750 = vmatpush2.msra.mxu0 0.0
        %3751 = vmatprep.subr.mxu0 0.0
        %3752 = vmatpush2.msra.mxu0 0.0
        %3753 = vmatprep.subr.mxu0 0.0
        %3754 = vmatpush2.msra.mxu0 0.0
        %3755 = vmatprep.subr.mxu0 0.0
        %3756 = vmatpush2.msra.mxu0 0.0
        %3757 = vmatprep.subr.mxu0 0.0
        %3758 = vmatpush2.msra.mxu0 0.0
        %3759 = vmatprep.subr.mxu0 0.0
        %3760 = vmatpush2.msra.mxu0 0.0
        %3761 = vmatprep.subr.mxu0 0.0
        %3762 = vmatpush2.msra.mxu0 0.0
        %3763 = vmatprep.subr.mxu0 0.0
        %3764 = vmatpush2.msra.mxu0 0.0
        %3765 = vmatprep.subr.mxu0 0.0
        %3766 = vmatpush2.msra.mxu0 0.0
        %3767 = vmatprep.subr.mxu0 0.0
        %3768 = vmatpush2.msra.mxu0 0.0
        %3769 = vmatprep.subr.mxu0 0.0
        %3770 = vmatpush2.msra.mxu0 0.0
        %3771 = vmatprep.mubr.f32.mxu0 0.0
        %v3772 = vand.u32 %v3508, 4294901760
        %v3773 = vsub.f32 %v3508, %v3772
        %3774 = vmatmul.mubr.f32.gmra.mxu0 %v3773
        %v3775 = vpop.f32.mrf.mxu0
        %v3776 = vadd.f32 %v3690, %v3775
        %v3777 = vpop.f32.mrf.mxu0
        %3778 = vmatprep.mubr.f32.mxu0 0.0
        %v3779 = vand.u32 %v3511, 4294901760
        %v3780 = vsub.f32 %v3511, %v3779
        %3781 = vmatmul.mubr.f32.gmra.mxu0 %v3780
        %v3782 = vpop.f32.mrf.mxu0
        %v3783 = vadd.f32 %v3696, %v3782
        %v3784 = vpop.f32.mrf.mxu0
        %3785 = vdwg.mxu0
        %3786 = vmatprep.subr.mxu0 0.0
        %3787 = vmatpush1.msra.mxu0 0.0
        %3788 = vmatprep.subr.mxu0 0.0
        %3789 = vmatpush1.msra.mxu0 0.0
        %3790 = vmatprep.subr.mxu0 0.0
        %3791 = vmatpush1.msra.mxu0 0.0
        %3792 = vmatprep.subr.mxu0 0.0
        %3793 = vmatpush1.msra.mxu0 0.0
        %3794 = vmatprep.subr.mxu0 0.0
        %3795 = vmatpush1.msra.mxu0 0.0
        %3796 = vmatprep.subr.mxu0 0.0
        %3797 = vmatpush1.msra.mxu0 0.0
        %3798 = vmatprep.subr.mxu0 0.0
        %3799 = vmatpush1.msra.mxu0 0.0
        %3800 = vmatprep.subr.mxu0 0.0
        %3801 = vmatpush1.msra.mxu0 0.0
        %3802 = vmatprep.subr.mxu0 0.0
        %3803 = vmatpush1.msra.mxu0 0.0
        %3804 = vmatprep.subr.mxu0 0.0
        %3805 = vmatpush1.msra.mxu0 0.0
        %3806 = vmatprep.subr.mxu0 0.0
        %3807 = vmatpush1.msra.mxu0 0.0
        %3808 = vmatprep.subr.mxu0 0.0
        %3809 = vmatpush1.msra.mxu0 0.0
        %3810 = vmatprep.subr.mxu0 0.0
        %v3811 = vand.u32 %v3498, 4294901760
        %3812 = vmatpush1.msra.mxu0 %v3811
        %3813 = vmatprep.subr.mxu0 0.0
        %v3814 = vand.u32 %v3497, 4294901760
        %3815 = vmatpush1.msra.mxu0 %v3814
        %3816 = vmatprep.subr.mxu0 0.0
        %v3817 = vand.u32 %v3496, 4294901760
        %3818 = vmatpush1.msra.mxu0 %v3817
        %3819 = vmatprep.subr.mxu0 0.0
        %v3820 = vand.u32 %v3495, 4294901760
        %3821 = vmatpush1.msra.mxu0 %v3820
        %3822 = vmatprep.subr.mxu0 0.0
        %3823 = vmatpush2.msra.mxu0 0.0
        %3824 = vmatprep.subr.mxu0 0.0
        %3825 = vmatpush2.msra.mxu0 0.0
        %3826 = vmatprep.subr.mxu0 0.0
        %3827 = vmatpush2.msra.mxu0 0.0
        %3828 = vmatprep.subr.mxu0 0.0
        %3829 = vmatpush2.msra.mxu0 0.0
        %3830 = vmatprep.subr.mxu0 0.0
        %3831 = vmatpush2.msra.mxu0 0.0
        %3832 = vmatprep.subr.mxu0 0.0
        %3833 = vmatpush2.msra.mxu0 0.0
        %3834 = vmatprep.subr.mxu0 0.0
        %3835 = vmatpush2.msra.mxu0 0.0
        %3836 = vmatprep.subr.mxu0 0.0
        %3837 = vmatpush2.msra.mxu0 0.0
        %3838 = vmatprep.subr.mxu0 0.0
        %3839 = vmatpush2.msra.mxu0 0.0
        %3840 = vmatprep.subr.mxu0 0.0
        %3841 = vmatpush2.msra.mxu0 0.0
        %3842 = vmatprep.subr.mxu0 0.0
        %3843 = vmatpush2.msra.mxu0 0.0
        %3844 = vmatprep.subr.mxu0 0.0
        %3845 = vmatpush2.msra.mxu0 0.0
        %3846 = vmatprep.subr.mxu0 0.0
        %3847 = vmatpush2.msra.mxu0 0.0
        %3848 = vmatprep.subr.mxu0 0.0
        %3849 = vmatpush2.msra.mxu0 0.0
        %3850 = vmatprep.subr.mxu0 0.0
        %3851 = vmatpush2.msra.mxu0 0.0
        %3852 = vmatprep.subr.mxu0 0.0
        %3853 = vmatpush2.msra.mxu0 0.0
        %3854 = vmatprep.mubr.f32.mxu0 0.0
        %v3855 = vand.u32 %v3508, 4294901760
        %v3856 = vsub.f32 %v3508, %v3855
        %v3857 = vand.u32 %v3856, 4294901760
        %3858 = vmatmul.mubr.f32.gmra.mxu0 %v3857
        %v3859 = vpop.f32.mrf.mxu0
        %v3860 = vadd.f32 %v3776, %v3859
        %v3861 = vpop.f32.mrf.mxu0
        %3862 = vmatprep.mubr.f32.mxu0 0.0
        %v3863 = vand.u32 %v3511, 4294901760
        %v3864 = vsub.f32 %v3511, %v3863
        %v3865 = vand.u32 %v3864, 4294901760
        %3866 = vmatmul.mubr.f32.gmra.mxu0 %v3865
        %v3867 = vpop.f32.mrf.mxu0
        %v3868 = vadd.f32 %v3783, %v3867
        %v3869 = vpop.f32.mrf.mxu0
        %3870 = vdwg.mxu0
        %3871 = vmatprep.subr.mxu0 0.0
        %3872 = vmatpush1.msra.mxu0 0.0
        %3873 = vmatprep.subr.mxu0 0.0
        %3874 = vmatpush1.msra.mxu0 0.0
        %3875 = vmatprep.subr.mxu0 0.0
        %3876 = vmatpush1.msra.mxu0 0.0
        %3877 = vmatprep.subr.mxu0 0.0
        %3878 = vmatpush1.msra.mxu0 0.0
        %3879 = vmatprep.subr.mxu0 0.0
        %3880 = vmatpush1.msra.mxu0 0.0
        %3881 = vmatprep.subr.mxu0 0.0
        %3882 = vmatpush1.msra.mxu0 0.0
        %3883 = vmatprep.subr.mxu0 0.0
        %3884 = vmatpush1.msra.mxu0 0.0
        %3885 = vmatprep.subr.mxu0 0.0
        %3886 = vmatpush1.msra.mxu0 0.0
        %3887 = vmatprep.subr.mxu0 0.0
        %3888 = vmatpush1.msra.mxu0 0.0
        %3889 = vmatprep.subr.mxu0 0.0
        %3890 = vmatpush1.msra.mxu0 0.0
        %3891 = vmatprep.subr.mxu0 0.0
        %3892 = vmatpush1.msra.mxu0 0.0
        %3893 = vmatprep.subr.mxu0 0.0
        %3894 = vmatpush1.msra.mxu0 0.0
        %3895 = vmatprep.subr.mxu0 0.0
        %v3896 = vand.u32 %v3498, 4294901760
        %v3897 = vsub.f32 %v3498, %v3896
        %v3898 = vand.u32 %v3897, 4294901760
        %3899 = vmatpush1.msra.mxu0 %v3898
        %3900 = vmatprep.subr.mxu0 0.0
        %v3901 = vand.u32 %v3497, 4294901760
        %v3902 = vsub.f32 %v3497, %v3901
        %v3903 = vand.u32 %v3902, 4294901760
        %3904 = vmatpush1.msra.mxu0 %v3903
        %3905 = vmatprep.subr.mxu0 0.0
        %v3906 = vand.u32 %v3496, 4294901760
        %v3907 = vsub.f32 %v3496, %v3906
        %v3908 = vand.u32 %v3907, 4294901760
        %3909 = vmatpush1.msra.mxu0 %v3908
        %3910 = vmatprep.subr.mxu0 0.0
        %v3911 = vand.u32 %v3495, 4294901760
        %v3912 = vsub.f32 %v3495, %v3911
        %v3913 = vand.u32 %v3912, 4294901760
        %3914 = vmatpush1.msra.mxu0 %v3913
        %3915 = vmatprep.subr.mxu0 0.0
        %3916 = vmatpush2.msra.mxu0 0.0
        %3917 = vmatprep.subr.mxu0 0.0
        %3918 = vmatpush2.msra.mxu0 0.0
        %3919 = vmatprep.subr.mxu0 0.0
        %3920 = vmatpush2.msra.mxu0 0.0
        %3921 = vmatprep.subr.mxu0 0.0
        %3922 = vmatpush2.msra.mxu0 0.0
        %3923 = vmatprep.subr.mxu0 0.0
        %3924 = vmatpush2.msra.mxu0 0.0
        %3925 = vmatprep.subr.mxu0 0.0
        %3926 = vmatpush2.msra.mxu0 0.0
        %3927 = vmatprep.subr.mxu0 0.0
        %3928 = vmatpush2.msra.mxu0 0.0
        %3929 = vmatprep.subr.mxu0 0.0
        %3930 = vmatpush2.msra.mxu0 0.0
        %3931 = vmatprep.subr.mxu0 0.0
        %3932 = vmatpush2.msra.mxu0 0.0
        %3933 = vmatprep.subr.mxu0 0.0
        %3934 = vmatpush2.msra.mxu0 0.0
        %3935 = vmatprep.subr.mxu0 0.0
        %3936 = vmatpush2.msra.mxu0 0.0
        %3937 = vmatprep.subr.mxu0 0.0
        %3938 = vmatpush2.msra.mxu0 0.0
        %3939 = vmatprep.subr.mxu0 0.0
        %3940 = vmatpush2.msra.mxu0 0.0
        %3941 = vmatprep.subr.mxu0 0.0
        %3942 = vmatpush2.msra.mxu0 0.0
        %3943 = vmatprep.subr.mxu0 0.0
        %3944 = vmatpush2.msra.mxu0 0.0
        %3945 = vmatprep.subr.mxu0 0.0
        %3946 = vmatpush2.msra.mxu0 0.0
        %3947 = vmatprep.mubr.f32.mxu0 0.0
        %v3948 = vand.u32 %v3508, 4294901760
        %3949 = vmatmul.mubr.f32.gmra.mxu0 %v3948
        %v3950 = vpop.f32.mrf.mxu0
        %v3951 = vadd.f32 %v3860, %v3950
        %v3952 = vpop.f32.mrf.mxu0
        %3953 = vmatprep.mubr.f32.mxu0 0.0
        %v3954 = vand.u32 %v3511, 4294901760
        %3955 = vmatmul.mubr.f32.gmra.mxu0 %v3954
        %v3956 = vpop.f32.mrf.mxu0
        %v3957 = vadd.f32 %v3868, %v3956
        %v3958 = vpop.f32.mrf.mxu0
        %3959 = vdwg.mxu0
        %3960 = vmatprep.subr.mxu0 0.0
        %3961 = vmatpush1.msra.mxu0 0.0
        %3962 = vmatprep.subr.mxu0 0.0
        %3963 = vmatpush1.msra.mxu0 0.0
        %3964 = vmatprep.subr.mxu0 0.0
        %3965 = vmatpush1.msra.mxu0 0.0
        %3966 = vmatprep.subr.mxu0 0.0
        %3967 = vmatpush1.msra.mxu0 0.0
        %3968 = vmatprep.subr.mxu0 0.0
        %3969 = vmatpush1.msra.mxu0 0.0
        %3970 = vmatprep.subr.mxu0 0.0
        %3971 = vmatpush1.msra.mxu0 0.0
        %3972 = vmatprep.subr.mxu0 0.0
        %3973 = vmatpush1.msra.mxu0 0.0
        %3974 = vmatprep.subr.mxu0 0.0
        %3975 = vmatpush1.msra.mxu0 0.0
        %3976 = vmatprep.subr.mxu0 0.0
        %3977 = vmatpush1.msra.mxu0 0.0
        %3978 = vmatprep.subr.mxu0 0.0
        %3979 = vmatpush1.msra.mxu0 0.0
        %3980 = vmatprep.subr.mxu0 0.0
        %3981 = vmatpush1.msra.mxu0 0.0
        %3982 = vmatprep.subr.mxu0 0.0
        %3983 = vmatpush1.msra.mxu0 0.0
        %3984 = vmatprep.subr.mxu0 0.0
        %v3985 = vand.u32 %v3498, 4294901760
        %3986 = vmatpush1.msra.mxu0 %v3985
        %3987 = vmatprep.subr.mxu0 0.0
        %v3988 = vand.u32 %v3497, 4294901760
        %3989 = vmatpush1.msra.mxu0 %v3988
        %3990 = vmatprep.subr.mxu0 0.0
        %v3991 = vand.u32 %v3496, 4294901760
        %3992 = vmatpush1.msra.mxu0 %v3991
        %3993 = vmatprep.subr.mxu0 0.0
        %v3994 = vand.u32 %v3495, 4294901760
        %3995 = vmatpush1.msra.mxu0 %v3994
        %3996 = vmatprep.subr.mxu0 0.0
        %3997 = vmatpush2.msra.mxu0 0.0
        %3998 = vmatprep.subr.mxu0 0.0
        %3999 = vmatpush2.msra.mxu0 0.0
        %4000 = vmatprep.subr.mxu0 0.0
        %4001 = vmatpush2.msra.mxu0 0.0
        %4002 = vmatprep.subr.mxu0 0.0
        %4003 = vmatpush2.msra.mxu0 0.0
        %4004 = vmatprep.subr.mxu0 0.0
        %4005 = vmatpush2.msra.mxu0 0.0
        %4006 = vmatprep.subr.mxu0 0.0
        %4007 = vmatpush2.msra.mxu0 0.0
        %4008 = vmatprep.subr.mxu0 0.0
        %4009 = vmatpush2.msra.mxu0 0.0
        %4010 = vmatprep.subr.mxu0 0.0
        %4011 = vmatpush2.msra.mxu0 0.0
        %4012 = vmatprep.subr.mxu0 0.0
        %4013 = vmatpush2.msra.mxu0 0.0
        %4014 = vmatprep.subr.mxu0 0.0
        %4015 = vmatpush2.msra.mxu0 0.0
        %4016 = vmatprep.subr.mxu0 0.0
        %4017 = vmatpush2.msra.mxu0 0.0
        %4018 = vmatprep.subr.mxu0 0.0
        %4019 = vmatpush2.msra.mxu0 0.0
        %4020 = vmatprep.subr.mxu0 0.0
        %4021 = vmatpush2.msra.mxu0 0.0
        %4022 = vmatprep.subr.mxu0 0.0
        %4023 = vmatpush2.msra.mxu0 0.0
        %4024 = vmatprep.subr.mxu0 0.0
        %4025 = vmatpush2.msra.mxu0 0.0
        %4026 = vmatprep.subr.mxu0 0.0
        %4027 = vmatpush2.msra.mxu0 0.0
        %4028 = vmatprep.mubr.f32.mxu0 0.0
        %v4029 = vand.u32 %v3508, 4294901760
        %4030 = vmatmul.mubr.f32.gmra.mxu0 %v4029
        %v4031 = vpop.f32.mrf.mxu0
        %v4032 = vadd.f32 %v3951, %v4031
        %v4033 = vpop.f32.mrf.mxu0
        %4034 = vmatprep.mubr.f32.mxu0 0.0
        %v4035 = vand.u32 %v3511, 4294901760
        %4036 = vmatmul.mubr.f32.gmra.mxu0 %v4035
        %v4037 = vpop.f32.mrf.mxu0
        %v4038 = vadd.f32 %v3957, %v4037
        %v4039 = vpop.f32.mrf.mxu0
        %4040 = vdwg.mxu0
        %v4041 = vld [vmem:[#allocation20] sm:$0x7]
        %v4042 = vlaneseq
        %v4043 = vshrl.u32 %v4042, 7
        %v4044 = vsub.s32 2, %v4043
        %v4045 = vrot.slane %v4041, %v4044
        %v4046 = vmul.f32 %v4045, %v4032
        %v4047 = vmul.f32 %v4045, %v4038
        %v4048 = vlaneseq
        %v4049 = vshrl.u32 %v4048, 7
        %v4050 = vsub.s32 1, %v4049
        %v4051 = vrot.slane %v4041, %v4050
        %v4052 = vmul.f32 %v4051, 0.0
        %v4053 = vmul.f32 %v4051, %v4032
        %v4054 = vmul.f32 %v4051, %v4038
        %vm4058 = vcmask 1040384
        %v4059 = vrot.slane %v4052, 7
        %v4060 = vrot.slane %v4053, 7
        %v4061 = vsel %vm4058, %v4059, %v4060
        %v4062 = vrot.slane %v4054, 7
        %v4063 = vsel %vm4058, %v4060, %v4062
        %v4066 = vadd.f32 %v4046, %v4061
        %v4067 = vadd.f32 %v4047, %v4063
        %v4068 = vlaneseq
        %v4069 = vshrl.u32 %v4068, 7
        %v4070 = vsub.s32 0, %v4069
        %v4071 = vrot.slane %v4041, %v4070
        %v4072 = vmul.f32 %v4071, 0.0
        %v4073 = vmul.f32 %v4071, %v4032
        %v4074 = vmul.f32 %v4071, %v4038
        %vm4078 = vcmask 1041408
        %v4079 = vrot.slane %v4072, 6
        %v4080 = vrot.slane %v4073, 6
        %v4081 = vsel %vm4078, %v4079, %v4080
        %v4082 = vrot.slane %v4074, 6
        %v4083 = vsel %vm4078, %v4080, %v4082
        %v4086 = vadd.f32 %v4066, %v4081
        %v4087 = vadd.f32 %v4067, %v4083
        %v4088 = vld [vmem:[#allocation22] sm:$0x1]
        %v4090 = vlaneseq
        %v4091 = vshrl.u32 %v4090, 7
        %v4092 = vsub.s32 0, %v4091
        %v4093 = vrot.slane %v4088, %v4092
        %v4095 = vadd.f32 %v4086, %v4093
        %v4096 = vadd.f32 %v4087, %v4093
        %4099 = vrot.lane.b32.xlu0 %v4095, 32
        %v4100 = vpop.permute.xlu0 %4099
        %4101 = vrot.lane.b32.xlu0 %v4096, 32
        %v4102 = vpop.permute.xlu0 %4101
        %v4105 = vmul.f32 %v4095, %v4100
        %v4106 = vmul.f32 %v4096, %v4102
        %4109 = vrot.lane.b32.xlu0 %v4105, 64
        %v4110 = vpop.permute.xlu0 %4109
        %4111 = vrot.lane.b32.xlu0 %v4106, 64
        %v4112 = vpop.permute.xlu0 %4111
        %v4115 = vlaneseq
        %v4116 = vshrl.u32 %v4115, 7
        %v4117 = vsub.s32 0, %v4116
        %v4118 = vrot.slane %v3491, %v4117
        %v4119 = vmul.f32 %v4118, %v4110
        %v4120 = vmul.f32 %v4118, %v4112
        %v4121 = vlaneseq
        %v4122 = vshrl.u32 %v4121, 7
        %v4123 = vsub.s32 1, %v4122
        %v4124 = vrot.slane %v3491, %v4123
        %v4125 = vmul.f32 %v4124, 0.0
        %v4126 = vmul.f32 %v4124, %v4110
        %v4127 = vmul.f32 %v4124, %v4112
        %v4131 = vrot.slane %v4125, 7
        %v4132 = vrot.slane %v4126, 7
        %v4133 = vsel %vm4058, %v4131, %v4132
        %v4134 = vrot.slane %v4127, 7
        %v4135 = vsel %vm4058, %v4132, %v4134
        %v4138 = vadd.f32 %v4119, %v4133
        %v4139 = vadd.f32 %v4120, %v4135
        %v4140 = vlaneseq
        %v4141 = vshrl.u32 %v4140, 7
        %v4142 = vsub.s32 2, %v4141
        %v4143 = vrot.slane %v3491, %v4142
        %v4144 = vmul.f32 %v4143, 0.0
        %v4145 = vmul.f32 %v4143, %v4110
        %v4146 = vmul.f32 %v4143, %v4112
        %v4150 = vrot.slane %v4144, 6
        %v4151 = vrot.slane %v4145, 6
        %v4152 = vsel %vm4078, %v4150, %v4151
        %v4153 = vrot.slane %v4146, 6
        %v4154 = vsel %vm4078, %v4151, %v4153
        %v4157 = vadd.f32 %v4138, %v4152
        %v4158 = vadd.f32 %v4139, %v4154
        %v4159 = vlaneseq
        %v4160 = vshrl.u32 %v4159, 7
        %v4161 = vsub.s32 3, %v4160
        %v4162 = vrot.slane %v3491, %v4161
        %v4163 = vmul.f32 %v4162, 0.0
        %v4164 = vmul.f32 %v4162, %v4110
        %v4165 = vmul.f32 %v4162, %v4112
        %v4169 = vrot.slane %v4163, 5
        %v4170 = vrot.slane %v4164, 5
        %v4171 = vsel %vm790, %v4169, %v4170
        %v4172 = vrot.slane %v4165, 5
        %v4173 = vsel %vm790, %v4170, %v4172
        %v4176 = vadd.f32 %v4157, %v4171
        %v4177 = vadd.f32 %v4158, %v4173
        %v4178 = vlaneseq
        %v4179 = vshrl.u32 %v4178, 7
        %v4180 = vsub.s32 4, %v4179
        %v4181 = vrot.slane %v3491, %v4180
        %v4182 = vmul.f32 %v4181, 0.0
        %v4183 = vmul.f32 %v4181, %v4110
        %v4184 = vmul.f32 %v4181, %v4112
        %vm4188 = vcmask 1043456
        %v4189 = vrot.slane %v4182, 4
        %v4190 = vrot.slane %v4183, 4
        %v4191 = vsel %vm4188, %v4189, %v4190
        %v4192 = vrot.slane %v4184, 4
        %v4193 = vsel %vm4188, %v4190, %v4192
        %v4196 = vadd.f32 %v4176, %v4191
        %v4197 = vadd.f32 %v4177, %v4193
        %v4198 = vlaneseq
        %v4199 = vshrl.u32 %v4198, 7
        %v4200 = vsub.s32 5, %v4199
        %v4201 = vrot.slane %v3491, %v4200
        %v4202 = vmul.f32 %v4201, 0.0
        %v4203 = vmul.f32 %v4201, %v4110
        %v4204 = vmul.f32 %v4201, %v4112
        %vm4208 = vcmask 1044480
        %v4209 = vrot.slane %v4202, 3
        %v4210 = vrot.slane %v4203, 3
        %v4211 = vsel %vm4208, %v4209, %v4210
        %v4212 = vrot.slane %v4204, 3
        %v4213 = vsel %vm4208, %v4210, %v4212
        %v4216 = vadd.f32 %v4196, %v4211
        %v4217 = vadd.f32 %v4197, %v4213
        %v4218 = vlaneseq
        %v4219 = vshrl.u32 %v4218, 7
        %v4220 = vsub.s32 6, %v4219
        %v4221 = vrot.slane %v3491, %v4220
        %v4222 = vmul.f32 %v4221, 0.0
        %v4223 = vmul.f32 %v4221, %v4110
        %v4224 = vmul.f32 %v4221, %v4112
        %vm4228 = vcmask 1045504
        %v4229 = vrot.slane %v4222, 2
        %v4230 = vrot.slane %v4223, 2
        %v4231 = vsel %vm4228, %v4229, %v4230
        %v4232 = vrot.slane %v4224, 2
        %v4233 = vsel %vm4228, %v4230, %v4232
        %v4236 = vadd.f32 %v4216, %v4231
        %v4237 = vadd.f32 %v4217, %v4233
        %v4238 = vlaneseq
        %v4239 = vshrl.u32 %v4238, 7
        %v4240 = vsub.s32 7, %v4239
        %v4241 = vrot.slane %v3491, %v4240
        %v4242 = vmul.f32 %v4241, 0.0
        %v4243 = vmul.f32 %v4241, %v4110
        %v4244 = vmul.f32 %v4241, %v4112
        %vm4248 = vcmask 1046528
        %v4249 = vrot.slane %v4242, 1
        %v4250 = vrot.slane %v4243, 1
        %v4251 = vsel %vm4248, %v4249, %v4250
        %v4252 = vrot.slane %v4244, 1
        %v4253 = vsel %vm4248, %v4250, %v4252
        %v4256 = vadd.f32 %v4236, %v4251
        %v4257 = vadd.f32 %v4237, %v4253
        %v4258 = vlaneseq
        %v4259 = vshrl.u32 %v4258, 7
        %v4260 = vsub.s32 0, %v4259
        %v4261 = vrot.slane %v3492, %v4260
        %v4262 = vmul.f32 %v4261, 0.0
        %v4263 = vmul.f32 %v4261, %v4110
        %v4264 = vadd.f32 %v4256, %v4262
        %v4265 = vadd.f32 %v4257, %v4263
        %v4266 = vlaneseq
        %v4267 = vshrl.u32 %v4266, 7
        %v4268 = vsub.s32 1, %v4267
        %v4269 = vrot.slane %v3492, %v4268
        %v4270 = vmul.f32 %v4269, 0.0
        %v4271 = vmul.f32 %v4269, %v4110
        %v4274 = vrot.slane %v4270, 7
        %v4275 = vsel %vm4058, %v4274, %v4274
        %v4276 = vrot.slane %v4271, 7
        %v4277 = vsel %vm4058, %v4274, %v4276
        %v4280 = vadd.f32 %v4264, %v4275
        %v4281 = vadd.f32 %v4265, %v4277
        %v4282 = vlaneseq
        %v4283 = vshrl.u32 %v4282, 7
        %v4284 = vsub.s32 2, %v4283
        %v4285 = vrot.slane %v3492, %v4284
        %v4286 = vmul.f32 %v4285, 0.0
        %v4287 = vmul.f32 %v4285, %v4110
        %v4290 = vrot.slane %v4286, 6
        %v4291 = vsel %vm4078, %v4290, %v4290
        %v4292 = vrot.slane %v4287, 6
        %v4293 = vsel %vm4078, %v4290, %v4292
        %v4296 = vadd.f32 %v4280, %v4291
        %v4297 = vadd.f32 %v4281, %v4293
        %v4298 = vlaneseq
        %v4299 = vshrl.u32 %v4298, 7
        %v4300 = vsub.s32 3, %v4299
        %v4301 = vrot.slane %v3492, %v4300
        %v4302 = vmul.f32 %v4301, 0.0
        %v4303 = vmul.f32 %v4301, %v4110
        %v4306 = vrot.slane %v4302, 5
        %v4307 = vsel %vm790, %v4306, %v4306
        %v4308 = vrot.slane %v4303, 5
        %v4309 = vsel %vm790, %v4306, %v4308
        %v4312 = vadd.f32 %v4296, %v4307
        %v4313 = vadd.f32 %v4297, %v4309
        %v4314 = vlaneseq
        %v4315 = vshrl.u32 %v4314, 7
        %v4316 = vsub.s32 4, %v4315
        %v4317 = vrot.slane %v3492, %v4316
        %v4318 = vmul.f32 %v4317, 0.0
        %v4319 = vmul.f32 %v4317, %v4110
        %v4322 = vrot.slane %v4318, 4
        %v4323 = vsel %vm4188, %v4322, %v4322
        %v4324 = vrot.slane %v4319, 4
        %v4325 = vsel %vm4188, %v4322, %v4324
        %v4328 = vadd.f32 %v4312, %v4323
        %v4329 = vadd.f32 %v4313, %v4325
        %v4330 = vlaneseq
        %v4331 = vshrl.u32 %v4330, 7
        %v4332 = vsub.s32 5, %v4331
        %v4333 = vrot.slane %v3492, %v4332
        %v4334 = vmul.f32 %v4333, 0.0
        %v4335 = vmul.f32 %v4333, %v4110
        %v4338 = vrot.slane %v4334, 3
        %v4339 = vsel %vm4208, %v4338, %v4338
        %v4340 = vrot.slane %v4335, 3
        %v4341 = vsel %vm4208, %v4338, %v4340
        %v4344 = vadd.f32 %v4328, %v4339
        %v4345 = vadd.f32 %v4329, %v4341
        %v4346 = vlaneseq
        %v4347 = vshrl.u32 %v4346, 7
        %v4348 = vsub.s32 6, %v4347
        %v4349 = vrot.slane %v3492, %v4348
        %v4350 = vmul.f32 %v4349, 0.0
        %v4351 = vmul.f32 %v4349, %v4110
        %v4354 = vrot.slane %v4350, 2
        %v4355 = vsel %vm4228, %v4354, %v4354
        %v4356 = vrot.slane %v4351, 2
        %v4357 = vsel %vm4228, %v4354, %v4356
        %v4360 = vadd.f32 %v4344, %v4355
        %v4361 = vadd.f32 %v4345, %v4357
        %v4362 = vlaneseq
        %v4363 = vshrl.u32 %v4362, 7
        %v4364 = vsub.s32 7, %v4363
        %v4365 = vrot.slane %v3492, %v4364
        %v4366 = vmul.f32 %v4365, 0.0
        %v4367 = vmul.f32 %v4365, %v4110
        %v4370 = vrot.slane %v4366, 1
        %v4371 = vsel %vm4248, %v4370, %v4370
        %v4372 = vrot.slane %v4367, 1
        %v4373 = vsel %vm4248, %v4370, %v4372
        %v4376 = vadd.f32 %v4360, %v4371
        %v4377 = vadd.f32 %v4361, %v4373
        %v4378 = vld [vmem:[%s16] sm:$0x1]
        %v4380 = vlaneseq
        %v4381 = vshrl.u32 %v4380, 7
        %v4382 = vsub.s32 0, %v4381
        %v4383 = vrot.slane %v4378, %v4382
        %4384 = vrot.lane.b32.xlu0 %v4383, 64
        %v4385 = vpop.permute.xlu0 %4384
        %v4387 = vmul.f32 %v4105, %v4385
        %v4388 = vmul.f32 %v4106, %v4385
        %4391 = vrot.lane.b32.xlu0 %v4387, 64
        %v4392 = vpop.permute.xlu0 %4391
        %4393 = vrot.lane.b32.xlu0 %v4388, 64
        %v4394 = vpop.permute.xlu0 %4393
        %v4397 = vadd.f32 %v4376, %v4392
        %v4398 = vadd.f32 %v4377, %v4394
        %v4399 = vmul.f32 %v4397, %v4095
        %v4400 = vmul.f32 %v4398, %v4096
        %v4401 = vld [vmem:[%s17] sm:$0xff]
        %v4402 = vld [vmem:[%s17 + $0x8] sm:$0xff]
        %v4403 = vld [vmem:[%s17 + $0x10] sm:$0xff]
        %v4404 = vld [vmem:[%s17 + $0x18] sm:$0xff]
        %v4405 = vld [vmem:[%s18] sm:$0x1]
        %v4407 = vlaneseq
        %v4408 = vshrl.u32 %v4407, 7
        %v4409 = vsub.s32 0, %v4408
        %v4410 = vrot.slane %v4405, %v4409
        %v4413 = vsel %vm3506, %v4399, 0
        %v4416 = vsel %vm3506, %v4400, 0
        %4418 = vmatprep.subr.mxu0 0.0
        %4419 = vmatpush1.msra.mxu0 0.0
        %4420 = vmatprep.subr.mxu0 0.0
        %4421 = vmatpush1.msra.mxu0 0.0
        %4422 = vmatprep.subr.mxu0 0.0
        %4423 = vmatpush1.msra.mxu0 0.0
        %4424 = vmatprep.subr.mxu0 0.0
        %4425 = vmatpush1.msra.mxu0 0.0
        %4426 = vmatprep.subr.mxu0 0.0
        %4427 = vmatpush1.msra.mxu0 0.0
        %4428 = vmatprep.subr.mxu0 0.0
        %4429 = vmatpush1.msra.mxu0 0.0
        %4430 = vmatprep.subr.mxu0 0.0
        %4431 = vmatpush1.msra.mxu0 0.0
        %4432 = vmatprep.subr.mxu0 0.0
        %4433 = vmatpush1.msra.mxu0 0.0
        %4434 = vmatprep.subr.mxu0 0.0
        %4435 = vmatpush1.msra.mxu0 0.0
        %4436 = vmatprep.subr.mxu0 0.0
        %4437 = vmatpush1.msra.mxu0 0.0
        %4438 = vmatprep.subr.mxu0 0.0
        %4439 = vmatpush1.msra.mxu0 0.0
        %4440 = vmatprep.subr.mxu0 0.0
        %4441 = vmatpush1.msra.mxu0 0.0
        %4442 = vmatprep.subr.mxu0 0.0
        %v4443 = vand.u32 %v4404, 4294901760
        %4444 = vmatpush1.msra.mxu0 %v4443
        %4445 = vmatprep.subr.mxu0 0.0
        %v4446 = vand.u32 %v4403, 4294901760
        %4447 = vmatpush1.msra.mxu0 %v4446
        %4448 = vmatprep.subr.mxu0 0.0
        %v4449 = vand.u32 %v4402, 4294901760
        %4450 = vmatpush1.msra.mxu0 %v4449
        %4451 = vmatprep.subr.mxu0 0.0
        %v4452 = vand.u32 %v4401, 4294901760
        %4453 = vmatpush1.msra.mxu0 %v4452
        %4454 = vmatprep.subr.mxu0 0.0
        %4455 = vmatpush2.msra.mxu0 0.0
        %4456 = vmatprep.subr.mxu0 0.0
        %4457 = vmatpush2.msra.mxu0 0.0
        %4458 = vmatprep.subr.mxu0 0.0
        %4459 = vmatpush2.msra.mxu0 0.0
        %4460 = vmatprep.subr.mxu0 0.0
        %4461 = vmatpush2.msra.mxu0 0.0
        %4462 = vmatprep.subr.mxu0 0.0
        %4463 = vmatpush2.msra.mxu0 0.0
        %4464 = vmatprep.subr.mxu0 0.0
        %4465 = vmatpush2.msra.mxu0 0.0
        %4466 = vmatprep.subr.mxu0 0.0
        %4467 = vmatpush2.msra.mxu0 0.0
        %4468 = vmatprep.subr.mxu0 0.0
        %4469 = vmatpush2.msra.mxu0 0.0
        %4470 = vmatprep.subr.mxu0 0.0
        %4471 = vmatpush2.msra.mxu0 0.0
        %4472 = vmatprep.subr.mxu0 0.0
        %4473 = vmatpush2.msra.mxu0 0.0
        %4474 = vmatprep.subr.mxu0 0.0
        %4475 = vmatpush2.msra.mxu0 0.0
        %4476 = vmatprep.subr.mxu0 0.0
        %4477 = vmatpush2.msra.mxu0 0.0
        %4478 = vmatprep.subr.mxu0 0.0
        %4479 = vmatpush2.msra.mxu0 0.0
        %4480 = vmatprep.subr.mxu0 0.0
        %4481 = vmatpush2.msra.mxu0 0.0
        %4482 = vmatprep.subr.mxu0 0.0
        %4483 = vmatpush2.msra.mxu0 0.0
        %4484 = vmatprep.subr.mxu0 0.0
        %4485 = vmatpush2.msra.mxu0 0.0
        %4486 = vmatprep.mubr.f32.mxu0 0.0
        %v4487 = vand.u32 %v4413, 4294901760
        %v4488 = vsub.f32 %v4413, %v4487
        %v4489 = vand.u32 %v4488, 4294901760
        %v4490 = vsub.f32 %v4488, %v4489
        %v4491 = vand.u32 %v4490, 4294901760
        %4492 = vmatmul.mubr.f32.gmra.mxu0 %v4491
        %v4493 = vpop.f32.mrf.mxu0
        %v4494 = vadd.f32 %v4410, %v4493
        %v4495 = vpop.f32.mrf.mxu0
        %4496 = vmatprep.mubr.f32.mxu0 0.0
        %v4497 = vand.u32 %v4416, 4294901760
        %v4498 = vsub.f32 %v4416, %v4497
        %v4499 = vand.u32 %v4498, 4294901760
        %v4500 = vsub.f32 %v4498, %v4499
        %v4501 = vand.u32 %v4500, 4294901760
        %4502 = vmatmul.mubr.f32.gmra.mxu0 %v4501
        %v4503 = vpop.f32.mrf.mxu0
        %v4504 = vadd.f32 %v4410, %v4503
        %v4505 = vpop.f32.mrf.mxu0
        %4506 = vdwg.mxu0
        %4507 = vmatprep.subr.mxu0 0.0
        %4508 = vmatpush1.msra.mxu0 0.0
        %4509 = vmatprep.subr.mxu0 0.0
        %4510 = vmatpush1.msra.mxu0 0.0
        %4511 = vmatprep.subr.mxu0 0.0
        %4512 = vmatpush1.msra.mxu0 0.0
        %4513 = vmatprep.subr.mxu0 0.0
        %4514 = vmatpush1.msra.mxu0 0.0
        %4515 = vmatprep.subr.mxu0 0.0
        %4516 = vmatpush1.msra.mxu0 0.0
        %4517 = vmatprep.subr.mxu0 0.0
        %4518 = vmatpush1.msra.mxu0 0.0
        %4519 = vmatprep.subr.mxu0 0.0
        %4520 = vmatpush1.msra.mxu0 0.0
        %4521 = vmatprep.subr.mxu0 0.0
        %4522 = vmatpush1.msra.mxu0 0.0
        %4523 = vmatprep.subr.mxu0 0.0
        %4524 = vmatpush1.msra.mxu0 0.0
        %4525 = vmatprep.subr.mxu0 0.0
        %4526 = vmatpush1.msra.mxu0 0.0
        %4527 = vmatprep.subr.mxu0 0.0
        %4528 = vmatpush1.msra.mxu0 0.0
        %4529 = vmatprep.subr.mxu0 0.0
        %4530 = vmatpush1.msra.mxu0 0.0
        %4531 = vmatprep.subr.mxu0 0.0
        %v4532 = vand.u32 %v4404, 4294901760
        %v4533 = vsub.f32 %v4404, %v4532
        %v4534 = vand.u32 %v4533, 4294901760
        %v4535 = vsub.f32 %v4533, %v4534
        %v4536 = vand.u32 %v4535, 4294901760
        %4537 = vmatpush1.msra.mxu0 %v4536
        %4538 = vmatprep.subr.mxu0 0.0
        %v4539 = vand.u32 %v4403, 4294901760
        %v4540 = vsub.f32 %v4403, %v4539
        %v4541 = vand.u32 %v4540, 4294901760
        %v4542 = vsub.f32 %v4540, %v4541
        %v4543 = vand.u32 %v4542, 4294901760
        %4544 = vmatpush1.msra.mxu0 %v4543
        %4545 = vmatprep.subr.mxu0 0.0
        %v4546 = vand.u32 %v4402, 4294901760
        %v4547 = vsub.f32 %v4402, %v4546
        %v4548 = vand.u32 %v4547, 4294901760
        %v4549 = vsub.f32 %v4547, %v4548
        %v4550 = vand.u32 %v4549, 4294901760
        %4551 = vmatpush1.msra.mxu0 %v4550
        %4552 = vmatprep.subr.mxu0 0.0
        %v4553 = vand.u32 %v4401, 4294901760
        %v4554 = vsub.f32 %v4401, %v4553
        %v4555 = vand.u32 %v4554, 4294901760
        %v4556 = vsub.f32 %v4554, %v4555
        %v4557 = vand.u32 %v4556, 4294901760
        %4558 = vmatpush1.msra.mxu0 %v4557
        %4559 = vmatprep.subr.mxu0 0.0
        %4560 = vmatpush2.msra.mxu0 0.0
        %4561 = vmatprep.subr.mxu0 0.0
        %4562 = vmatpush2.msra.mxu0 0.0
        %4563 = vmatprep.subr.mxu0 0.0
        %4564 = vmatpush2.msra.mxu0 0.0
        %4565 = vmatprep.subr.mxu0 0.0
        %4566 = vmatpush2.msra.mxu0 0.0
        %4567 = vmatprep.subr.mxu0 0.0
        %4568 = vmatpush2.msra.mxu0 0.0
        %4569 = vmatprep.subr.mxu0 0.0
        %4570 = vmatpush2.msra.mxu0 0.0
        %4571 = vmatprep.subr.mxu0 0.0
        %4572 = vmatpush2.msra.mxu0 0.0
        %4573 = vmatprep.subr.mxu0 0.0
        %4574 = vmatpush2.msra.mxu0 0.0
        %4575 = vmatprep.subr.mxu0 0.0
        %4576 = vmatpush2.msra.mxu0 0.0
        %4577 = vmatprep.subr.mxu0 0.0
        %4578 = vmatpush2.msra.mxu0 0.0
        %4579 = vmatprep.subr.mxu0 0.0
        %4580 = vmatpush2.msra.mxu0 0.0
        %4581 = vmatprep.subr.mxu0 0.0
        %4582 = vmatpush2.msra.mxu0 0.0
        %4583 = vmatprep.subr.mxu0 0.0
        %4584 = vmatpush2.msra.mxu0 0.0
        %4585 = vmatprep.subr.mxu0 0.0
        %4586 = vmatpush2.msra.mxu0 0.0
        %4587 = vmatprep.subr.mxu0 0.0
        %4588 = vmatpush2.msra.mxu0 0.0
        %4589 = vmatprep.subr.mxu0 0.0
        %4590 = vmatpush2.msra.mxu0 0.0
        %4591 = vmatprep.mubr.f32.mxu0 0.0
        %v4592 = vand.u32 %v4413, 4294901760
        %4593 = vmatmul.mubr.f32.gmra.mxu0 %v4592
        %v4594 = vpop.f32.mrf.mxu0
        %v4595 = vadd.f32 %v4494, %v4594
        %v4596 = vpop.f32.mrf.mxu0
        %4597 = vmatprep.mubr.f32.mxu0 0.0
        %v4598 = vand.u32 %v4416, 4294901760
        %4599 = vmatmul.mubr.f32.gmra.mxu0 %v4598
        %v4600 = vpop.f32.mrf.mxu0
        %v4601 = vadd.f32 %v4504, %v4600
        %v4602 = vpop.f32.mrf.mxu0
        %4603 = vdwg.mxu0
        %4604 = vmatprep.subr.mxu0 0.0
        %4605 = vmatpush1.msra.mxu0 0.0
        %4606 = vmatprep.subr.mxu0 0.0
        %4607 = vmatpush1.msra.mxu0 0.0
        %4608 = vmatprep.subr.mxu0 0.0
        %4609 = vmatpush1.msra.mxu0 0.0
        %4610 = vmatprep.subr.mxu0 0.0
        %4611 = vmatpush1.msra.mxu0 0.0
        %4612 = vmatprep.subr.mxu0 0.0
        %4613 = vmatpush1.msra.mxu0 0.0
        %4614 = vmatprep.subr.mxu0 0.0
        %4615 = vmatpush1.msra.mxu0 0.0
        %4616 = vmatprep.subr.mxu0 0.0
        %4617 = vmatpush1.msra.mxu0 0.0
        %4618 = vmatprep.subr.mxu0 0.0
        %4619 = vmatpush1.msra.mxu0 0.0
        %4620 = vmatprep.subr.mxu0 0.0
        %4621 = vmatpush1.msra.mxu0 0.0
        %4622 = vmatprep.subr.mxu0 0.0
        %4623 = vmatpush1.msra.mxu0 0.0
        %4624 = vmatprep.subr.mxu0 0.0
        %4625 = vmatpush1.msra.mxu0 0.0
        %4626 = vmatprep.subr.mxu0 0.0
        %4627 = vmatpush1.msra.mxu0 0.0
        %4628 = vmatprep.subr.mxu0 0.0
        %v4629 = vand.u32 %v4404, 4294901760
        %v4630 = vsub.f32 %v4404, %v4629
        %4631 = vmatpush1.msra.mxu0 %v4630
        %4632 = vmatprep.subr.mxu0 0.0
        %v4633 = vand.u32 %v4403, 4294901760
        %v4634 = vsub.f32 %v4403, %v4633
        %4635 = vmatpush1.msra.mxu0 %v4634
        %4636 = vmatprep.subr.mxu0 0.0
        %v4637 = vand.u32 %v4402, 4294901760
        %v4638 = vsub.f32 %v4402, %v4637
        %4639 = vmatpush1.msra.mxu0 %v4638
        %4640 = vmatprep.subr.mxu0 0.0
        %v4641 = vand.u32 %v4401, 4294901760
        %v4642 = vsub.f32 %v4401, %v4641
        %4643 = vmatpush1.msra.mxu0 %v4642
        %4644 = vmatprep.subr.mxu0 0.0
        %4645 = vmatpush2.msra.mxu0 0.0
        %4646 = vmatprep.subr.mxu0 0.0
        %4647 = vmatpush2.msra.mxu0 0.0
        %4648 = vmatprep.subr.mxu0 0.0
        %4649 = vmatpush2.msra.mxu0 0.0
        %4650 = vmatprep.subr.mxu0 0.0
        %4651 = vmatpush2.msra.mxu0 0.0
        %4652 = vmatprep.subr.mxu0 0.0
        %4653 = vmatpush2.msra.mxu0 0.0
        %4654 = vmatprep.subr.mxu0 0.0
        %4655 = vmatpush2.msra.mxu0 0.0
        %4656 = vmatprep.subr.mxu0 0.0
        %4657 = vmatpush2.msra.mxu0 0.0
        %4658 = vmatprep.subr.mxu0 0.0
        %4659 = vmatpush2.msra.mxu0 0.0
        %4660 = vmatprep.subr.mxu0 0.0
        %4661 = vmatpush2.msra.mxu0 0.0
        %4662 = vmatprep.subr.mxu0 0.0
        %4663 = vmatpush2.msra.mxu0 0.0
        %4664 = vmatprep.subr.mxu0 0.0
        %4665 = vmatpush2.msra.mxu0 0.0
        %4666 = vmatprep.subr.mxu0 0.0
        %4667 = vmatpush2.msra.mxu0 0.0
        %4668 = vmatprep.subr.mxu0 0.0
        %4669 = vmatpush2.msra.mxu0 0.0
        %4670 = vmatprep.subr.mxu0 0.0
        %4671 = vmatpush2.msra.mxu0 0.0
        %4672 = vmatprep.subr.mxu0 0.0
        %4673 = vmatpush2.msra.mxu0 0.0
        %4674 = vmatprep.subr.mxu0 0.0
        %4675 = vmatpush2.msra.mxu0 0.0
        %4676 = vmatprep.mubr.f32.mxu0 0.0
        %v4677 = vand.u32 %v4413, 4294901760
        %v4678 = vsub.f32 %v4413, %v4677
        %4679 = vmatmul.mubr.f32.gmra.mxu0 %v4678
        %v4680 = vpop.f32.mrf.mxu0
        %v4681 = vadd.f32 %v4595, %v4680
        %v4682 = vpop.f32.mrf.mxu0
        %4683 = vmatprep.mubr.f32.mxu0 0.0
        %v4684 = vand.u32 %v4416, 4294901760
        %v4685 = vsub.f32 %v4416, %v4684
        %4686 = vmatmul.mubr.f32.gmra.mxu0 %v4685
        %v4687 = vpop.f32.mrf.mxu0
        %v4688 = vadd.f32 %v4601, %v4687
        %v4689 = vpop.f32.mrf.mxu0
        %4690 = vdwg.mxu0
        %4691 = vmatprep.subr.mxu0 0.0
        %4692 = vmatpush1.msra.mxu0 0.0
        %4693 = vmatprep.subr.mxu0 0.0
        %4694 = vmatpush1.msra.mxu0 0.0
        %4695 = vmatprep.subr.mxu0 0.0
        %4696 = vmatpush1.msra.mxu0 0.0
        %4697 = vmatprep.subr.mxu0 0.0
        %4698 = vmatpush1.msra.mxu0 0.0
        %4699 = vmatprep.subr.mxu0 0.0
        %4700 = vmatpush1.msra.mxu0 0.0
        %4701 = vmatprep.subr.mxu0 0.0
        %4702 = vmatpush1.msra.mxu0 0.0
        %4703 = vmatprep.subr.mxu0 0.0
        %4704 = vmatpush1.msra.mxu0 0.0
        %4705 = vmatprep.subr.mxu0 0.0
        %4706 = vmatpush1.msra.mxu0 0.0
        %4707 = vmatprep.subr.mxu0 0.0
        %4708 = vmatpush1.msra.mxu0 0.0
        %4709 = vmatprep.subr.mxu0 0.0
        %4710 = vmatpush1.msra.mxu0 0.0
        %4711 = vmatprep.subr.mxu0 0.0
        %4712 = vmatpush1.msra.mxu0 0.0
        %4713 = vmatprep.subr.mxu0 0.0
        %4714 = vmatpush1.msra.mxu0 0.0
        %4715 = vmatprep.subr.mxu0 0.0
        %v4716 = vand.u32 %v4404, 4294901760
        %4717 = vmatpush1.msra.mxu0 %v4716
        %4718 = vmatprep.subr.mxu0 0.0
        %v4719 = vand.u32 %v4403, 4294901760
        %4720 = vmatpush1.msra.mxu0 %v4719
        %4721 = vmatprep.subr.mxu0 0.0
        %v4722 = vand.u32 %v4402, 4294901760
        %4723 = vmatpush1.msra.mxu0 %v4722
        %4724 = vmatprep.subr.mxu0 0.0
        %v4725 = vand.u32 %v4401, 4294901760
        %4726 = vmatpush1.msra.mxu0 %v4725
        %4727 = vmatprep.subr.mxu0 0.0
        %4728 = vmatpush2.msra.mxu0 0.0
        %4729 = vmatprep.subr.mxu0 0.0
        %4730 = vmatpush2.msra.mxu0 0.0
        %4731 = vmatprep.subr.mxu0 0.0
        %4732 = vmatpush2.msra.mxu0 0.0
        %4733 = vmatprep.subr.mxu0 0.0
        %4734 = vmatpush2.msra.mxu0 0.0
        %4735 = vmatprep.subr.mxu0 0.0
        %4736 = vmatpush2.msra.mxu0 0.0
        %4737 = vmatprep.subr.mxu0 0.0
        %4738 = vmatpush2.msra.mxu0 0.0
        %4739 = vmatprep.subr.mxu0 0.0
        %4740 = vmatpush2.msra.mxu0 0.0
        %4741 = vmatprep.subr.mxu0 0.0
        %4742 = vmatpush2.msra.mxu0 0.0
        %4743 = vmatprep.subr.mxu0 0.0
        %4744 = vmatpush2.msra.mxu0 0.0
        %4745 = vmatprep.subr.mxu0 0.0
        %4746 = vmatpush2.msra.mxu0 0.0
        %4747 = vmatprep.subr.mxu0 0.0
        %4748 = vmatpush2.msra.mxu0 0.0
        %4749 = vmatprep.subr.mxu0 0.0
        %4750 = vmatpush2.msra.mxu0 0.0
        %4751 = vmatprep.subr.mxu0 0.0
        %4752 = vmatpush2.msra.mxu0 0.0
        %4753 = vmatprep.subr.mxu0 0.0
        %4754 = vmatpush2.msra.mxu0 0.0
        %4755 = vmatprep.subr.mxu0 0.0
        %4756 = vmatpush2.msra.mxu0 0.0
        %4757 = vmatprep.subr.mxu0 0.0
        %4758 = vmatpush2.msra.mxu0 0.0
        %4759 = vmatprep.mubr.f32.mxu0 0.0
        %v4760 = vand.u32 %v4413, 4294901760
        %v4761 = vsub.f32 %v4413, %v4760
        %v4762 = vand.u32 %v4761, 4294901760
        %4763 = vmatmul.mubr.f32.gmra.mxu0 %v4762
        %v4764 = vpop.f32.mrf.mxu0
        %v4765 = vadd.f32 %v4681, %v4764
        %v4766 = vpop.f32.mrf.mxu0
        %4767 = vmatprep.mubr.f32.mxu0 0.0
        %v4768 = vand.u32 %v4416, 4294901760
        %v4769 = vsub.f32 %v4416, %v4768
        %v4770 = vand.u32 %v4769, 4294901760
        %4771 = vmatmul.mubr.f32.gmra.mxu0 %v4770
        %v4772 = vpop.f32.mrf.mxu0
        %v4773 = vadd.f32 %v4688, %v4772
        %v4774 = vpop.f32.mrf.mxu0
        %4775 = vdwg.mxu0
        %4776 = vmatprep.subr.mxu0 0.0
        %4777 = vmatpush1.msra.mxu0 0.0
        %4778 = vmatprep.subr.mxu0 0.0
        %4779 = vmatpush1.msra.mxu0 0.0
        %4780 = vmatprep.subr.mxu0 0.0
        %4781 = vmatpush1.msra.mxu0 0.0
        %4782 = vmatprep.subr.mxu0 0.0
        %4783 = vmatpush1.msra.mxu0 0.0
        %4784 = vmatprep.subr.mxu0 0.0
        %4785 = vmatpush1.msra.mxu0 0.0
        %4786 = vmatprep.subr.mxu0 0.0
        %4787 = vmatpush1.msra.mxu0 0.0
        %4788 = vmatprep.subr.mxu0 0.0
        %4789 = vmatpush1.msra.mxu0 0.0
        %4790 = vmatprep.subr.mxu0 0.0
        %4791 = vmatpush1.msra.mxu0 0.0
        %4792 = vmatprep.subr.mxu0 0.0
        %4793 = vmatpush1.msra.mxu0 0.0
        %4794 = vmatprep.subr.mxu0 0.0
        %4795 = vmatpush1.msra.mxu0 0.0
        %4796 = vmatprep.subr.mxu0 0.0
        %4797 = vmatpush1.msra.mxu0 0.0
        %4798 = vmatprep.subr.mxu0 0.0
        %4799 = vmatpush1.msra.mxu0 0.0
        %4800 = vmatprep.subr.mxu0 0.0
        %v4801 = vand.u32 %v4404, 4294901760
        %v4802 = vsub.f32 %v4404, %v4801
        %v4803 = vand.u32 %v4802, 4294901760
        %4804 = vmatpush1.msra.mxu0 %v4803
        %4805 = vmatprep.subr.mxu0 0.0
        %v4806 = vand.u32 %v4403, 4294901760
        %v4807 = vsub.f32 %v4403, %v4806
        %v4808 = vand.u32 %v4807, 4294901760
        %4809 = vmatpush1.msra.mxu0 %v4808
        %4810 = vmatprep.subr.mxu0 0.0
        %v4811 = vand.u32 %v4402, 4294901760
        %v4812 = vsub.f32 %v4402, %v4811
        %v4813 = vand.u32 %v4812, 4294901760
        %4814 = vmatpush1.msra.mxu0 %v4813
        %4815 = vmatprep.subr.mxu0 0.0
        %v4816 = vand.u32 %v4401, 4294901760
        %v4817 = vsub.f32 %v4401, %v4816
        %v4818 = vand.u32 %v4817, 4294901760
        %4819 = vmatpush1.msra.mxu0 %v4818
        %4820 = vmatprep.subr.mxu0 0.0
        %4821 = vmatpush2.msra.mxu0 0.0
        %4822 = vmatprep.subr.mxu0 0.0
        %4823 = vmatpush2.msra.mxu0 0.0
        %4824 = vmatprep.subr.mxu0 0.0
        %4825 = vmatpush2.msra.mxu0 0.0
        %4826 = vmatprep.subr.mxu0 0.0
        %4827 = vmatpush2.msra.mxu0 0.0
        %4828 = vmatprep.subr.mxu0 0.0
        %4829 = vmatpush2.msra.mxu0 0.0
        %4830 = vmatprep.subr.mxu0 0.0
        %4831 = vmatpush2.msra.mxu0 0.0
        %4832 = vmatprep.subr.mxu0 0.0
        %4833 = vmatpush2.msra.mxu0 0.0
        %4834 = vmatprep.subr.mxu0 0.0
        %4835 = vmatpush2.msra.mxu0 0.0
        %4836 = vmatprep.subr.mxu0 0.0
        %4837 = vmatpush2.msra.mxu0 0.0
        %4838 = vmatprep.subr.mxu0 0.0
        %4839 = vmatpush2.msra.mxu0 0.0
        %4840 = vmatprep.subr.mxu0 0.0
        %4841 = vmatpush2.msra.mxu0 0.0
        %4842 = vmatprep.subr.mxu0 0.0
        %4843 = vmatpush2.msra.mxu0 0.0
        %4844 = vmatprep.subr.mxu0 0.0
        %4845 = vmatpush2.msra.mxu0 0.0
        %4846 = vmatprep.subr.mxu0 0.0
        %4847 = vmatpush2.msra.mxu0 0.0
        %4848 = vmatprep.subr.mxu0 0.0
        %4849 = vmatpush2.msra.mxu0 0.0
        %4850 = vmatprep.subr.mxu0 0.0
        %4851 = vmatpush2.msra.mxu0 0.0
        %4852 = vmatprep.mubr.f32.mxu0 0.0
        %v4853 = vand.u32 %v4413, 4294901760
        %4854 = vmatmul.mubr.f32.gmra.mxu0 %v4853
        %v4855 = vpop.f32.mrf.mxu0
        %v4856 = vadd.f32 %v4765, %v4855
        %v4857 = vpop.f32.mrf.mxu0
        %4858 = vmatprep.mubr.f32.mxu0 0.0
        %v4859 = vand.u32 %v4416, 4294901760
        %4860 = vmatmul.mubr.f32.gmra.mxu0 %v4859
        %v4861 = vpop.f32.mrf.mxu0
        %v4862 = vadd.f32 %v4773, %v4861
        %v4863 = vpop.f32.mrf.mxu0
        %4864 = vdwg.mxu0
        %4865 = vmatprep.subr.mxu0 0.0
        %4866 = vmatpush1.msra.mxu0 0.0
        %4867 = vmatprep.subr.mxu0 0.0
        %4868 = vmatpush1.msra.mxu0 0.0
        %4869 = vmatprep.subr.mxu0 0.0
        %4870 = vmatpush1.msra.mxu0 0.0
        %4871 = vmatprep.subr.mxu0 0.0
        %4872 = vmatpush1.msra.mxu0 0.0
        %4873 = vmatprep.subr.mxu0 0.0
        %4874 = vmatpush1.msra.mxu0 0.0
        %4875 = vmatprep.subr.mxu0 0.0
        %4876 = vmatpush1.msra.mxu0 0.0
        %4877 = vmatprep.subr.mxu0 0.0
        %4878 = vmatpush1.msra.mxu0 0.0
        %4879 = vmatprep.subr.mxu0 0.0
        %4880 = vmatpush1.msra.mxu0 0.0
        %4881 = vmatprep.subr.mxu0 0.0
        %4882 = vmatpush1.msra.mxu0 0.0
        %4883 = vmatprep.subr.mxu0 0.0
        %4884 = vmatpush1.msra.mxu0 0.0
        %4885 = vmatprep.subr.mxu0 0.0
        %4886 = vmatpush1.msra.mxu0 0.0
        %4887 = vmatprep.subr.mxu0 0.0
        %4888 = vmatpush1.msra.mxu0 0.0
        %4889 = vmatprep.subr.mxu0 0.0
        %v4890 = vand.u32 %v4404, 4294901760
        %4891 = vmatpush1.msra.mxu0 %v4890
        %4892 = vmatprep.subr.mxu0 0.0
        %v4893 = vand.u32 %v4403, 4294901760
        %4894 = vmatpush1.msra.mxu0 %v4893
        %4895 = vmatprep.subr.mxu0 0.0
        %v4896 = vand.u32 %v4402, 4294901760
        %4897 = vmatpush1.msra.mxu0 %v4896
        %4898 = vmatprep.subr.mxu0 0.0
        %v4899 = vand.u32 %v4401, 4294901760
        %4900 = vmatpush1.msra.mxu0 %v4899
        %4901 = vmatprep.subr.mxu0 0.0
        %4902 = vmatpush2.msra.mxu0 0.0
        %4903 = vmatprep.subr.mxu0 0.0
        %4904 = vmatpush2.msra.mxu0 0.0
        %4905 = vmatprep.subr.mxu0 0.0
        %4906 = vmatpush2.msra.mxu0 0.0
        %4907 = vmatprep.subr.mxu0 0.0
        %4908 = vmatpush2.msra.mxu0 0.0
        %4909 = vmatprep.subr.mxu0 0.0
        %4910 = vmatpush2.msra.mxu0 0.0
        %4911 = vmatprep.subr.mxu0 0.0
        %4912 = vmatpush2.msra.mxu0 0.0
        %4913 = vmatprep.subr.mxu0 0.0
        %4914 = vmatpush2.msra.mxu0 0.0
        %4915 = vmatprep.subr.mxu0 0.0
        %4916 = vmatpush2.msra.mxu0 0.0
        %4917 = vmatprep.subr.mxu0 0.0
        %4918 = vmatpush2.msra.mxu0 0.0
        %4919 = vmatprep.subr.mxu0 0.0
        %4920 = vmatpush2.msra.mxu0 0.0
        %4921 = vmatprep.subr.mxu0 0.0
        %4922 = vmatpush2.msra.mxu0 0.0
        %4923 = vmatprep.subr.mxu0 0.0
        %4924 = vmatpush2.msra.mxu0 0.0
        %4925 = vmatprep.subr.mxu0 0.0
        %4926 = vmatpush2.msra.mxu0 0.0
        %4927 = vmatprep.subr.mxu0 0.0
        %4928 = vmatpush2.msra.mxu0 0.0
        %4929 = vmatprep.subr.mxu0 0.0
        %4930 = vmatpush2.msra.mxu0 0.0
        %4931 = vmatprep.subr.mxu0 0.0
        %4932 = vmatpush2.msra.mxu0 0.0
        %4933 = vmatprep.mubr.f32.mxu0 0.0
        %v4934 = vand.u32 %v4413, 4294901760
        %4935 = vmatmul.mubr.f32.gmra.mxu0 %v4934
        %v4936 = vpop.f32.mrf.mxu0
        %v4937 = vadd.f32 %v4856, %v4936
        %v4938 = vpop.f32.mrf.mxu0
        %4939 = vmatprep.mubr.f32.mxu0 0.0
        %v4940 = vand.u32 %v4416, 4294901760
        %4941 = vmatmul.mubr.f32.gmra.mxu0 %v4940
        %v4942 = vpop.f32.mrf.mxu0
        %v4943 = vadd.f32 %v4862, %v4942
        %v4944 = vpop.f32.mrf.mxu0
        %4945 = vdwg.mxu0
        %4946 = vst.msk [vmem:[%s766] sm:$0xff] %vm3506, %v4937
        %4947 = vst.msk [vmem:[%s766 + $0x8] sm:$0xff] %vm3506, %v4943
        %s4948 = sand.u32 %s452, 1
        %s4949 = scalar_lea.sflag [#allocation4], %s4948
        %s4950 = sand.u32 %s452, 1
        %s4951 = smul.addr %s4950, 16
        %s4952 = scalar_lea.vmem [#allocation23], %s4951
        // Predicated region
        $region149: #{hyena_forward.1} parent=95 // pred_check
          %p4953 = pneg %p462
        $region150: #{hyena_forward.1} parent=95 // pred_check_branch
          %4955 = sbr.rel (%p4953) target = $region152
        $region151: #{hyena_forward.1} parent=95 // pred_region
          %s4957 = ssub.s32 256, 256
          %4958 = vsyncadd %s4949, %s4957
          %s4959 = smul.addr %s40, 2
          %s4960 = smul.addr %s4959, 128
          %s4961 = scalar_lea.hbm %s19, %s4960
          %s4962 = sshll.u32 %s4952, 4
          %s4963 = int_to_ptr.vmem [resolvable:$true] %s4962
          %4968 = dma.vmem_to_hbm [thread:$0]  %s4963, 256, %s4961, %s4949, 128, 128, 8
        $region152: #{hyena_forward.1} parent=95 // pred_fallthru
          _
      $region96: #{hyena_forward.1} parent=5 // pred_fallthru
        _
      %p4969 = scmp.le.s32.totalorder 2, %s35
      // Predicated region
      $region153: #{hyena_forward.1} parent=5 // pred_check
        %p4970 = pneg %p4969
      $region154: #{hyena_forward.1} parent=5 // pred_check_branch
        %4972 = sbr.rel (%p4970) target = $region156
      $region155: #{hyena_forward.1} parent=5 // pred_region
        %s4973 = ssub.s32 %s35, 2
        // Predicated region
        $region157: #{hyena_forward.1} parent=155 // pred_check
          %p4974 = pneg %p468
        $region158: #{hyena_forward.1} parent=155 // pred_check_branch
          %4976 = sbr.rel (%p4974) target = $region160
        $region159: #{hyena_forward.1} parent=155 // pred_region
          %s4977 = sand.u32 %s453, 1
          %s4978 = scalar_lea.sflag [#allocation4], %s4977
          %s4979 = sand.u32 %s453, 1
          %s4980 = smul.addr %s4979, 16
          %s4981 = scalar_lea.vmem [#allocation23], %s4980
          %4982 = dma.done %s4978, 256
        $region160: #{hyena_forward.1} parent=155 // pred_fallthru
          _
      $region156: #{hyena_forward.1} parent=5 // pred_fallthru
        _
    $region6: #{hyena_forward.1} parent=1 // loop_footer
      %s39 = sadd.s32 1, %s35
    $region7: #{hyena_forward.1} parent=1 // loop_footer_branch
      %34 = sbr.rel target = $region3
    $region8: #{hyena_forward.1} parent=1 // loop_exit
      _
    %4983 = vsyncpa [#allocation3], 1
    %s4984 = scalar_lea.sflag [#allocation3], 1
    %4985 = vsyncpa %s4984, 1
    %4986 = vsyncpa [#allocation6], 1
    %4987 = vsyncpa [#allocation9], 1
    %4988 = vsyncpa [#allocation12], 1
    %4989 = vsyncpa [#allocation15], 1
    %4990 = vsyncpa [#allocation18], 1
    %4991 = vsyncpa [#allocation21], 1
    %4992 = vsyncpa [#allocation4], 1
    %s4993 = scalar_lea.sflag [#allocation4], 1
    %4994 = vsyncpa %s4993, 1

</llo_original>
